<compile_context>
chip_gen: v7x
topology: tpu7x:2x2x1
jax: 0.10.0
libtpu: 0.0.40
codegen_flags: <defaults>
</compile_context>

<pallas_src>
import jax
import jax.numpy as jnp
from jax.experimental import pallas as pl
from jax.experimental.pallas import tpu as pltpu


# ----------------------------------------------------------------------------
# helpers
# ----------------------------------------------------------------------------
def _sigmoid(x):
    # Exact sigmoid (used both in the GRU recurrence and the final output).
    return 1.0 / (1.0 + jnp.exp(-x))


def conv_dims(L_in):
    """Mirror of Devign.conv_layer_out_dim for the fixed conv stack."""
    L1 = L_in - 2                      # Conv1d(k=3, s=1, p=0)
    P1 = (L1 - 3) // 2 + 1             # MaxPool1d(3, stride=2)
    P2 = (P1 - 2) // 2 + 1             # MaxPool1d(2, stride=2)   (Conv1d(k=1) keeps length)
    return L1, P1, P2


def _graphs_per_block(b):
    """Graphs per conv-head grid step."""
    if b <= 8:
        return b
    for g in (32, 16, 8):
        if b % g == 0:
            return g
    return b


def _pool_linear_weights(lw, F):
    """Fold MaxPool1d(2,2) + Linear selection into a weight over all 'pm' offsets.

    The kernel computes pm[p] = max(c2[p], c2[p+2]) at every offset p in [0, F-7];
    the PyTorch pipeline only uses p = 4*i (i < P2) with Linear weight lw[i].
    """
    P2 = lw.shape[0]
    sel = jnp.zeros((F - 6, 1), jnp.float32)
    return sel.at[4 * jnp.arange(P2), :].set(lw)


# ----------------------------------------------------------------------------
# Kernel 1: fused GatedGraphConv, grid = (graph, layer), per-graph resident state
# ----------------------------------------------------------------------------
def ggnn_kernel(h0_ref, a_ref, wci_ref, wch_ref, bcat_ref, out_ref, h_sc):
    l = pl.program_id(1)
    H = h_sc.shape[1]

    # New graph: initialize the resident hidden state from the padded features.
    @pl.when(l == 0)
    def _():
        h_sc[...] = h0_ref[0]

    h = h_sc[...]                                                       # [200, H] f32

    # Reassociated aggregation:  gate_in = A @ (h @ (W_l @ [wi_r|wi_z|wi_n|0]))
    #   mi: [200, 4H=128] f32 -> bf16 for the MXU adjacency matmul (f32 accumulation).
    mi = jnp.dot(h, wci_ref[l], preferred_element_type=jnp.float32)     # [200, 4H]
    gi = jnp.dot(a_ref[0], mi.astype(jnp.bfloat16),
                 preferred_element_type=jnp.float32)                    # [200, 4H]

    # GRUCell: hidden-path gates fused into one 4H-lane matmul, layout [r | z | n_i | n_h].
    g = (gi
         + jnp.dot(h, wch_ref[...], preferred_element_type=jnp.float32)
         + bcat_ref[...])                                               # [200, 4H]

    rz = _sigmoid(g[:, 0:2 * H])                                        # fused r/z sigmoid
    r = rz[:, 0:H]
    z = rz[:, H:2 * H]
    n = jnp.tanh(g[:, 2 * H:3 * H] + r * g[:, 3 * H:4 * H])
    h_new = (1.0 - z) * n + z * h
    h_sc[...] = h_new

    @pl.when(l == pl.num_programs(1) - 1)
    def _():
        out_ref[0] = h_new


def ggnn_forward(h0, A, wci_fused, wch, bcat):
    B, Nn, H = h0.shape            # Nn == 200
    L = wci_fused.shape[0]
    const2 = lambda b, l: (0, 0)
    const3 = lambda b, l: (0, 0, 0)
    return pl.pallas_call(
        ggnn_kernel,
        out_shape=jax.ShapeDtypeStruct((B, Nn, H), jnp.float32),
        grid=(B, L),
        in_specs=[
            pl.BlockSpec((1, Nn, H), lambda b, l: (b, 0, 0)),    # h0, DMA'd once per graph
            pl.BlockSpec((1, Nn, Nn), lambda b, l: (b, 0, 0)),   # adjacency: resident across L
            pl.BlockSpec((L, H, 4 * H), const3),                 # fused per-layer gate-in weights
            pl.BlockSpec((H, 4 * H), const2),                    # fused GRU hidden weights
            pl.BlockSpec((1, 4 * H), const2),                    # fused GRU biases
        ],
        out_specs=pl.BlockSpec((1, Nn, H), lambda b, l: (b, 0, 0)),  # flushed once per graph
        scratch_shapes=[pltpu.VMEM((Nn, H), jnp.float32)],           # resident hidden state
        compiler_params=pltpu.CompilerParams(
            # Graph axis is independent (usable by the 2nd TensorCore on v7x);
            # the layer axis carries the recurrence through the scratch / resident output.
            dimension_semantics=("parallel", "arbitrary"),
        ),
    )(h0, A, wci_fused, wch, bcat)


# ----------------------------------------------------------------------------
# Kernel 2: dual conv heads (wide + narrow) + linear + sigmoid(z*y), batched graphs
# ----------------------------------------------------------------------------
def conv_head_kernel(z_ref, y_ref,
                     w1w_ref, b1w_ref, w2w_ref, b2w_ref, selw_ref, blw_ref,
                     w1n_ref, b1n_ref, w2n_ref, b2n_ref, seln_ref, bln_ref,
                     out_ref):
    GB = z_ref.shape[0]

    def head(x_ref, w1_ref, b1_ref, w2_ref, b2_ref, sel_ref, bl_ref):
        # x_ref block: [GB, F, 200] bf16 (length F on sublanes, 200 node-channels on lanes)
        F = x_ref.shape[1]
        C = x_ref.shape[2]
        L1 = F - 2
        M = L1 - 2

        # Conv1d(200 -> 50, k=3): 3 block-wide [GB*F, 200] @ [200, 50] bf16 matmuls (f32 acc),
        # then the kernel-tap shifts are applied on the 50-lane outputs.
        xf = x_ref[...].reshape(GB * F, C)
        y0 = jnp.dot(xf, w1_ref[0], preferred_element_type=jnp.float32).reshape(GB, F, 50)
        y1 = jnp.dot(xf, w1_ref[1], preferred_element_type=jnp.float32).reshape(GB, F, 50)
        y2 = jnp.dot(xf, w1_ref[2], preferred_element_type=jnp.float32).reshape(GB, F, 50)
        c1 = jnp.maximum(y0[:, 0:L1, :] + y1[:, 1:L1 + 1, :] + y2[:, 2:L1 + 2, :]
                         + b1_ref[...], 0.0)                                 # [GB, L1, 50]

        # MaxPool1d(3, s=2), vectorized: 3-neighbour max at every offset; the stride-2
        # selection is deferred (folded into the `sel` weights at the end).
        n3 = jnp.maximum(jnp.maximum(c1[:, 0:L1 - 2, :], c1[:, 1:L1 - 1, :]),
                         c1[:, 2:L1, :])                                     # [GB, M, 50]

        # Conv1d(50 -> 1, k=1) + ReLU at every offset, as a lane reduction (w2 stored [1, 50]).
        c2 = jnp.maximum(jnp.sum(n3 * w2_ref[...], axis=-1, keepdims=True)
                         + b2_ref[...], 0.0)                                 # [GB, M, 1]

        # MaxPool1d(2, s=2) + Linear fused: pm[p] = max(c2[p], c2[p+2]); the host-built
        # `sel` picks p = 4*i with weight lw[i]; bias added afterwards.
        pm = jnp.maximum(c2[:, 0:M - 2, :], c2[:, 2:M, :])                   # [GB, M-2, 1]
        return jnp.sum(pm * sel_ref[...], axis=1) + bl_ref[...]              # [GB, 1]

    zv = head(z_ref, w1w_ref, b1w_ref, w2w_ref, b2w_ref, selw_ref, blw_ref)
    yv = head(y_ref, w1n_ref, b1n_ref, w2n_ref, b2n_ref, seln_ref, bln_ref)
    out_ref[...] = _sigmoid(zv * yv)


def conv_head(z3, y3, wide, narrow):
    B, Fw, C = z3.shape
    _, Fn, _ = y3.shape
    GB = _graphs_per_block(B)
    const2 = lambda i: (0, 0)
    const3 = lambda i: (0, 0, 0)

    def head_specs(F):
        return [
            pl.BlockSpec((3, C, 50), const3), pl.BlockSpec((1, 50), const2),
            pl.BlockSpec((1, 50), const2), pl.BlockSpec((1, 1), const2),
            pl.BlockSpec((F - 6, 1), const2), pl.BlockSpec((1, 1), const2),
        ]

    return pl.pallas_call(
        conv_head_kernel,
        out_shape=jax.ShapeDtypeStruct((B, 1), jnp.float32),
        grid=(B // GB,),
        in_specs=[pl.BlockSpec((GB, Fw, C), lambda i: (i, 0, 0)),
                  pl.BlockSpec((GB, Fn, C), lambda i: (i, 0, 0))]
                 + head_specs(Fw) + head_specs(Fn),
        out_specs=pl.BlockSpec((GB, 1), lambda i: (i, 0)),
        compiler_params=pltpu.CompilerParams(dimension_semantics=("parallel",)),
    )(z3, y3, *wide, *narrow)


# ----------------------------------------------------------------------------
# Full forward pass (glue in plain JAX, hot paths in the two kernels above)
# ----------------------------------------------------------------------------
def devign_forward(params, x, edge_index, num_layers):
    N, D = x.shape
    H = params['gru_wi'].shape[-1]
    B = N // 200

    # --- GatedGraphConv -------------------------------------------------------
    # pad features to H; per-graph block-diagonal adjacency A[b, dst, src] += 1
    # (aggr='add', src -> dst). Edge multiplicities are small counts -> exact in bf16.
    h0 = jnp.concatenate([x.astype(jnp.float32),
                          jnp.zeros((N, H - D), jnp.float32)], axis=1).reshape(B, 200, H)
    src, dst = edge_index[0], edge_index[1]
    gs, gd = src // 200, dst // 200
    w_edge = jnp.where(gs == gd, 1.0, 0.0).astype(jnp.float32)     # drop cross-graph edges
    A = (jnp.zeros((B, 200, 200), jnp.float32)
         .at[gd, dst % 200, src % 200].add(w_edge)
         .astype(jnp.bfloat16))

    # Fuse GRU gate weights into 4H-wide blocks: columns [r | z | n_i | n_h], and pre-fuse
    # the per-layer GGNN weight into the gate-input projection: Wci_l = W_l @ [wi_r|wi_z|wi_n|0].
    wi, wh = params['gru_wi'], params['gru_wh']
    bi, bh = params['gru_bi'], params['gru_bh']
    zhh = jnp.zeros((H, H), jnp.float32)
    wci = jnp.concatenate([wi[0], wi[1], wi[2], zhh], axis=1)      # [H, 4H]
    wch = jnp.concatenate([wh[0], wh[1], zhh, wh[2]], axis=1)      # [H, 4H]
    bcat = jnp.concatenate([bi[0] + bh[0], bi[1] + bh[1], bi[2], bh[2]])[None, :]

    W = params['ggnn_w'][:num_layers]                              # [L, H, H]
    wci_fused = jnp.einsum('lij,jk->lik', W, wci)                  # [L, H, 4H]

    rec = ggnn_forward(h0, A, wci_fused, wch, bcat)                # [B, 200, H]
    rec_flat = rec.reshape(N, H)

    # --- readout heads --------------------------------------------------------
    # torch view(-1, 200, dim) -> [B, node, feat]; transpose to [B, feat(len), node(chan)]
    # so the conv/pool length axis sits on sublanes and the 200 channels on lanes.
    z = jnp.concatenate([x.astype(jnp.float32), rec_flat], axis=1)   # [N, D+H]
    z3 = z.reshape(B, 200, D + H).transpose(0, 2, 1).astype(jnp.bfloat16)  # [B, D+H, 200]
    y3 = rec.transpose(0, 2, 1).astype(jnp.bfloat16)                       # [B, H,   200]

    selw = _pool_linear_weights(params['lww'], D + H)
    seln = _pool_linear_weights(params['lwn'], H)
    wide = (params['w1w'].astype(jnp.bfloat16), params['b1w'],
            params['w2w'], params['b2w'], selw, params['blw'])
    narrow = (params['w1n'].astype(jnp.bfloat16), params['b1n'],
              params['w2n'], params['b2n'], seln, params['bln'])

    out = conv_head(z3, y3, wide, narrow)                          # [B, 1]
    return out[:, 0]                                               # [B]


# ----------------------------------------------------------------------------
# Deterministic synthetic parameter init (shapes implied by the module __init__)
# ----------------------------------------------------------------------------
def init_params(key, D, H, num_layers):
    _, _, P2w = conv_dims(D + H)     # wide_out_dim
    _, _, P2n = conv_dims(H)         # narrow_out_dim
    ks = jax.random.split(key, 18)
    s = 0.1
    rnd = lambda k, shape: jax.random.normal(k, shape, jnp.float32) * s
    return {
        # GatedGraphConv weight [L, H, H] (m = h @ W_l) and GRUCell weights split per gate (r, z, n)
        'ggnn_w': rnd(ks[0], (num_layers, H, H)),
        'gru_wi': rnd(ks[1], (3, H, H)),
        'gru_wh': rnd(ks[2], (3, H, H)),
        'gru_bi': rnd(ks[3], (3, H)),
        'gru_bh': rnd(ks[4], (3, H)),
        # wide head: Conv1d(200,50,3), Conv1d(50,1,1), Linear(P2w,1) (weights stored pre-transposed;
        # the k=1 conv weight is stored as a [1,50] lane row for the in-kernel lane reduction)
        'w1w': rnd(ks[5], (3, 200, 50)), 'b1w': rnd(ks[6], (1, 50)),
        'w2w': rnd(ks[7], (1, 50)),      'b2w': rnd(ks[8], (1, 1)),
        'lww': rnd(ks[9], (P2w, 1)),     'blw': rnd(ks[10], (1, 1)),
        # narrow head
        'w1n': rnd(ks[11], (3, 200, 50)), 'b1n': rnd(ks[12], (1, 50)),
        'w2n': rnd(ks[13], (1, 50)),      'b2n': rnd(ks[14], (1, 1)),
        'lwn': rnd(ks[15], (P2n, 1)),     'bln': rnd(ks[16], (1, 1)),
    }


if __name__ == "__main__":
    key = jax.random.PRNGKey(0)
    D, H, NUM_LAYERS = 8, 32, 2          # input_channels, hidden_channels, num_layers
    B = 2                                 # graphs; the module hard-codes 200 nodes per graph
    N = B * 200
    E = 1000

    k_x, k_src, k_dst, k_g, k_par = jax.random.split(key, 5)
    x = jax.random.normal(k_x, (N, D), jnp.float32)
    # Edges generated within each 200-node graph (torch_geometric batches are block-diagonal).
    graph = jax.random.randint(k_g, (E,), 0, B)
    src = graph * 200 + jax.random.randint(k_src, (E,), 0, 200)
    dst = graph * 200 + jax.random.randint(k_dst, (E,), 0, 200)
    edge_index = jnp.stack([src, dst])                     # [2, E]
    batch_index = jnp.repeat(jnp.arange(B), 200)           # unused by forward (signature parity)

    params = init_params(k_par, D, H, NUM_LAYERS)

    fwd = jax.jit(devign_forward, static_argnames=('num_layers',))
    out = fwd(params, x, edge_index, num_layers=NUM_LAYERS)
    out = jax.block_until_ready(out)
    assert out.shape == (B,), out.shape
    assert bool(jnp.all(jnp.isfinite(out)))
    print("KERNEL_OK")
</pallas_src>

<mosaic_0001>
module attributes {stable_mosaic.version = 11 : i64} {
  func.func @ggnn_kernel(%arg0: i32, %arg1: i32, %arg2: memref<1x200x32xf32, #tpu.memory_space<vmem>>, %arg3: memref<1x200x200xbf16, #tpu.memory_space<vmem>>, %arg4: memref<2x32x128xf32, #tpu.memory_space<vmem>>, %arg5: memref<32x128xf32, #tpu.memory_space<vmem>>, %arg6: memref<1x128xf32, #tpu.memory_space<vmem>>, %arg7: memref<1x200x32xf32, #tpu.memory_space<vmem>>, %arg8: memref<200x32xf32, #tpu.memory_space<vmem>>) attributes {dimension_semantics = [#tpu.dimension_semantics<parallel>, #tpu.dimension_semantics<arbitrary>], iteration_bounds = array<i64: 2, 2>, scalar_prefetch = 0 : i64, scratch_operands = 1 : i64, tpu.core_type = #tpu.core_type<tc>, window_params = [{transform_indices = @transform_0, window_bounds = array<i64: 1, 200, 32>}, {transform_indices = @transform_1, window_bounds = array<i64: 1, 200, 200>}, {pipeline_mode = #tpu.pipeline_mode<synchronous>, transform_indices = @transform_2, window_bounds = array<i64: 2, 32, 128>}, {pipeline_mode = #tpu.pipeline_mode<synchronous>, transform_indices = @transform_3, window_bounds = array<i64: 32, 128>}, {pipeline_mode = #tpu.pipeline_mode<synchronous>, transform_indices = @transform_4, window_bounds = array<i64: 1, 128>}, {transform_indices = @transform_5, window_bounds = array<i64: 1, 200, 32>}]} {
    %c0_i32 = arith.constant 0 : i32
    %0 = arith.cmpi eq, %arg1, %c0_i32 : i32
    %1 = arith.extui %0 : i1 to i32
    %c0_i32_0 = arith.constant 0 : i32
    %2 = arith.cmpi ne, %1, %c0_i32_0 : i32
    scf.if %2 {
      %c0_20 = arith.constant 0 : index
      %c0_21 = arith.constant 0 : index
      %c0_22 = arith.constant 0 : index
      %42 = vector.load %arg2[%c0_20, %c0_21, %c0_22] : memref<1x200x32xf32, #tpu.memory_space<vmem>>, vector<1x200x32xf32>
      %43 = vector.shape_cast %42 : vector<1x200x32xf32> to vector<200x32xf32>
      %c0_23 = arith.constant 0 : index
      %c0_24 = arith.constant 0 : index
      %44 = vector.load %arg8[%c0_23, %c0_24] : memref<200x32xf32, #tpu.memory_space<vmem>>, vector<200x32xf32>
      tpu.vector_store %arg8[%c0_23, %c0_24], %43 {strides = array<i32>} : memref<200x32xf32, #tpu.memory_space<vmem>>, vector<200x32xf32>,
    } else {
    }
    %c0 = arith.constant 0 : index
    %c0_1 = arith.constant 0 : index
    %3 = vector.load %arg8[%c0, %c0_1] : memref<200x32xf32, #tpu.memory_space<vmem>>, vector<200x32xf32>
    %4 = arith.index_cast %arg1 : i32 to index
    %c0_2 = arith.constant 0 : index
    %c0_3 = arith.constant 0 : index
    %5 = vector.load %arg4[%4, %c0_2, %c0_3] : memref<2x32x128xf32, #tpu.memory_space<vmem>>, vector<1x32x128xf32>
    %6 = vector.shape_cast %5 : vector<1x32x128xf32> to vector<32x128xf32>
    %cst = arith.constant dense<0.000000e+00> : vector<200x128xf32>
    %7 = tpu.matmul %3, %6, %cst {dimension_numbers = #tpu.dot_dimension_numbers<[1], [0], [0], [1], [0, 0, 1, 1], [], []>} : vector<200x32xf32>, vector<32x128xf32>, vector<200x128xf32> -> vector<200x128xf32>
    %c0_4 = arith.constant 0 : index
    %c0_5 = arith.constant 0 : index
    %c0_6 = arith.constant 0 : index
    %8 = vector.load %arg3[%c0_4, %c0_5, %c0_6] : memref<1x200x200xbf16, #tpu.memory_space<vmem>>, vector<1x200x200xbf16>
    %9 = vector.shape_cast %8 : vector<1x200x200xbf16> to vector<200x200xbf16>
    %10 = arith.truncf %7 : vector<200x128xf32> to vector<200x128xbf16>
    %cst_7 = arith.constant dense<0.000000e+00> : vector<200x128xf32>
    %11 = tpu.matmul %9, %10, %cst_7 {dimension_numbers = #tpu.dot_dimension_numbers<[1], [0], [0], [1], [0, 0, 1, 1], [], []>} : vector<200x200xbf16>, vector<200x128xbf16>, vector<200x128xf32> -> vector<200x128xf32>
    %c0_8 = arith.constant 0 : index
    %c0_9 = arith.constant 0 : index
    %12 = vector.load %arg5[%c0_8, %c0_9] : memref<32x128xf32, #tpu.memory_space<vmem>>, vector<32x128xf32>
    %cst_10 = arith.constant dense<0.000000e+00> : vector<200x128xf32>
    %13 = tpu.matmul %3, %12, %cst_10 {dimension_numbers = #tpu.dot_dimension_numbers<[1], [0], [0], [1], [0, 0, 1, 1], [], []>} : vector<200x32xf32>, vector<32x128xf32>, vector<200x128xf32> -> vector<200x128xf32>
    %14 = arith.addf %11, %13 : vector<200x128xf32>
    %c0_11 = arith.constant 0 : index
    %c0_12 = arith.constant 0 : index
    %15 = vector.load %arg6[%c0_11, %c0_12] : memref<1x128xf32, #tpu.memory_space<vmem>>, vector<1x128xf32>
    %16 = vector.broadcast %15 : vector<1x128xf32> to vector<200x128xf32>
    %17 = arith.addf %14, %16 : vector<200x128xf32>
    %18 = vector.extract_strided_slice %17 {offsets = [0, 0], sizes = [200, 64], strides = [1, 1]} : vector<200x128xf32> to vector<200x64xf32>
    %cst_13 = arith.constant 0.000000e+00 : f32
    %19 = vector.broadcast %cst_13 : f32 to vector<200x64xf32>
    %20 = arith.subf %19, %18 : vector<200x64xf32>
    %21 = math.exp %20 : vector<200x64xf32>
    %cst_14 = arith.constant 1.000000e+00 : f32
    %22 = vector.broadcast %cst_14 : f32 to vector<200x64xf32>
    %23 = arith.addf %22, %21 : vector<200x64xf32>
    %cst_15 = arith.constant 1.000000e+00 : f32
    %24 = vector.broadcast %cst_15 : f32 to vector<200x64xf32>
    %25 = arith.divf %24, %23 : vector<200x64xf32>
    %26 = vector.extract_strided_slice %25 {offsets = [0, 0], sizes = [200, 32], strides = [1, 1]} : vector<200x64xf32> to vector<200x32xf32>
    %27 = vector.extract_strided_slice %25 {offsets = [0, 32], sizes = [200, 32], strides = [1, 1]} : vector<200x64xf32> to vector<200x32xf32>
    %28 = vector.extract_strided_slice %17 {offsets = [0, 64], sizes = [200, 32], strides = [1, 1]} : vector<200x128xf32> to vector<200x32xf32>
    %29 = vector.extract_strided_slice %17 {offsets = [0, 96], sizes = [200, 32], strides = [1, 1]} : vector<200x128xf32> to vector<200x32xf32>
    %30 = arith.mulf %26, %29 : vector<200x32xf32>
    %31 = arith.addf %28, %30 : vector<200x32xf32>
    %32 = math.tanh %31 : vector<200x32xf32>
    %cst_16 = arith.constant 1.000000e+00 : f32
    %33 = vector.broadcast %cst_16 : f32 to vector<200x32xf32>
    %34 = arith.subf %33, %27 : vector<200x32xf32>
    %35 = arith.mulf %34, %32 : vector<200x32xf32>
    %36 = arith.mulf %27, %3 : vector<200x32xf32>
    %37 = arith.addf %35, %36 : vector<200x32xf32>
    %c0_17 = arith.constant 0 : index
    %c0_18 = arith.constant 0 : index
    %38 = vector.load %arg8[%c0_17, %c0_18] : memref<200x32xf32, #tpu.memory_space<vmem>>, vector<200x32xf32>
    tpu.vector_store %arg8[%c0_17, %c0_18], %37 {strides = array<i32>} : memref<200x32xf32, #tpu.memory_space<vmem>>, vector<200x32xf32>,
    %c1_i32 = arith.constant 1 : i32
    %39 = arith.cmpi eq, %arg1, %c1_i32 : i32
    %40 = arith.extui %39 : i1 to i32
    %c0_i32_19 = arith.constant 0 : i32
    %41 = arith.cmpi ne, %40, %c0_i32_19 : i32
    scf.if %41 {
      %c0_20 = arith.constant 0 : index
      %c0_21 = arith.constant 0 : index
      %c0_22 = arith.constant 0 : index
      %42 = vector.load %arg7[%c0_20, %c0_21, %c0_22] : memref<1x200x32xf32, #tpu.memory_space<vmem>>, vector<1x200x32xf32>
      %43 = vector.shape_cast %42 : vector<1x200x32xf32> to vector<200x32xf32>
      %44 = vector.shape_cast %37 : vector<200x32xf32> to vector<1x200x32xf32>
      tpu.vector_store %arg7[%c0_20, %c0_21, %c0_22], %44 {strides = array<i32>} : memref<1x200x32xf32, #tpu.memory_space<vmem>>, vector<1x200x32xf32>,
    } else {
    }
    return
  }
  func.func @transform_0(%arg0: i32, %arg1: i32) -> (i32, i32, i32) {
    %c0_i32 = arith.constant 0 : i32
    %c0_i32_0 = arith.constant 0 : i32
    %c0_i32_1 = arith.constant 0 : i32
    return %arg0, %c0_i32, %c0_i32_0 : i32, i32, i32
  }
  func.func @transform_1(%arg0: i32, %arg1: i32) -> (i32, i32, i32) {
    %c0_i32 = arith.constant 0 : i32
    %c0_i32_0 = arith.constant 0 : i32
    %c0_i32_1 = arith.constant 0 : i32
    return %arg0, %c0_i32, %c0_i32_0 : i32, i32, i32
  }
  func.func @transform_2(%arg0: i32, %arg1: i32) -> (i32, i32, i32) {
    %c0_i32 = arith.constant 0 : i32
    %c0_i32_0 = arith.constant 0 : i32
    %c0_i32_1 = arith.constant 0 : i32
    %c0_i32_2 = arith.constant 0 : i32
    return %c0_i32, %c0_i32_0, %c0_i32_1 : i32, i32, i32
  }
  func.func @transform_3(%arg0: i32, %arg1: i32) -> (i32, i32) {
    %c0_i32 = arith.constant 0 : i32
    %c0_i32_0 = arith.constant 0 : i32
    %c0_i32_1 = arith.constant 0 : i32
    return %c0_i32, %c0_i32_0 : i32, i32
  }
  func.func @transform_4(%arg0: i32, %arg1: i32) -> (i32, i32) {
    %c0_i32 = arith.constant 0 : i32
    %c0_i32_0 = arith.constant 0 : i32
    %c0_i32_1 = arith.constant 0 : i32
    return %c0_i32, %c0_i32_0 : i32, i32
  }
  func.func @transform_5(%arg0: i32, %arg1: i32) -> (i32, i32, i32) {
    %c0_i32 = arith.constant 0 : i32
    %c0_i32_0 = arith.constant 0 : i32
    %c0_i32_1 = arith.constant 0 : i32
    return %arg0, %c0_i32, %c0_i32_0 : i32, i32, i32
  }
}

module attributes {stable_mosaic.version = 11 : i64} {
  func.func @conv_head_kernel(%arg0: i32, %arg1: memref<2x40x200xbf16, #tpu.memory_space<vmem>>, %arg2: memref<2x32x200xbf16, #tpu.memory_space<vmem>>, %arg3: memref<3x200x50xbf16, #tpu.memory_space<vmem>>, %arg4: memref<1x50xf32, #tpu.memory_space<vmem>>, %arg5: memref<1x50xf32, #tpu.memory_space<vmem>>, %arg6: memref<1x1xf32, #tpu.memory_space<vmem>>, %arg7: memref<34x1xf32, #tpu.memory_space<vmem>>, %arg8: memref<1x1xf32, #tpu.memory_space<vmem>>, %arg9: memref<3x200x50xbf16, #tpu.memory_space<vmem>>, %arg10: memref<1x50xf32, #tpu.memory_space<vmem>>, %arg11: memref<1x50xf32, #tpu.memory_space<vmem>>, %arg12: memref<1x1xf32, #tpu.memory_space<vmem>>, %arg13: memref<26x1xf32, #tpu.memory_space<vmem>>, %arg14: memref<1x1xf32, #tpu.memory_space<vmem>>, %arg15: memref<2x1xf32, #tpu.memory_space<vmem>>) attributes {dimension_semantics = [#tpu.dimension_semantics<parallel>], iteration_bounds = array<i64: 1>, scalar_prefetch = 0 : i64, scratch_operands = 0 : i64, tpu.core_type = #tpu.core_type<tc>, window_params = [{transform_indices = @transform_0, window_bounds = array<i64: 2, 40, 200>}, {transform_indices = @transform_1, window_bounds = array<i64: 2, 32, 200>}, {pipeline_mode = #tpu.pipeline_mode<synchronous>, transform_indices = @transform_2, window_bounds = array<i64: 3, 200, 50>}, {pipeline_mode = #tpu.pipeline_mode<synchronous>, transform_indices = @transform_3, window_bounds = array<i64: 1, 50>}, {pipeline_mode = #tpu.pipeline_mode<synchronous>, transform_indices = @transform_4, window_bounds = array<i64: 1, 50>}, {pipeline_mode = #tpu.pipeline_mode<synchronous>, transform_indices = @transform_5, window_bounds = array<i64: 1, 1>}, {pipeline_mode = #tpu.pipeline_mode<synchronous>, transform_indices = @transform_6, window_bounds = array<i64: 34, 1>}, {pipeline_mode = #tpu.pipeline_mode<synchronous>, transform_indices = @transform_7, window_bounds = array<i64: 1, 1>}, {pipeline_mode = #tpu.pipeline_mode<synchronous>, transform_indices = @transform_8, window_bounds = array<i64: 3, 200, 50>}, {pipeline_mode = #tpu.pipeline_mode<synchronous>, transform_indices = @transform_9, window_bounds = array<i64: 1, 50>}, {pipeline_mode = #tpu.pipeline_mode<synchronous>, transform_indices = @transform_10, window_bounds = array<i64: 1, 50>}, {pipeline_mode = #tpu.pipeline_mode<synchronous>, transform_indices = @transform_11, window_bounds = array<i64: 1, 1>}, {pipeline_mode = #tpu.pipeline_mode<synchronous>, transform_indices = @transform_12, window_bounds = array<i64: 26, 1>}, {pipeline_mode = #tpu.pipeline_mode<synchronous>, transform_indices = @transform_13, window_bounds = array<i64: 1, 1>}, {transform_indices = @transform_14, window_bounds = array<i64: 2, 1>}]} {
    %c0 = arith.constant 0 : index
    %c0_0 = arith.constant 0 : index
    %c0_1 = arith.constant 0 : index
    %0 = vector.load %arg1[%c0, %c0_0, %c0_1] : memref<2x40x200xbf16, #tpu.memory_space<vmem>>, vector<2x40x200xbf16>
    %1 = vector.shape_cast %0 : vector<2x40x200xbf16> to vector<80x200xbf16>
    %c0_2 = arith.constant 0 : index
    %c0_3 = arith.constant 0 : index
    %c0_4 = arith.constant 0 : index
    %2 = vector.load %arg3[%c0_2, %c0_3, %c0_4] : memref<3x200x50xbf16, #tpu.memory_space<vmem>>, vector<1x200x50xbf16>
    %3 = vector.shape_cast %2 : vector<1x200x50xbf16> to vector<200x50xbf16>
    %cst = arith.constant dense<0.000000e+00> : vector<80x50xf32>
    %4 = tpu.matmul %1, %3, %cst {dimension_numbers = #tpu.dot_dimension_numbers<[1], [0], [0], [1], [0, 0, 1, 1], [], []>} : vector<80x200xbf16>, vector<200x50xbf16>, vector<80x50xf32> -> vector<80x50xf32>
    %5 = vector.shape_cast %4 : vector<80x50xf32> to vector<2x40x50xf32>
    %c1 = arith.constant 1 : index
    %c0_5 = arith.constant 0 : index
    %c0_6 = arith.constant 0 : index
    %6 = vector.load %arg3[%c1, %c0_5, %c0_6] : memref<3x200x50xbf16, #tpu.memory_space<vmem>>, vector<1x200x50xbf16>
    %7 = vector.shape_cast %6 : vector<1x200x50xbf16> to vector<200x50xbf16>
    %cst_7 = arith.constant dense<0.000000e+00> : vector<80x50xf32>
    %8 = tpu.matmul %1, %7, %cst_7 {dimension_numbers = #tpu.dot_dimension_numbers<[1], [0], [0], [1], [0, 0, 1, 1], [], []>} : vector<80x200xbf16>, vector<200x50xbf16>, vector<80x50xf32> -> vector<80x50xf32>
    %9 = vector.shape_cast %8 : vector<80x50xf32> to vector<2x40x50xf32>
    %c2 = arith.constant 2 : index
    %c0_8 = arith.constant 0 : index
    %c0_9 = arith.constant 0 : index
    %10 = vector.load %arg3[%c2, %c0_8, %c0_9] : memref<3x200x50xbf16, #tpu.memory_space<vmem>>, vector<1x200x50xbf16>
    %11 = vector.shape_cast %10 : vector<1x200x50xbf16> to vector<200x50xbf16>
    %cst_10 = arith.constant dense<0.000000e+00> : vector<80x50xf32>
    %12 = tpu.matmul %1, %11, %cst_10 {dimension_numbers = #tpu.dot_dimension_numbers<[1], [0], [0], [1], [0, 0, 1, 1], [], []>} : vector<80x200xbf16>, vector<200x50xbf16>, vector<80x50xf32> -> vector<80x50xf32>
    %13 = vector.shape_cast %12 : vector<80x50xf32> to vector<2x40x50xf32>
    %14 = vector.extract_strided_slice %5 {offsets = [0, 0, 0], sizes = [2, 38, 50], strides = [1, 1, 1]} : vector<2x40x50xf32> to vector<2x38x50xf32>
    %15 = vector.extract_strided_slice %9 {offsets = [0, 1, 0], sizes = [2, 38, 50], strides = [1, 1, 1]} : vector<2x40x50xf32> to vector<2x38x50xf32>
    %16 = arith.addf %14, %15 : vector<2x38x50xf32>
    %17 = vector.extract_strided_slice %13 {offsets = [0, 2, 0], sizes = [2, 38, 50], strides = [1, 1, 1]} : vector<2x40x50xf32> to vector<2x38x50xf32>
    %18 = arith.addf %16, %17 : vector<2x38x50xf32>
    %c0_11 = arith.constant 0 : index
    %c0_12 = arith.constant 0 : index
    %19 = vector.load %arg4[%c0_11, %c0_12] : memref<1x50xf32, #tpu.memory_space<vmem>>, vector<1x50xf32>
    %20 = vector.shape_cast %19 : vector<1x50xf32> to vector<1x1x50xf32>
    %21 = vector.broadcast %20 : vector<1x1x50xf32> to vector<2x38x50xf32>
    %22 = arith.addf %18, %21 : vector<2x38x50xf32>
    %cst_13 = arith.constant 0.000000e+00 : f32
    %23 = vector.broadcast %cst_13 : f32 to vector<2x38x50xf32>
    %24 = arith.maximumf %22, %23 : vector<2x38x50xf32>
    %25 = vector.extract_strided_slice %24 {offsets = [0, 0, 0], sizes = [2, 36, 50], strides = [1, 1, 1]} : vector<2x38x50xf32> to vector<2x36x50xf32>
    %26 = vector.extract_strided_slice %24 {offsets = [0, 1, 0], sizes = [2, 36, 50], strides = [1, 1, 1]} : vector<2x38x50xf32> to vector<2x36x50xf32>
    %27 = arith.maximumf %25, %26 : vector<2x36x50xf32>
    %28 = vector.extract_strided_slice %24 {offsets = [0, 2, 0], sizes = [2, 36, 50], strides = [1, 1, 1]} : vector<2x38x50xf32> to vector<2x36x50xf32>
    %29 = arith.maximumf %27, %28 : vector<2x36x50xf32>
    %c0_14 = arith.constant 0 : index
    %c0_15 = arith.constant 0 : index
    %30 = vector.load %arg5[%c0_14, %c0_15] : memref<1x50xf32, #tpu.memory_space<vmem>>, vector<1x50xf32>
    %31 = vector.shape_cast %30 : vector<1x50xf32> to vector<1x1x50xf32>
    %32 = vector.broadcast %31 : vector<1x1x50xf32> to vector<2x36x50xf32>
    %33 = arith.mulf %29, %32 : vector<2x36x50xf32>
    %cst_16 = arith.constant dense<0.000000e+00> : vector<2x36xf32>
    %34 = vector.multi_reduction <add>, %33, %cst_16 [2] : vector<2x36x50xf32> to vector<2x36xf32>
    %35 = vector.shape_cast %34 : vector<2x36xf32> to vector<2x36x1xf32>
    %c0_17 = arith.constant 0 : index
    %c0_18 = arith.constant 0 : index
    %36 = vector.load %arg6[%c0_17, %c0_18] : memref<1x1xf32, #tpu.memory_space<vmem>>, vector<1x1xf32>
    %37 = vector.shape_cast %36 : vector<1x1xf32> to vector<1x1x1xf32>
    %38 = vector.broadcast %37 : vector<1x1x1xf32> to vector<2x36x1xf32>
    %39 = arith.addf %35, %38 : vector<2x36x1xf32>
    %cst_19 = arith.constant 0.000000e+00 : f32
    %40 = vector.broadcast %cst_19 : f32 to vector<2x36x1xf32>
    %41 = arith.maximumf %39, %40 : vector<2x36x1xf32>
    %42 = vector.extract_strided_slice %41 {offsets = [0, 0, 0], sizes = [2, 34, 1], strides = [1, 1, 1]} : vector<2x36x1xf32> to vector<2x34x1xf32>
    %43 = vector.extract_strided_slice %41 {offsets = [0, 2, 0], sizes = [2, 34, 1], strides = [1, 1, 1]} : vector<2x36x1xf32> to vector<2x34x1xf32>
    %44 = arith.maximumf %42, %43 : vector<2x34x1xf32>
    %c0_20 = arith.constant 0 : index
    %c0_21 = arith.constant 0 : index
    %45 = vector.load %arg7[%c0_20, %c0_21] : memref<34x1xf32, #tpu.memory_space<vmem>>, vector<34x1xf32>
    %46 = vector.shape_cast %45 : vector<34x1xf32> to vector<1x34x1xf32>
    %47 = vector.broadcast %46 : vector<1x34x1xf32> to vector<2x34x1xf32>
    %48 = arith.mulf %44, %47 : vector<2x34x1xf32>
    %cst_22 = arith.constant dense<0.000000e+00> : vector<2x1xf32>
    %49 = vector.multi_reduction <add>, %48, %cst_22 [1] : vector<2x34x1xf32> to vector<2x1xf32>
    %c0_23 = arith.constant 0 : index
    %c0_24 = arith.constant 0 : index
    %50 = vector.load %arg8[%c0_23, %c0_24] : memref<1x1xf32, #tpu.memory_space<vmem>>, vector<1x1xf32>
    %51 = vector.broadcast %50 : vector<1x1xf32> to vector<2x1xf32>
    %52 = arith.addf %49, %51 : vector<2x1xf32>
    %c0_25 = arith.constant 0 : index
    %c0_26 = arith.constant 0 : index
    %c0_27 = arith.constant 0 : index
    %53 = vector.load %arg2[%c0_25, %c0_26, %c0_27] : memref<2x32x200xbf16, #tpu.memory_space<vmem>>, vector<2x32x200xbf16>
    %54 = vector.shape_cast %53 : vector<2x32x200xbf16> to vector<64x200xbf16>
    %c0_28 = arith.constant 0 : index
    %c0_29 = arith.constant 0 : index
    %c0_30 = arith.constant 0 : index
    %55 = vector.load %arg9[%c0_28, %c0_29, %c0_30] : memref<3x200x50xbf16, #tpu.memory_space<vmem>>, vector<1x200x50xbf16>
    %56 = vector.shape_cast %55 : vector<1x200x50xbf16> to vector<200x50xbf16>
    %cst_31 = arith.constant dense<0.000000e+00> : vector<64x50xf32>
    %57 = tpu.matmul %54, %56, %cst_31 {dimension_numbers = #tpu.dot_dimension_numbers<[1], [0], [0], [1], [0, 0, 1, 1], [], []>} : vector<64x200xbf16>, vector<200x50xbf16>, vector<64x50xf32> -> vector<64x50xf32>
    %58 = vector.shape_cast %57 : vector<64x50xf32> to vector<2x32x50xf32>
    %c1_32 = arith.constant 1 : index
    %c0_33 = arith.constant 0 : index
    %c0_34 = arith.constant 0 : index
    %59 = vector.load %arg9[%c1_32, %c0_33, %c0_34] : memref<3x200x50xbf16, #tpu.memory_space<vmem>>, vector<1x200x50xbf16>
    %60 = vector.shape_cast %59 : vector<1x200x50xbf16> to vector<200x50xbf16>
    %cst_35 = arith.constant dense<0.000000e+00> : vector<64x50xf32>
    %61 = tpu.matmul %54, %60, %cst_35 {dimension_numbers = #tpu.dot_dimension_numbers<[1], [0], [0], [1], [0, 0, 1, 1], [], []>} : vector<64x200xbf16>, vector<200x50xbf16>, vector<64x50xf32> -> vector<64x50xf32>
    %62 = vector.shape_cast %61 : vector<64x50xf32> to vector<2x32x50xf32>
    %c2_36 = arith.constant 2 : index
    %c0_37 = arith.constant 0 : index
    %c0_38 = arith.constant 0 : index
    %63 = vector.load %arg9[%c2_36, %c0_37, %c0_38] : memref<3x200x50xbf16, #tpu.memory_space<vmem>>, vector<1x200x50xbf16>
    %64 = vector.shape_cast %63 : vector<1x200x50xbf16> to vector<200x50xbf16>
    %cst_39 = arith.constant dense<0.000000e+00> : vector<64x50xf32>
    %65 = tpu.matmul %54, %64, %cst_39 {dimension_numbers = #tpu.dot_dimension_numbers<[1], [0], [0], [1], [0, 0, 1, 1], [], []>} : vector<64x200xbf16>, vector<200x50xbf16>, vector<64x50xf32> -> vector<64x50xf32>
    %66 = vector.shape_cast %65 : vector<64x50xf32> to vector<2x32x50xf32>
    %67 = vector.extract_strided_slice %58 {offsets = [0, 0, 0], sizes = [2, 30, 50], strides = [1, 1, 1]} : vector<2x32x50xf32> to vector<2x30x50xf32>
    %68 = vector.extract_strided_slice %62 {offsets = [0, 1, 0], sizes = [2, 30, 50], strides = [1, 1, 1]} : vector<2x32x50xf32> to vector<2x30x50xf32>
    %69 = arith.addf %67, %68 : vector<2x30x50xf32>
    %70 = vector.extract_strided_slice %66 {offsets = [0, 2, 0], sizes = [2, 30, 50], strides = [1, 1, 1]} : vector<2x32x50xf32> to vector<2x30x50xf32>
    %71 = arith.addf %69, %70 : vector<2x30x50xf32>
    %c0_40 = arith.constant 0 : index
    %c0_41 = arith.constant 0 : index
    %72 = vector.load %arg10[%c0_40, %c0_41] : memref<1x50xf32, #tpu.memory_space<vmem>>, vector<1x50xf32>
    %73 = vector.shape_cast %72 : vector<1x50xf32> to vector<1x1x50xf32>
    %74 = vector.broadcast %73 : vector<1x1x50xf32> to vector<2x30x50xf32>
    %75 = arith.addf %71, %74 : vector<2x30x50xf32>
    %cst_42 = arith.constant 0.000000e+00 : f32
    %76 = vector.broadcast %cst_42 : f32 to vector<2x30x50xf32>
    %77 = arith.maximumf %75, %76 : vector<2x30x50xf32>
    %78 = vector.extract_strided_slice %77 {offsets = [0, 0, 0], sizes = [2, 28, 50], strides = [1, 1, 1]} : vector<2x30x50xf32> to vector<2x28x50xf32>
    %79 = vector.extract_strided_slice %77 {offsets = [0, 1, 0], sizes = [2, 28, 50], strides = [1, 1, 1]} : vector<2x30x50xf32> to vector<2x28x50xf32>
    %80 = arith.maximumf %78, %79 : vector<2x28x50xf32>
    %81 = vector.extract_strided_slice %77 {offsets = [0, 2, 0], sizes = [2, 28, 50], strides = [1, 1, 1]} : vector<2x30x50xf32> to vector<2x28x50xf32>
    %82 = arith.maximumf %80, %81 : vector<2x28x50xf32>
    %c0_43 = arith.constant 0 : index
    %c0_44 = arith.constant 0 : index
    %83 = vector.load %arg11[%c0_43, %c0_44] : memref<1x50xf32, #tpu.memory_space<vmem>>, vector<1x50xf32>
    %84 = vector.shape_cast %83 : vector<1x50xf32> to vector<1x1x50xf32>
    %85 = vector.broadcast %84 : vector<1x1x50xf32> to vector<2x28x50xf32>
    %86 = arith.mulf %82, %85 : vector<2x28x50xf32>
    %cst_45 = arith.constant dense<0.000000e+00> : vector<2x28xf32>
    %87 = vector.multi_reduction <add>, %86, %cst_45 [2] : vector<2x28x50xf32> to vector<2x28xf32>
    %88 = vector.shape_cast %87 : vector<2x28xf32> to vector<2x28x1xf32>
    %c0_46 = arith.constant 0 : index
    %c0_47 = arith.constant 0 : index
    %89 = vector.load %arg12[%c0_46, %c0_47] : memref<1x1xf32, #tpu.memory_space<vmem>>, vector<1x1xf32>
    %90 = vector.shape_cast %89 : vector<1x1xf32> to vector<1x1x1xf32>
    %91 = vector.broadcast %90 : vector<1x1x1xf32> to vector<2x28x1xf32>
    %92 = arith.addf %88, %91 : vector<2x28x1xf32>
    %cst_48 = arith.constant 0.000000e+00 : f32
    %93 = vector.broadcast %cst_48 : f32 to vector<2x28x1xf32>
    %94 = arith.maximumf %92, %93 : vector<2x28x1xf32>
    %95 = vector.extract_strided_slice %94 {offsets = [0, 0, 0], sizes = [2, 26, 1], strides = [1, 1, 1]} : vector<2x28x1xf32> to vector<2x26x1xf32>
    %96 = vector.extract_strided_slice %94 {offsets = [0, 2, 0], sizes = [2, 26, 1], strides = [1, 1, 1]} : vector<2x28x1xf32> to vector<2x26x1xf32>
    %97 = arith.maximumf %95, %96 : vector<2x26x1xf32>
    %c0_49 = arith.constant 0 : index
    %c0_50 = arith.constant 0 : index
    %98 = vector.load %arg13[%c0_49, %c0_50] : memref<26x1xf32, #tpu.memory_space<vmem>>, vector<26x1xf32>
    %99 = vector.shape_cast %98 : vector<26x1xf32> to vector<1x26x1xf32>
    %100 = vector.broadcast %99 : vector<1x26x1xf32> to vector<2x26x1xf32>
    %101 = arith.mulf %97, %100 : vector<2x26x1xf32>
    %cst_51 = arith.constant dense<0.000000e+00> : vector<2x1xf32>
    %102 = vector.multi_reduction <add>, %101, %cst_51 [1] : vector<2x26x1xf32> to vector<2x1xf32>
    %c0_52 = arith.constant 0 : index
    %c0_53 = arith.constant 0 : index
    %103 = vector.load %arg14[%c0_52, %c0_53] : memref<1x1xf32, #tpu.memory_space<vmem>>, vector<1x1xf32>
    %104 = vector.broadcast %103 : vector<1x1xf32> to vector<2x1xf32>
    %105 = arith.addf %102, %104 : vector<2x1xf32>
    %106 = arith.mulf %52, %105 : vector<2x1xf32>
    %cst_54 = arith.constant 0.000000e+00 : f32
    %107 = vector.broadcast %cst_54 : f32 to vector<2x1xf32>
    %108 = arith.subf %107, %106 : vector<2x1xf32>
    %109 = math.exp %108 : vector<2x1xf32>
    %cst_55 = arith.constant 1.000000e+00 : f32
    %110 = vector.broadcast %cst_55 : f32 to vector<2x1xf32>
    %111 = arith.addf %110, %109 : vector<2x1xf32>
    %cst_56 = arith.constant 1.000000e+00 : f32
    %112 = vector.broadcast %cst_56 : f32 to vector<2x1xf32>
    %113 = arith.divf %112, %111 : vector<2x1xf32>
    %c0_57 = arith.constant 0 : index
    %c0_58 = arith.constant 0 : index
    %114 = vector.load %arg15[%c0_57, %c0_58] : memref<2x1xf32, #tpu.memory_space<vmem>>, vector<2x1xf32>
    tpu.vector_store %arg15[%c0_57, %c0_58], %113 {strides = array<i32>} : memref<2x1xf32, #tpu.memory_space<vmem>>, vector<2x1xf32>,
    return
  }
  func.func @transform_0(%arg0: i32) -> (i32, i32, i32) {
    %c0_i32 = arith.constant 0 : i32
    %c0_i32_0 = arith.constant 0 : i32
    %c0_i32_1 = arith.constant 0 : i32
    return %arg0, %c0_i32, %c0_i32_0 : i32, i32, i32
  }
  func.func @transform_1(%arg0: i32) -> (i32, i32, i32) {
    %c0_i32 = arith.constant 0 : i32
    %c0_i32_0 = arith.constant 0 : i32
    %c0_i32_1 = arith.constant 0 : i32
    return %arg0, %c0_i32, %c0_i32_0 : i32, i32, i32
  }
  func.func @transform_2(%arg0: i32) -> (i32, i32, i32) {
    %c0_i32 = arith.constant 0 : i32
    %c0_i32_0 = arith.constant 0 : i32
    %c0_i32_1 = arith.constant 0 : i32
    %c0_i32_2 = arith.constant 0 : i32
    return %c0_i32, %c0_i32_0, %c0_i32_1 : i32, i32, i32
  }
  func.func @transform_3(%arg0: i32) -> (i32, i32) {
    %c0_i32 = arith.constant 0 : i32
    %c0_i32_0 = arith.constant 0 : i32
    %c0_i32_1 = arith.constant 0 : i32
    return %c0_i32, %c0_i32_0 : i32, i32
  }
  func.func @transform_4(%arg0: i32) -> (i32, i32) {
    %c0_i32 = arith.constant 0 : i32
    %c0_i32_0 = arith.constant 0 : i32
    %c0_i32_1 = arith.constant 0 : i32
    return %c0_i32, %c0_i32_0 : i32, i32
  }
  func.func @transform_5(%arg0: i32) -> (i32, i32) {
    %c0_i32 = arith.constant 0 : i32
    %c0_i32_0 = arith.constant 0 : i32
    %c0_i32_1 = arith.constant 0 : i32
    return %c0_i32, %c0_i32_0 : i32, i32
  }
  func.func @transform_6(%arg0: i32) -> (i32, i32) {
    %c0_i32 = arith.constant 0 : i32
    %c0_i32_0 = arith.constant 0 : i32
    %c0_i32_1 = arith.constant 0 : i32
    return %c0_i32, %c0_i32_0 : i32, i32
  }
  func.func @transform_7(%arg0: i32) -> (i32, i32) {
    %c0_i32 = arith.constant 0 : i32
    %c0_i32_0 = arith.constant 0 : i32
    %c0_i32_1 = arith.constant 0 : i32
    return %c0_i32, %c0_i32_0 : i32, i32
  }
  func.func @transform_8(%arg0: i32) -> (i32, i32, i32) {
    %c0_i32 = arith.constant 0 : i32
    %c0_i32_0 = arith.constant 0 : i32
    %c0_i32_1 = arith.constant 0 : i32
    %c0_i32_2 = arith.constant 0 : i32
    return %c0_i32, %c0_i32_0, %c0_i32_1 : i32, i32, i32
  }
  func.func @transform_9(%arg0: i32) -> (i32, i32) {
    %c0_i32 = arith.constant 0 : i32
    %c0_i32_0 = arith.constant 0 : i32
    %c0_i32_1 = arith.constant 0 : i32
    return %c0_i32, %c0_i32_0 : i32, i32
  }
  func.func @transform_10(%arg0: i32) -> (i32, i32) {
    %c0_i32 = arith.constant 0 : i32
    %c0_i32_0 = arith.constant 0 : i32
    %c0_i32_1 = arith.constant 0 : i32
    return %c0_i32, %c0_i32_0 : i32, i32
  }
  func.func @transform_11(%arg0: i32) -> (i32, i32) {
    %c0_i32 = arith.constant 0 : i32
    %c0_i32_0 = arith.constant 0 : i32
    %c0_i32_1 = arith.constant 0 : i32
    return %c0_i32, %c0_i32_0 : i32, i32
  }
  func.func @transform_12(%arg0: i32) -> (i32, i32) {
    %c0_i32 = arith.constant 0 : i32
    %c0_i32_0 = arith.constant 0 : i32
    %c0_i32_1 = arith.constant 0 : i32
    return %c0_i32, %c0_i32_0 : i32, i32
  }
  func.func @transform_13(%arg0: i32) -> (i32, i32) {
    %c0_i32 = arith.constant 0 : i32
    %c0_i32_0 = arith.constant 0 : i32
    %c0_i32_1 = arith.constant 0 : i32
    return %c0_i32, %c0_i32_0 : i32, i32
  }
  func.func @transform_14(%arg0: i32) -> (i32, i32) {
    %c0_i32 = arith.constant 0 : i32
    %c0_i32_0 = arith.constant 0 : i32
    return %arg0, %c0_i32 : i32, i32
  }
}

</mosaic_0001>

<llo_original>
// kernel: devign_forward.2
$region0: #{devign_forward.2}
  #allocation0 [shape = 'u32[]', space=smem, size = 0x4, offset = 0x4, fixed_abs, tag = 'smem constant byte address 0x4 - core index']
  #allocation1 [shape = 'u32[144,128]{1,0:T(1,128)}', space=vmem, size = 0x12000, scoped, tag = 'internal scratch']
  #allocation2 [shape = 'f32[200,32]{1,0:T(8,128)}', space=vmem, size = 0x19000, scoped, tag = 'scratch operand']
  %s0 = inlined_call_operand.vmem [shape: f32[2,200,32], index: 0, kind: input, shape index: {}]
  %s1 = inlined_call_operand.vmem [shape: bf16[2,200,200], index: 1, kind: input, shape index: {}]
  %s2 = inlined_call_operand.vmem [shape: f32[2,32,128], index: 2, kind: input, shape index: {}]
  %s3 = inlined_call_operand.vmem [shape: f32[32,128], index: 3, kind: input, shape index: {}]
  %s4 = inlined_call_operand.vmem [shape: f32[1,128], index: 4, kind: input, shape index: {}]
  %s5 = inlined_call_operand.vmem [shape: f32[2,200,32], index: 5, kind: output, shape index: {}]
  %s6 = sld [smem:[#allocation0]]
  $region61: #{devign_forward.2} parent=0
    _
  %s8 = ssub.s32 1, %s6
  %s9 = scalar_select 0, %s8, %s6
  loop: start=0, step=1, limit=6
  $region2: #{devign_forward.2} parent=0 // loop_pre_header
    _
  $region3: #{devign_forward.2} parent=0 // loop_header
    %s11 = sphi 0, %s15
    %p12 = scmp.ge.s32.totalorder %s11, 6
    %s18 = sphi 0, %s30
    %s19 = sphi 0, %s26
    %s20 = sphi 0, %s18
    %s21 = sphi 0, %s19
    %s22 = sphi 0, %s20
    %s23 = sphi 0, %s21
    %s33 = sphi 0, %s35
    %s36 = sphi 0, %s33
    %s37 = sphi 0, %s36
    %s53 = sphi 0, %s37
    %s59 = sphi 0, %s61
    %s62 = sphi 0, %s59
    %s63 = sphi 0, %s62
    %s79 = sphi 0, %s63
    %s83 = sphi 0, %s83
    %s85 = sphi 0, %s83
    %s86 = sphi 0, %s85
    %s100 = sphi 0, %s86
    %s104 = sphi 0, %s104
    %s106 = sphi 0, %s104
    %s107 = sphi 0, %s106
    %s121 = sphi 0, %s107
    %s125 = sphi 0, %s125
    %s127 = sphi 0, %s125
    %s128 = sphi 0, %s127
    %s142 = sphi 0, %s128
    %s148 = sphi 0, %s150
    %s151 = sphi 0, %s148
    %s152 = sphi 0, %s151
    %s168 = sphi 0, %s152
  $region4: #{devign_forward.2} parent=0 // loop_header_branch
    %14 = sbr.rel (%p12) target = $region8
  $region5: #{devign_forward.2} parent=0 // loop_body
    %s16 = ssub.s32 %s11, 1
    %s17 = ssub.s32 %s11, 2
    %s24 = sadd.s32 1, %s19
    %p25 = scmp.ge.s32.totalorder %s24, 2
    %s26 = scalar_select %p25, 0, %s24
    %s27 = sadd.s32 1, %s18
    %s28 = scalar_select %p25, %s27, %s18
    %p29 = scmp.ge.s32.totalorder %s28, 2
    %s30 = scalar_select %p29, 0, %s28
    %s31 = ssub.s32 %s18, %s30
    %p32 = scmp.eq.s32.totalorder %s31, 0
    %s34 = sadd.s32 %s33, 1
    %s35 = scalar_select %p32, %s33, %s34
    %p38 = pneg %p32
    %p39 = scmp.eq.s32.totalorder %s11, 3
    %p40 = por %p38, %p39
    %p41 = scmp.ne.s32.totalorder %s33, %s36
    %p42 = scmp.eq.s32.totalorder %s11, 0
    %p43 = por %p41, %p42
    %p44 = scmp.ne.s32.totalorder %s33, %s36
    %p45 = scmp.eq.s32.totalorder %s16, 3
    %p46 = por %p44, %p45
    %p47 = scmp.ne.s32.totalorder %s36, %s37
    %p48 = scmp.eq.s32.totalorder %s16, 0
    %p49 = por %p47, %p48
    %p50 = scmp.ne.s32.totalorder %s36, %s37
    %p51 = scmp.eq.s32.totalorder %s17, 3
    %p52 = por %p50, %p51
    %p54 = scmp.ne.s32.totalorder %s37, %s53
    %p55 = scmp.eq.s32.totalorder %s17, 0
    %p56 = por %p54, %p55
    %s57 = ssub.s32 %s18, %s30
    %p58 = scmp.eq.s32.totalorder %s57, 0
    %s60 = sadd.s32 %s59, 1
    %s61 = scalar_select %p58, %s59, %s60
    %p64 = pneg %p58
    %p65 = scmp.eq.s32.totalorder %s11, 3
    %p66 = por %p64, %p65
    %p67 = scmp.ne.s32.totalorder %s59, %s62
    %p68 = scmp.eq.s32.totalorder %s11, 0
    %p69 = por %p67, %p68
    %p70 = scmp.ne.s32.totalorder %s59, %s62
    %p71 = scmp.eq.s32.totalorder %s16, 3
    %p72 = por %p70, %p71
    %p73 = scmp.ne.s32.totalorder %s62, %s63
    %p74 = scmp.eq.s32.totalorder %s16, 0
    %p75 = por %p73, %p74
    %p76 = scmp.ne.s32.totalorder %s62, %s63
    %p77 = scmp.eq.s32.totalorder %s17, 3
    %p78 = por %p76, %p77
    %p80 = scmp.ne.s32.totalorder %s63, %s79
    %p81 = scmp.eq.s32.totalorder %s17, 0
    %p82 = por %p80, %p81
    %s84 = sadd.s32 %s83, 1
    %p87 = scmp.eq.s32.totalorder %s11, 3
    %p88 = scmp.ne.s32.totalorder %s83, %s85
    %p89 = scmp.eq.s32.totalorder %s11, 0
    %p90 = por %p88, %p89
    %p91 = scmp.ne.s32.totalorder %s83, %s85
    %p92 = scmp.eq.s32.totalorder %s16, 3
    %p93 = por %p91, %p92
    %p94 = scmp.ne.s32.totalorder %s85, %s86
    %p95 = scmp.eq.s32.totalorder %s16, 0
    %p96 = por %p94, %p95
    %p97 = scmp.ne.s32.totalorder %s85, %s86
    %p98 = scmp.eq.s32.totalorder %s17, 3
    %p99 = por %p97, %p98
    %p101 = scmp.ne.s32.totalorder %s86, %s100
    %p102 = scmp.eq.s32.totalorder %s17, 0
    %p103 = por %p101, %p102
    %s105 = sadd.s32 %s104, 1
    %p108 = scmp.eq.s32.totalorder %s11, 3
    %p109 = scmp.ne.s32.totalorder %s104, %s106
    %p110 = scmp.eq.s32.totalorder %s11, 0
    %p111 = por %p109, %p110
    %p112 = scmp.ne.s32.totalorder %s104, %s106
    %p113 = scmp.eq.s32.totalorder %s16, 3
    %p114 = por %p112, %p113
    %p115 = scmp.ne.s32.totalorder %s106, %s107
    %p116 = scmp.eq.s32.totalorder %s16, 0
    %p117 = por %p115, %p116
    %p118 = scmp.ne.s32.totalorder %s106, %s107
    %p119 = scmp.eq.s32.totalorder %s17, 3
    %p120 = por %p118, %p119
    %p122 = scmp.ne.s32.totalorder %s107, %s121
    %p123 = scmp.eq.s32.totalorder %s17, 0
    %p124 = por %p122, %p123
    %s126 = sadd.s32 %s125, 1
    %p129 = scmp.eq.s32.totalorder %s11, 3
    %p130 = scmp.ne.s32.totalorder %s125, %s127
    %p131 = scmp.eq.s32.totalorder %s11, 0
    %p132 = por %p130, %p131
    %p133 = scmp.ne.s32.totalorder %s125, %s127
    %p134 = scmp.eq.s32.totalorder %s16, 3
    %p135 = por %p133, %p134
    %p136 = scmp.ne.s32.totalorder %s127, %s128
    %p137 = scmp.eq.s32.totalorder %s16, 0
    %p138 = por %p136, %p137
    %p139 = scmp.ne.s32.totalorder %s127, %s128
    %p140 = scmp.eq.s32.totalorder %s17, 3
    %p141 = por %p139, %p140
    %p143 = scmp.ne.s32.totalorder %s128, %s142
    %p144 = scmp.eq.s32.totalorder %s17, 0
    %p145 = por %p143, %p144
    %s146 = ssub.s32 %s18, %s30
    %p147 = scmp.eq.s32.totalorder %s146, 0
    %s149 = sadd.s32 %s148, 1
    %s150 = scalar_select %p147, %s148, %s149
    %p153 = pneg %p147
    %p154 = scmp.eq.s32.totalorder %s11, 3
    %p155 = por %p153, %p154
    %p156 = scmp.ne.s32.totalorder %s148, %s151
    %p157 = scmp.eq.s32.totalorder %s11, 0
    %p158 = por %p156, %p157
    %p159 = scmp.ne.s32.totalorder %s148, %s151
    %p160 = scmp.eq.s32.totalorder %s16, 3
    %p161 = por %p159, %p160
    %p162 = scmp.ne.s32.totalorder %s151, %s152
    %p163 = scmp.eq.s32.totalorder %s16, 0
    %p164 = por %p162, %p163
    %p165 = scmp.ne.s32.totalorder %s151, %s152
    %p166 = scmp.eq.s32.totalorder %s17, 3
    %p167 = por %p165, %p166
    %p169 = scmp.ne.s32.totalorder %s152, %s168
    %p170 = scmp.eq.s32.totalorder %s17, 0
    %p171 = por %p169, %p170
    %p172 = scmp.le.s32.totalorder 1, %s11
    %p173 = scmp.lt.s32.totalorder %s11, 5
    %p174 = pnand %p172, %p173
    %p175 = pneg %p174
    // Predicated region
    $region9: #{devign_forward.2} parent=5 // pred_check
      _
    $region10: #{devign_forward.2} parent=5 // pred_check_branch
      %177 = sbr.rel (%p174) target = $region12
    $region11: #{devign_forward.2} parent=5 // pred_region
      %s178 = ssub.s32 %s11, 1
      // Predicated region
      $region13: #{devign_forward.2} parent=11 // pred_check
        %p179 = pneg %p96
      $region14: #{devign_forward.2} parent=11 // pred_check_branch
        %181 = sbr.rel (%p179) target = $region16
      $region15: #{devign_forward.2} parent=11 // pred_region
        _
      $region16: #{devign_forward.2} parent=11 // pred_fallthru
        _
      // Predicated region
      $region17: #{devign_forward.2} parent=11 // pred_check
        %p182 = pneg %p117
      $region18: #{devign_forward.2} parent=11 // pred_check_branch
        %184 = sbr.rel (%p182) target = $region20
      $region19: #{devign_forward.2} parent=11 // pred_region
        _
      $region20: #{devign_forward.2} parent=11 // pred_fallthru
        _
      // Predicated region
      $region21: #{devign_forward.2} parent=11 // pred_check
        %p185 = pneg %p138
      $region22: #{devign_forward.2} parent=11 // pred_check_branch
        %187 = sbr.rel (%p185) target = $region24
      $region23: #{devign_forward.2} parent=11 // pred_region
        _
      $region24: #{devign_forward.2} parent=11 // pred_fallthru
        _
    $region12: #{devign_forward.2} parent=5 // pred_fallthru
      _
    %p188 = scmp.lt.s32.totalorder %s11, 4
    // Predicated region
    $region25: #{devign_forward.2} parent=5 // pred_check
      %p189 = pneg %p188
    $region26: #{devign_forward.2} parent=5 // pred_check_branch
      %191 = sbr.rel (%p189) target = $region28
    $region27: #{devign_forward.2} parent=5 // pred_region
      // Predicated region
      $region29: #{devign_forward.2} parent=27 // pred_check
        %p192 = pneg %p43
      $region30: #{devign_forward.2} parent=27 // pred_check_branch
        %194 = sbr.rel (%p192) target = $region32
      $region31: #{devign_forward.2} parent=27 // pred_region
        %p195 = scmp.lt.s32.totalorder %s18, 1
        %s196 = scalar_select %p195, %s18, 1
        %s197 = smul.addr %s196, 25
        %s198 = smul.addr %s197, 8
        %s199 = scalar_lea.vmem %s0, %s198
      $region32: #{devign_forward.2} parent=27 // pred_fallthru
        _
      // Predicated region
      $region33: #{devign_forward.2} parent=27 // pred_check
        %p200 = pneg %p69
      $region34: #{devign_forward.2} parent=27 // pred_check_branch
        %202 = sbr.rel (%p200) target = $region36
      $region35: #{devign_forward.2} parent=27 // pred_region
        %p203 = scmp.lt.s32.totalorder %s18, 1
        %s204 = scalar_select %p203, %s18, 1
        %s205 = smul.addr %s204, 50
        %s206 = smul.addr %s205, 4
        %s207 = scalar_lea.vmem %s1, %s206
      $region36: #{devign_forward.2} parent=27 // pred_fallthru
        _
    $region28: #{devign_forward.2} parent=5 // pred_fallthru
      _
    %p208 = scmp.le.s32.totalorder 1, %s11
    %p209 = scmp.lt.s32.totalorder %s11, 5
    %p210 = pnand %p208, %p209
    %p211 = pneg %p210
    // Predicated region
    $region37: #{devign_forward.2} parent=5 // pred_check
      _
    $region38: #{devign_forward.2} parent=5 // pred_check_branch
      %213 = sbr.rel (%p210) target = $region40
    $region39: #{devign_forward.2} parent=5 // pred_region
      %s214 = ssub.s32 %s11, 1
      %p215 = scmp.lt.s32.totalorder %s20, 1
      %s216 = scalar_select %p215, %s20, 1
      %s217 = smul.addr %s216, 25
      %s218 = smul.addr %s217, 8
      %s219 = scalar_lea.vmem %s0, %s218
      %p220 = pneg %p49
      %p221 = pneg %p46
      %p222 = scmp.lt.s32.totalorder %s20, 1
      %s223 = scalar_select %p222, %s20, 1
      %s224 = smul.addr %s223, 50
      %s225 = smul.addr %s224, 4
      %s226 = scalar_lea.vmem %s1, %s225
      %p227 = pneg %p75
      %p228 = pneg %p72
      %p229 = pneg %p96
      %p230 = pneg %p93
      %p231 = pneg %p117
      %p232 = pneg %p114
      %p233 = pneg %p138
      %p234 = pneg %p135
      %p235 = pneg %p164
      %p236 = pneg %p161
      %p237 = scmp.lt.s32.totalorder %s20, 1
      %s238 = scalar_select %p237, %s20, 1
      %s239 = smul.addr %s238, 25
      %s240 = smul.addr %s239, 8
      %s241 = scalar_lea.vmem %s5, %s240
      %p242 = scmp.lt.s32.totalorder %s20, 1
      %s243 = scalar_select %p242, %s20, 1
      %s244 = smul.addr %s243, 25
      %s245 = smul.addr %s244, 8
      %s246 = scalar_lea.vmem %s0, %s245
      %p247 = scmp.lt.s32.totalorder %s20, 1
      %s248 = scalar_select %p247, %s20, 1
      %s249 = smul.addr %s248, 50
      %s250 = smul.addr %s249, 4
      %s251 = scalar_lea.vmem %s1, %s250
      %p252 = scmp.lt.s32.totalorder %s20, 1
      %s253 = scalar_select %p252, %s20, 1
      %s254 = smul.addr %s253, 25
      %s255 = smul.addr %s254, 8
      %s256 = scalar_lea.vmem %s5, %s255
      %p258 = scmp.eq.s32.totalorder %s21, 0
      // Predicated region
      $region41: #{devign_forward.2} parent=39 // pred_check
        %p259 = pneg %p258
      $region42: #{devign_forward.2} parent=39 // pred_check_branch
        %261 = sbr.rel (%p259) target = $region44
      $region43: #{devign_forward.2} parent=39 // pred_region
        %v262 = vld [vmem:[%s246] sm:$0xff]
        %v263 = vld [vmem:[%s246 + $0x8] sm:$0xff]
        %v264 = vld [vmem:[%s246 + $0x10] sm:$0xff]
        %v265 = vld [vmem:[%s246 + $0x18] sm:$0xff]
        %v266 = vld [vmem:[%s246 + $0x20] sm:$0xff]
        %v267 = vld [vmem:[%s246 + $0x28] sm:$0xff]
        %v268 = vld [vmem:[%s246 + $0x30] sm:$0xff]
        %v269 = vld [vmem:[%s246 + $0x38] sm:$0xff]
        %v270 = vld [vmem:[%s246 + $0x40] sm:$0xff]
        %v271 = vld [vmem:[%s246 + $0x48] sm:$0xff]
        %v272 = vld [vmem:[%s246 + $0x50] sm:$0xff]
        %v273 = vld [vmem:[%s246 + $0x58] sm:$0xff]
        %v274 = vld [vmem:[%s246 + $0x60] sm:$0xff]
        %v275 = vld [vmem:[%s246 + $0x68] sm:$0xff]
        %v276 = vld [vmem:[%s246 + $0x70] sm:$0xff]
        %v277 = vld [vmem:[%s246 + $0x78] sm:$0xff]
        %v278 = vld [vmem:[%s246 + $0x80] sm:$0xff]
        %v279 = vld [vmem:[%s246 + $0x88] sm:$0xff]
        %v280 = vld [vmem:[%s246 + $0x90] sm:$0xff]
        %v281 = vld [vmem:[%s246 + $0x98] sm:$0xff]
        %v282 = vld [vmem:[%s246 + $0xa0] sm:$0xff]
        %v283 = vld [vmem:[%s246 + $0xa8] sm:$0xff]
        %v284 = vld [vmem:[%s246 + $0xb0] sm:$0xff]
        %v285 = vld [vmem:[%s246 + $0xb8] sm:$0xff]
        %v286 = vld [vmem:[%s246 + $0xc0] sm:$0xff]
        %vm287 = vcmask 261120
        %288 = vst.msk [vmem:[#allocation2] sm:$0xff] %vm287, %v262
        %289 = vst.msk [vmem:[#allocation2 + $0x8] sm:$0xff] %vm287, %v263
        %290 = vst.msk [vmem:[#allocation2 + $0x10] sm:$0xff] %vm287, %v264
        %291 = vst.msk [vmem:[#allocation2 + $0x18] sm:$0xff] %vm287, %v265
        %292 = vst.msk [vmem:[#allocation2 + $0x20] sm:$0xff] %vm287, %v266
        %293 = vst.msk [vmem:[#allocation2 + $0x28] sm:$0xff] %vm287, %v267
        %294 = vst.msk [vmem:[#allocation2 + $0x30] sm:$0xff] %vm287, %v268
        %295 = vst.msk [vmem:[#allocation2 + $0x38] sm:$0xff] %vm287, %v269
        %296 = vst.msk [vmem:[#allocation2 + $0x40] sm:$0xff] %vm287, %v270
        %297 = vst.msk [vmem:[#allocation2 + $0x48] sm:$0xff] %vm287, %v271
        %298 = vst.msk [vmem:[#allocation2 + $0x50] sm:$0xff] %vm287, %v272
        %299 = vst.msk [vmem:[#allocation2 + $0x58] sm:$0xff] %vm287, %v273
        %300 = vst.msk [vmem:[#allocation2 + $0x60] sm:$0xff] %vm287, %v274
        %301 = vst.msk [vmem:[#allocation2 + $0x68] sm:$0xff] %vm287, %v275
        %302 = vst.msk [vmem:[#allocation2 + $0x70] sm:$0xff] %vm287, %v276
        %303 = vst.msk [vmem:[#allocation2 + $0x78] sm:$0xff] %vm287, %v277
        %304 = vst.msk [vmem:[#allocation2 + $0x80] sm:$0xff] %vm287, %v278
        %305 = vst.msk [vmem:[#allocation2 + $0x88] sm:$0xff] %vm287, %v279
        %306 = vst.msk [vmem:[#allocation2 + $0x90] sm:$0xff] %vm287, %v280
        %307 = vst.msk [vmem:[#allocation2 + $0x98] sm:$0xff] %vm287, %v281
        %308 = vst.msk [vmem:[#allocation2 + $0xa0] sm:$0xff] %vm287, %v282
        %309 = vst.msk [vmem:[#allocation2 + $0xa8] sm:$0xff] %vm287, %v283
        %310 = vst.msk [vmem:[#allocation2 + $0xb0] sm:$0xff] %vm287, %v284
        %311 = vst.msk [vmem:[#allocation2 + $0xb8] sm:$0xff] %vm287, %v285
        %312 = vst.msk [vmem:[#allocation2 + $0xc0] sm:$0xff] %vm287, %v286
      $region44: #{devign_forward.2} parent=39 // pred_fallthru
        _
      %v313 = vld [vmem:[#allocation2] sm:$0xff]
      %v314 = vld [vmem:[#allocation2 + $0x8] sm:$0xff]
      %v315 = vld [vmem:[#allocation2 + $0x10] sm:$0xff]
      %v316 = vld [vmem:[#allocation2 + $0x18] sm:$0xff]
      %v317 = vld [vmem:[#allocation2 + $0x20] sm:$0xff]
      %v318 = vld [vmem:[#allocation2 + $0x28] sm:$0xff]
      %v319 = vld [vmem:[#allocation2 + $0x30] sm:$0xff]
      %v320 = vld [vmem:[#allocation2 + $0x38] sm:$0xff]
      %v321 = vld [vmem:[#allocation2 + $0x40] sm:$0xff]
      %v322 = vld [vmem:[#allocation2 + $0x48] sm:$0xff]
      %v323 = vld [vmem:[#allocation2 + $0x50] sm:$0xff]
      %v324 = vld [vmem:[#allocation2 + $0x58] sm:$0xff]
      %v325 = vld [vmem:[#allocation2 + $0x60] sm:$0xff]
      %v326 = vld [vmem:[#allocation2 + $0x68] sm:$0xff]
      %v327 = vld [vmem:[#allocation2 + $0x70] sm:$0xff]
      %v328 = vld [vmem:[#allocation2 + $0x78] sm:$0xff]
      %v329 = vld [vmem:[#allocation2 + $0x80] sm:$0xff]
      %v330 = vld [vmem:[#allocation2 + $0x88] sm:$0xff]
      %v331 = vld [vmem:[#allocation2 + $0x90] sm:$0xff]
      %v332 = vld [vmem:[#allocation2 + $0x98] sm:$0xff]
      %v333 = vld [vmem:[#allocation2 + $0xa0] sm:$0xff]
      %v334 = vld [vmem:[#allocation2 + $0xa8] sm:$0xff]
      %v335 = vld [vmem:[#allocation2 + $0xb0] sm:$0xff]
      %v336 = vld [vmem:[#allocation2 + $0xb8] sm:$0xff]
      %v337 = vld [vmem:[#allocation2 + $0xc0] sm:$0xff]
      %s338 = smul.u32 %s21, 32
      %s339 = scalar_lea.vmem %s2, %s338
      %v340 = vld [vmem:[%s339] sm:$0xff]
      %v341 = vld [vmem:[%s339 + $0x8] sm:$0xff]
      %v342 = vld [vmem:[%s339 + $0x10] sm:$0xff]
      %v343 = vld [vmem:[%s339 + $0x18] sm:$0xff]
      %vm344 = vcmask 261120
      %v346 = vsel %vm344, %v313, 0
      %v349 = vsel %vm344, %v314, 0
      %v352 = vsel %vm344, %v315, 0
      %v355 = vsel %vm344, %v316, 0
      %v358 = vsel %vm344, %v317, 0
      %v361 = vsel %vm344, %v318, 0
      %v364 = vsel %vm344, %v319, 0
      %v367 = vsel %vm344, %v320, 0
      %v370 = vsel %vm344, %v321, 0
      %v373 = vsel %vm344, %v322, 0
      %v376 = vsel %vm344, %v323, 0
      %v379 = vsel %vm344, %v324, 0
      %v382 = vsel %vm344, %v325, 0
      %v385 = vsel %vm344, %v326, 0
      %v388 = vsel %vm344, %v327, 0
      %v391 = vsel %vm344, %v328, 0
      %v394 = vsel %vm344, %v329, 0
      %v397 = vsel %vm344, %v330, 0
      %v400 = vsel %vm344, %v331, 0
      %v403 = vsel %vm344, %v332, 0
      %v406 = vsel %vm344, %v333, 0
      %v409 = vsel %vm344, %v334, 0
      %v412 = vsel %vm344, %v335, 0
      %v415 = vsel %vm344, %v336, 0
      %v418 = vsel %vm344, %v337, 0
      %420 = vmatprep.subr.mxu0 0.0
      %421 = vmatpush1.msra.mxu0 %v340
      %422 = vmatprep.subr.mxu0 0.0
      %423 = vmatpush1.msra.mxu0 %v341
      %424 = vmatprep.subr.mxu0 0.0
      %425 = vmatpush1.msra.mxu0 %v342
      %426 = vmatprep.subr.mxu0 0.0
      %427 = vmatpush1.msra.mxu0 %v343
      %428 = vmatprep.subr.mxu0 0.0
      %429 = vmatpush1.msra.mxu0 0.0
      %430 = vmatprep.subr.mxu0 0.0
      %431 = vmatpush1.msra.mxu0 0.0
      %432 = vmatprep.subr.mxu0 0.0
      %433 = vmatpush1.msra.mxu0 0.0
      %434 = vmatprep.subr.mxu0 0.0
      %435 = vmatpush1.msra.mxu0 0.0
      %436 = vmatprep.subr.mxu0 0.0
      %437 = vmatpush1.msra.mxu0 0.0
      %438 = vmatprep.subr.mxu0 0.0
      %439 = vmatpush1.msra.mxu0 0.0
      %440 = vmatprep.subr.mxu0 0.0
      %441 = vmatpush1.msra.mxu0 0.0
      %442 = vmatprep.subr.mxu0 0.0
      %443 = vmatpush1.msra.mxu0 0.0
      %444 = vmatprep.subr.mxu0 0.0
      %445 = vmatpush1.msra.mxu0 0.0
      %446 = vmatprep.subr.mxu0 0.0
      %447 = vmatpush1.msra.mxu0 0.0
      %448 = vmatprep.subr.mxu0 0.0
      %449 = vmatpush1.msra.mxu0 0.0
      %450 = vmatprep.subr.mxu0 0.0
      %451 = vmatpush1.msra.mxu0 0.0
      %452 = vmatprep.subr.mxu0 0.0
      %453 = vmatpush1.msra.mxu0 0.0
      %454 = vmatprep.subr.mxu0 0.0
      %455 = vmatpush1.msra.mxu0 0.0
      %456 = vmatprep.subr.mxu0 0.0
      %457 = vmatpush1.msra.mxu0 0.0
      %458 = vmatprep.subr.mxu0 0.0
      %459 = vmatpush1.msra.mxu0 0.0
      %460 = vmatprep.subr.mxu0 0.0
      %461 = vmatpush1.msra.mxu0 0.0
      %462 = vmatprep.subr.mxu0 0.0
      %463 = vmatpush1.msra.mxu0 0.0
      %464 = vmatprep.subr.mxu0 0.0
      %465 = vmatpush1.msra.mxu0 0.0
      %466 = vmatprep.subr.mxu0 0.0
      %467 = vmatpush1.msra.mxu0 0.0
      %468 = vmatprep.subr.mxu0 0.0
      %469 = vmatpush1.msra.mxu0 0.0
      %470 = vmatprep.subr.mxu0 0.0
      %471 = vmatpush1.msra.mxu0 0.0
      %472 = vmatprep.subr.mxu0 0.0
      %473 = vmatpush1.msra.mxu0 0.0
      %474 = vmatprep.subr.mxu0 0.0
      %475 = vmatpush1.msra.mxu0 0.0
      %476 = vmatprep.subr.mxu0 0.0
      %477 = vmatpush1.msra.mxu0 0.0
      %478 = vmatprep.subr.mxu0 0.0
      %479 = vmatpush1.msra.mxu0 0.0
      %480 = vmatprep.subr.mxu0 0.0
      %481 = vmatpush1.msra.mxu0 0.0
      %482 = vmatprep.subr.mxu0 0.0
      %483 = vmatpush1.msra.mxu0 0.0
      %484 = vmatprep.mubr.f32.mxu0 0.0
      %485 = vmatmul.mubr.f32.gmra.mrb[0].mxu0 %v346
      %v486 = vpop.f32.mrb[0].mxu0
      %v487 = vadd.f32 0.0, %v486
      %v488 = vpop.f32.mrb[0].mxu0
      %489 = vmatprep.mubr.f32.mxu0 0.0
      %490 = vmatmul.mubr.f32.gmra.mrb[0].mxu0 %v349
      %v491 = vpop.f32.mrb[0].mxu0
      %v492 = vadd.f32 0.0, %v491
      %v493 = vpop.f32.mrb[0].mxu0
      %494 = vmatprep.mubr.f32.mxu0 0.0
      %495 = vmatmul.mubr.f32.gmra.mrb[0].mxu0 %v352
      %v496 = vpop.f32.mrb[0].mxu0
      %v497 = vadd.f32 0.0, %v496
      %v498 = vpop.f32.mrb[0].mxu0
      %499 = vmatprep.mubr.f32.mxu0 0.0
      %500 = vmatmul.mubr.f32.gmra.mrb[0].mxu0 %v355
      %v501 = vpop.f32.mrb[0].mxu0
      %v502 = vadd.f32 0.0, %v501
      %v503 = vpop.f32.mrb[0].mxu0
      %504 = vmatprep.mubr.f32.mxu0 0.0
      %505 = vmatmul.mubr.f32.gmra.mrb[0].mxu0 %v358
      %v506 = vpop.f32.mrb[0].mxu0
      %v507 = vadd.f32 0.0, %v506
      %v508 = vpop.f32.mrb[0].mxu0
      %509 = vmatprep.mubr.f32.mxu0 0.0
      %510 = vmatmul.mubr.f32.gmra.mrb[0].mxu0 %v361
      %v511 = vpop.f32.mrb[0].mxu0
      %v512 = vadd.f32 0.0, %v511
      %v513 = vpop.f32.mrb[0].mxu0
      %514 = vmatprep.mubr.f32.mxu0 0.0
      %515 = vmatmul.mubr.f32.gmra.mrb[0].mxu0 %v364
      %v516 = vpop.f32.mrb[0].mxu0
      %v517 = vadd.f32 0.0, %v516
      %v518 = vpop.f32.mrb[0].mxu0
      %519 = vmatprep.mubr.f32.mxu0 0.0
      %520 = vmatmul.mubr.f32.gmra.mrb[0].mxu0 %v367
      %v521 = vpop.f32.mrb[0].mxu0
      %v522 = vadd.f32 0.0, %v521
      %v523 = vpop.f32.mrb[0].mxu0
      %524 = vmatprep.mubr.f32.mxu0 0.0
      %525 = vmatmul.mubr.f32.gmra.mrb[0].mxu0 %v370
      %v526 = vpop.f32.mrb[0].mxu0
      %v527 = vadd.f32 0.0, %v526
      %v528 = vpop.f32.mrb[0].mxu0
      %529 = vmatprep.mubr.f32.mxu0 0.0
      %530 = vmatmul.mubr.f32.gmra.mrb[0].mxu0 %v373
      %v531 = vpop.f32.mrb[0].mxu0
      %v532 = vadd.f32 0.0, %v531
      %v533 = vpop.f32.mrb[0].mxu0
      %534 = vmatprep.mubr.f32.mxu0 0.0
      %535 = vmatmul.mubr.f32.gmra.mrb[0].mxu0 %v376
      %v536 = vpop.f32.mrb[0].mxu0
      %v537 = vadd.f32 0.0, %v536
      %v538 = vpop.f32.mrb[0].mxu0
      %539 = vmatprep.mubr.f32.mxu0 0.0
      %540 = vmatmul.mubr.f32.gmra.mrb[0].mxu0 %v379
      %v541 = vpop.f32.mrb[0].mxu0
      %v542 = vadd.f32 0.0, %v541
      %v543 = vpop.f32.mrb[0].mxu0
      %544 = vmatprep.mubr.f32.mxu0 0.0
      %545 = vmatmul.mubr.f32.gmra.mrb[0].mxu0 %v382
      %v546 = vpop.f32.mrb[0].mxu0
      %v547 = vadd.f32 0.0, %v546
      %v548 = vpop.f32.mrb[0].mxu0
      %549 = vmatprep.mubr.f32.mxu0 0.0
      %550 = vmatmul.mubr.f32.gmra.mrb[0].mxu0 %v385
      %v551 = vpop.f32.mrb[0].mxu0
      %v552 = vadd.f32 0.0, %v551
      %v553 = vpop.f32.mrb[0].mxu0
      %554 = vmatprep.mubr.f32.mxu0 0.0
      %555 = vmatmul.mubr.f32.gmra.mrb[0].mxu0 %v388
      %v556 = vpop.f32.mrb[0].mxu0
      %v557 = vadd.f32 0.0, %v556
      %v558 = vpop.f32.mrb[0].mxu0
      %559 = vmatprep.mubr.f32.mxu0 0.0
      %560 = vmatmul.mubr.f32.gmra.mrb[0].mxu0 %v391
      %v561 = vpop.f32.mrb[0].mxu0
      %v562 = vadd.f32 0.0, %v561
      %v563 = vpop.f32.mrb[0].mxu0
      %564 = vmatprep.mubr.f32.mxu0 0.0
      %565 = vmatmul.mubr.f32.gmra.mrb[0].mxu0 %v394
      %v566 = vpop.f32.mrb[0].mxu0
      %v567 = vadd.f32 0.0, %v566
      %v568 = vpop.f32.mrb[0].mxu0
      %569 = vmatprep.mubr.f32.mxu0 0.0
      %570 = vmatmul.mubr.f32.gmra.mrb[0].mxu0 %v397
      %v571 = vpop.f32.mrb[0].mxu0
      %v572 = vadd.f32 0.0, %v571
      %v573 = vpop.f32.mrb[0].mxu0
      %574 = vmatprep.mubr.f32.mxu0 0.0
      %575 = vmatmul.mubr.f32.gmra.mrb[0].mxu0 %v400
      %v576 = vpop.f32.mrb[0].mxu0
      %v577 = vadd.f32 0.0, %v576
      %v578 = vpop.f32.mrb[0].mxu0
      %579 = vmatprep.mubr.f32.mxu0 0.0
      %580 = vmatmul.mubr.f32.gmra.mrb[0].mxu0 %v403
      %v581 = vpop.f32.mrb[0].mxu0
      %v582 = vadd.f32 0.0, %v581
      %v583 = vpop.f32.mrb[0].mxu0
      %584 = vmatprep.mubr.f32.mxu0 0.0
      %585 = vmatmul.mubr.f32.gmra.mrb[0].mxu0 %v406
      %v586 = vpop.f32.mrb[0].mxu0
      %v587 = vadd.f32 0.0, %v586
      %v588 = vpop.f32.mrb[0].mxu0
      %589 = vmatprep.mubr.f32.mxu0 0.0
      %590 = vmatmul.mubr.f32.gmra.mrb[0].mxu0 %v409
      %v591 = vpop.f32.mrb[0].mxu0
      %v592 = vadd.f32 0.0, %v591
      %v593 = vpop.f32.mrb[0].mxu0
      %594 = vmatprep.mubr.f32.mxu0 0.0
      %595 = vmatmul.mubr.f32.gmra.mrb[0].mxu0 %v412
      %v596 = vpop.f32.mrb[0].mxu0
      %v597 = vadd.f32 0.0, %v596
      %v598 = vpop.f32.mrb[0].mxu0
      %599 = vmatprep.mubr.f32.mxu0 0.0
      %600 = vmatmul.mubr.f32.gmra.mrb[0].mxu0 %v415
      %v601 = vpop.f32.mrb[0].mxu0
      %v602 = vadd.f32 0.0, %v601
      %v603 = vpop.f32.mrb[0].mxu0
      %604 = vmatprep.mubr.f32.mxu0 0.0
      %605 = vmatmul.mubr.f32.gmra.mrb[0].mxu0 %v418
      %v606 = vpop.f32.mrb[0].mxu0
      %v607 = vadd.f32 0.0, %v606
      %v608 = vpop.f32.mrb[0].mxu0
      %609 = vdwg.mxu0
      %v610 = vld [vmem:[%s251] sm:$0xff]
      %v611 = vld [vmem:[%s251 + $0x8] sm:$0xff]
      %v612 = vld [vmem:[%s251 + $0x10] sm:$0xff]
      %v613 = vld [vmem:[%s251 + $0x18] sm:$0xff]
      %v614 = vld [vmem:[%s251 + $0x20] sm:$0xff]
      %v615 = vld [vmem:[%s251 + $0x28] sm:$0xff]
      %v616 = vld [vmem:[%s251 + $0x30] sm:$0xff]
      %v617 = vld [vmem:[%s251 + $0x38] sm:$0xff]
      %v618 = vld [vmem:[%s251 + $0x40] sm:$0xff]
      %v619 = vld [vmem:[%s251 + $0x48] sm:$0xff]
      %v620 = vld [vmem:[%s251 + $0x50] sm:$0xff]
      %v621 = vld [vmem:[%s251 + $0x58] sm:$0xff]
      %v622 = vld [vmem:[%s251 + $0x60] sm:$0xff]
      %v623 = vld [vmem:[%s251 + $0x68] sm:$0xff]
      %v624 = vld [vmem:[%s251 + $0x70] sm:$0xff]
      %v625 = vld [vmem:[%s251 + $0x78] sm:$0xff]
      %v626 = vld [vmem:[%s251 + $0x80] sm:$0xff]
      %v627 = vld [vmem:[%s251 + $0x88] sm:$0xff]
      %v628 = vld [vmem:[%s251 + $0x90] sm:$0xff]
      %v629 = vld [vmem:[%s251 + $0x98] sm:$0xff]
      %v630 = vld [vmem:[%s251 + $0xa0] sm:$0xff]
      %v631 = vld [vmem:[%s251 + $0xa8] sm:$0xff]
      %v632 = vld [vmem:[%s251 + $0xb0] sm:$0xff]
      %v633 = vld [vmem:[%s251 + $0xb8] sm:$0xff]
      %v634 = vld [vmem:[%s251 + $0xc0] sm:$0xff]
      %v635 = vpack.c.bf16 %v492, %v487
      %v636 = vpack.c.bf16 %v502, %v497
      %v637 = vpack.c.bf16 %v512, %v507
      %v638 = vpack.c.bf16 %v522, %v517
      %v639 = vpack.c.bf16 %v532, %v527
      %v640 = vpack.c.bf16 %v542, %v537
      %v641 = vpack.c.bf16 %v552, %v547
      %v642 = vpack.c.bf16 %v562, %v557
      %v643 = vpack.c.bf16 %v572, %v567
      %v644 = vpack.c.bf16 %v582, %v577
      %v645 = vpack.c.bf16 %v592, %v587
      %v646 = vpack.c.bf16 %v602, %v597
      %v647 = vpack.c.bf16 %v607, %v607
      %v648 = vld [vmem:[%s3] sm:$0xff]
      %v649 = vld [vmem:[%s3 + $0x8] sm:$0xff]
      %v650 = vld [vmem:[%s3 + $0x10] sm:$0xff]
      %v651 = vld [vmem:[%s3 + $0x18] sm:$0xff]
      %652 = vmatprep.subr.mxu0 0.0
      %653 = vmatpush1.msra.mxu0 %v648
      %654 = vmatprep.subr.mxu0 0.0
      %655 = vmatpush1.msra.mxu0 %v649
      %656 = vmatprep.subr.mxu0 0.0
      %657 = vmatpush1.msra.mxu0 %v650
      %658 = vmatprep.subr.mxu0 0.0
      %659 = vmatpush1.msra.mxu0 %v651
      %660 = vmatprep.subr.mxu0 0.0
      %661 = vmatpush1.msra.mxu0 0.0
      %662 = vmatprep.subr.mxu0 0.0
      %663 = vmatpush1.msra.mxu0 0.0
      %664 = vmatprep.subr.mxu0 0.0
      %665 = vmatpush1.msra.mxu0 0.0
      %666 = vmatprep.subr.mxu0 0.0
      %667 = vmatpush1.msra.mxu0 0.0
      %668 = vmatprep.subr.mxu0 0.0
      %669 = vmatpush1.msra.mxu0 0.0
      %670 = vmatprep.subr.mxu0 0.0
      %671 = vmatpush1.msra.mxu0 0.0
      %672 = vmatprep.subr.mxu0 0.0
      %673 = vmatpush1.msra.mxu0 0.0
      %674 = vmatprep.subr.mxu0 0.0
      %675 = vmatpush1.msra.mxu0 0.0
      %676 = vmatprep.subr.mxu0 0.0
      %677 = vmatpush1.msra.mxu0 0.0
      %678 = vmatprep.subr.mxu0 0.0
      %679 = vmatpush1.msra.mxu0 0.0
      %680 = vmatprep.subr.mxu0 0.0
      %681 = vmatpush1.msra.mxu0 0.0
      %682 = vmatprep.subr.mxu0 0.0
      %683 = vmatpush1.msra.mxu0 0.0
      %684 = vmatprep.subr.mxu0 0.0
      %685 = vmatpush1.msra.mxu0 0.0
      %686 = vmatprep.subr.mxu0 0.0
      %687 = vmatpush1.msra.mxu0 0.0
      %688 = vmatprep.subr.mxu0 0.0
      %689 = vmatpush1.msra.mxu0 0.0
      %690 = vmatprep.subr.mxu0 0.0
      %691 = vmatpush1.msra.mxu0 0.0
      %692 = vmatprep.subr.mxu0 0.0
      %693 = vmatpush1.msra.mxu0 0.0
      %694 = vmatprep.subr.mxu0 0.0
      %695 = vmatpush1.msra.mxu0 0.0
      %696 = vmatprep.subr.mxu0 0.0
      %697 = vmatpush1.msra.mxu0 0.0
      %698 = vmatprep.subr.mxu0 0.0
      %699 = vmatpush1.msra.mxu0 0.0
      %700 = vmatprep.subr.mxu0 0.0
      %701 = vmatpush1.msra.mxu0 0.0
      %702 = vmatprep.subr.mxu0 0.0
      %703 = vmatpush1.msra.mxu0 0.0
      %704 = vmatprep.subr.mxu0 0.0
      %705 = vmatpush1.msra.mxu0 0.0
      %706 = vmatprep.subr.mxu0 0.0
      %707 = vmatpush1.msra.mxu0 0.0
      %708 = vmatprep.subr.mxu0 0.0
      %709 = vmatpush1.msra.mxu0 0.0
      %710 = vmatprep.subr.mxu0 0.0
      %711 = vmatpush1.msra.mxu0 0.0
      %712 = vmatprep.subr.mxu0 0.0
      %713 = vmatpush1.msra.mxu0 0.0
      %714 = vmatprep.subr.mxu0 0.0
      %715 = vmatpush1.msra.mxu0 0.0
      %716 = vmatprep.mubr.f32.mxu0 0.0
      %717 = vmatmul.mubr.f32.gmra.mrb[0].mxu0 %v346
      %v718 = vpop.f32.mrb[0].mxu0
      %v719 = vadd.f32 0.0, %v718
      %v720 = vpop.f32.mrb[0].mxu0
      %721 = vmatprep.mubr.f32.mxu0 0.0
      %722 = vmatmul.mubr.f32.gmra.mrb[0].mxu0 %v349
      %v723 = vpop.f32.mrb[0].mxu0
      %v724 = vadd.f32 0.0, %v723
      %v725 = vpop.f32.mrb[0].mxu0
      %726 = vmatprep.mubr.f32.mxu0 0.0
      %727 = vmatmul.mubr.f32.gmra.mrb[0].mxu0 %v352
      %v728 = vpop.f32.mrb[0].mxu0
      %v729 = vadd.f32 0.0, %v728
      %v730 = vpop.f32.mrb[0].mxu0
      %731 = vmatprep.mubr.f32.mxu0 0.0
      %732 = vmatmul.mubr.f32.gmra.mrb[0].mxu0 %v355
      %v733 = vpop.f32.mrb[0].mxu0
      %v734 = vadd.f32 0.0, %v733
      %v735 = vpop.f32.mrb[0].mxu0
      %736 = vmatprep.mubr.f32.mxu0 0.0
      %737 = vmatmul.mubr.f32.gmra.mrb[0].mxu0 %v358
      %v738 = vpop.f32.mrb[0].mxu0
      %v739 = vadd.f32 0.0, %v738
      %v740 = vpop.f32.mrb[0].mxu0
      %741 = vmatprep.mubr.f32.mxu0 0.0
      %742 = vmatmul.mubr.f32.gmra.mrb[0].mxu0 %v361
      %v743 = vpop.f32.mrb[0].mxu0
      %v744 = vadd.f32 0.0, %v743
      %v745 = vpop.f32.mrb[0].mxu0
      %746 = vmatprep.mubr.f32.mxu0 0.0
      %747 = vmatmul.mubr.f32.gmra.mrb[0].mxu0 %v364
      %v748 = vpop.f32.mrb[0].mxu0
      %v749 = vadd.f32 0.0, %v748
      %v750 = vpop.f32.mrb[0].mxu0
      %751 = vmatprep.mubr.f32.mxu0 0.0
      %752 = vmatmul.mubr.f32.gmra.mrb[0].mxu0 %v367
      %v753 = vpop.f32.mrb[0].mxu0
      %v754 = vadd.f32 0.0, %v753
      %v755 = vpop.f32.mrb[0].mxu0
      %756 = vmatprep.mubr.f32.mxu0 0.0
      %757 = vmatmul.mubr.f32.gmra.mrb[0].mxu0 %v370
      %v758 = vpop.f32.mrb[0].mxu0
      %v759 = vadd.f32 0.0, %v758
      %v760 = vpop.f32.mrb[0].mxu0
      %761 = vmatprep.mubr.f32.mxu0 0.0
      %762 = vmatmul.mubr.f32.gmra.mrb[0].mxu0 %v373
      %v763 = vpop.f32.mrb[0].mxu0
      %v764 = vadd.f32 0.0, %v763
      %v765 = vpop.f32.mrb[0].mxu0
      %766 = vmatprep.mubr.f32.mxu0 0.0
      %767 = vmatmul.mubr.f32.gmra.mrb[0].mxu0 %v376
      %v768 = vpop.f32.mrb[0].mxu0
      %v769 = vadd.f32 0.0, %v768
      %v770 = vpop.f32.mrb[0].mxu0
      %771 = vmatprep.mubr.f32.mxu0 0.0
      %772 = vmatmul.mubr.f32.gmra.mrb[0].mxu0 %v379
      %v773 = vpop.f32.mrb[0].mxu0
      %v774 = vadd.f32 0.0, %v773
      %v775 = vpop.f32.mrb[0].mxu0
      %776 = vmatprep.mubr.f32.mxu0 0.0
      %777 = vmatmul.mubr.f32.gmra.mrb[0].mxu0 %v382
      %v778 = vpop.f32.mrb[0].mxu0
      %v779 = vadd.f32 0.0, %v778
      %v780 = vpop.f32.mrb[0].mxu0
      %781 = vmatprep.mubr.f32.mxu0 0.0
      %782 = vmatmul.mubr.f32.gmra.mrb[0].mxu0 %v385
      %v783 = vpop.f32.mrb[0].mxu0
      %v784 = vadd.f32 0.0, %v783
      %v785 = vpop.f32.mrb[0].mxu0
      %786 = vmatprep.mubr.f32.mxu0 0.0
      %787 = vmatmul.mubr.f32.gmra.mrb[0].mxu0 %v388
      %v788 = vpop.f32.mrb[0].mxu0
      %v789 = vadd.f32 0.0, %v788
      %v790 = vpop.f32.mrb[0].mxu0
      %791 = vmatprep.mubr.f32.mxu0 0.0
      %792 = vmatmul.mubr.f32.gmra.mrb[0].mxu0 %v391
      %v793 = vpop.f32.mrb[0].mxu0
      %v794 = vadd.f32 0.0, %v793
      %v795 = vpop.f32.mrb[0].mxu0
      %796 = vmatprep.mubr.f32.mxu0 0.0
      %797 = vmatmul.mubr.f32.gmra.mrb[0].mxu0 %v394
      %v798 = vpop.f32.mrb[0].mxu0
      %v799 = vadd.f32 0.0, %v798
      %v800 = vpop.f32.mrb[0].mxu0
      %801 = vmatprep.mubr.f32.mxu0 0.0
      %802 = vmatmul.mubr.f32.gmra.mrb[0].mxu0 %v397
      %v803 = vpop.f32.mrb[0].mxu0
      %v804 = vadd.f32 0.0, %v803
      %v805 = vpop.f32.mrb[0].mxu0
      %806 = vmatprep.mubr.f32.mxu0 0.0
      %807 = vmatmul.mubr.f32.gmra.mrb[0].mxu0 %v400
      %v808 = vpop.f32.mrb[0].mxu0
      %v809 = vadd.f32 0.0, %v808
      %v810 = vpop.f32.mrb[0].mxu0
      %811 = vmatprep.mubr.f32.mxu0 0.0
      %812 = vmatmul.mubr.f32.gmra.mrb[0].mxu0 %v403
      %v813 = vpop.f32.mrb[0].mxu0
      %v814 = vadd.f32 0.0, %v813
      %v815 = vpop.f32.mrb[0].mxu0
      %816 = vmatprep.mubr.f32.mxu0 0.0
      %817 = vmatmul.mubr.f32.gmra.mrb[0].mxu0 %v406
      %v818 = vpop.f32.mrb[0].mxu0
      %v819 = vadd.f32 0.0, %v818
      %v820 = vpop.f32.mrb[0].mxu0
      %821 = vmatprep.mubr.f32.mxu0 0.0
      %822 = vmatmul.mubr.f32.gmra.mrb[0].mxu0 %v409
      %v823 = vpop.f32.mrb[0].mxu0
      %v824 = vadd.f32 0.0, %v823
      %v825 = vpop.f32.mrb[0].mxu0
      %826 = vmatprep.mubr.f32.mxu0 0.0
      %827 = vmatmul.mubr.f32.gmra.mrb[0].mxu0 %v412
      %v828 = vpop.f32.mrb[0].mxu0
      %v829 = vadd.f32 0.0, %v828
      %v830 = vpop.f32.mrb[0].mxu0
      %831 = vmatprep.mubr.f32.mxu0 0.0
      %832 = vmatmul.mubr.f32.gmra.mrb[0].mxu0 %v415
      %v833 = vpop.f32.mrb[0].mxu0
      %v834 = vadd.f32 0.0, %v833
      %v835 = vpop.f32.mrb[0].mxu0
      %836 = vmatprep.mubr.f32.mxu0 0.0
      %837 = vmatmul.mubr.f32.gmra.mrb[0].mxu0 %v418
      %v838 = vpop.f32.mrb[0].mxu0
      %v839 = vadd.f32 0.0, %v838
      %v840 = vpop.f32.mrb[0].mxu0
      %841 = vdwg.mxu0
      %v867 = vunpack.c.l.b16 %v610
      %v868 = vunpack.c.h.b16 %v610
      %v869 = vunpack.c.l.b16 %v611
      %v870 = vunpack.c.h.b16 %v611
      %v871 = vunpack.c.l.b16 %v612
      %v872 = vunpack.c.h.b16 %v612
      %v873 = vunpack.c.l.b16 %v613
      %v874 = vunpack.c.h.b16 %v613
      %v875 = vunpack.c.l.b16 %v614
      %v876 = vunpack.c.h.b16 %v614
      %v877 = vunpack.c.l.b16 %v615
      %v878 = vunpack.c.h.b16 %v615
      %v879 = vunpack.c.l.b16 %v616
      %v880 = vunpack.c.h.b16 %v616
      %v881 = vunpack.c.l.b16 %v617
      %v882 = vunpack.c.h.b16 %v617
      %v883 = vunpack.c.l.b16 %v618
      %v884 = vunpack.c.h.b16 %v618
      %v885 = vunpack.c.l.b16 %v619
      %v886 = vunpack.c.h.b16 %v619
      %v887 = vunpack.c.l.b16 %v620
      %v888 = vunpack.c.h.b16 %v620
      %v889 = vunpack.c.l.b16 %v621
      %v890 = vunpack.c.h.b16 %v621
      %v891 = vunpack.c.l.b16 %v622
      %v892 = vunpack.c.h.b16 %v622
      %v893 = vunpack.c.l.b16 %v623
      %v894 = vunpack.c.h.b16 %v623
      %v895 = vunpack.c.l.b16 %v624
      %v896 = vunpack.c.h.b16 %v624
      %v897 = vunpack.c.l.b16 %v625
      %v898 = vunpack.c.h.b16 %v625
      %v899 = vunpack.c.l.b16 %v626
      %v900 = vunpack.c.h.b16 %v626
      %v901 = vunpack.c.l.b16 %v627
      %v902 = vunpack.c.h.b16 %v627
      %v903 = vunpack.c.l.b16 %v628
      %v904 = vunpack.c.h.b16 %v628
      %v905 = vunpack.c.l.b16 %v629
      %v906 = vunpack.c.h.b16 %v629
      %v907 = vunpack.c.l.b16 %v630
      %v908 = vunpack.c.h.b16 %v630
      %v909 = vunpack.c.l.b16 %v631
      %v910 = vunpack.c.h.b16 %v631
      %v911 = vunpack.c.l.b16 %v632
      %v912 = vunpack.c.h.b16 %v632
      %v913 = vunpack.c.l.b16 %v633
      %v914 = vunpack.c.h.b16 %v633
      %v915 = vunpack.c.l.b16 %v634
      %v916 = vunpack.c.h.b16 %v634
      %v917 = vpack.c.b16 %v869, %v867
      %v918 = vpack.c.b16 %v870, %v868
      %v919 = vpack.c.b16 %v873, %v871
      %v920 = vpack.c.b16 %v874, %v872
      %v921 = vpack.c.b16 %v877, %v875
      %v922 = vpack.c.b16 %v878, %v876
      %v923 = vpack.c.b16 %v881, %v879
      %v924 = vpack.c.b16 %v882, %v880
      %v925 = vpack.c.b16 %v885, %v883
      %v926 = vpack.c.b16 %v886, %v884
      %v927 = vpack.c.b16 %v889, %v887
      %v928 = vpack.c.b16 %v890, %v888
      %v929 = vpack.c.b16 %v893, %v891
      %v930 = vpack.c.b16 %v894, %v892
      %v931 = vpack.c.b16 %v897, %v895
      %v932 = vpack.c.b16 %v898, %v896
      %v933 = vpack.c.b16 %v901, %v899
      %v934 = vpack.c.b16 %v902, %v900
      %v935 = vpack.c.b16 %v905, %v903
      %v936 = vpack.c.b16 %v906, %v904
      %v937 = vpack.c.b16 %v909, %v907
      %v938 = vpack.c.b16 %v910, %v908
      %v939 = vpack.c.b16 %v913, %v911
      %v940 = vpack.c.b16 %v914, %v912
      %v941 = vpack.c.b16 %v915, %v915
      %v942 = vpack.c.b16 %v916, %v916
      %vm956 = vcmask 588800
      %v958 = vsel %vm956, %v918, 0
      %v961 = vsel %vm956, %v920, 0
      %v964 = vsel %vm956, %v922, 0
      %v967 = vsel %vm956, %v924, 0
      %v970 = vsel %vm956, %v926, 0
      %v973 = vsel %vm956, %v928, 0
      %v976 = vsel %vm956, %v930, 0
      %v979 = vsel %vm956, %v932, 0
      %v982 = vsel %vm956, %v934, 0
      %v985 = vsel %vm956, %v936, 0
      %v988 = vsel %vm956, %v938, 0
      %v991 = vsel %vm956, %v940, 0
      %v994 = vsel %vm956, %v942, 0
      %vm996 = vcmask 1043456
      %v998 = vsel %vm996, %v647, 0
      %1000 = vmatprep.subr.bf16.mxu0 0
      %1001 = vmatpush1.bf16.msra.mxu0 %v635
      %1002 = vmatprep.subr.bf16.mxu0 0
      %1003 = vmatpush1.bf16.msra.mxu0 %v636
      %1004 = vmatprep.subr.bf16.mxu0 0
      %1005 = vmatpush1.bf16.msra.mxu0 %v637
      %1006 = vmatprep.subr.bf16.mxu0 0
      %1007 = vmatpush1.bf16.msra.mxu0 %v638
      %1008 = vmatprep.subr.bf16.mxu0 0
      %1009 = vmatpush1.bf16.msra.mxu0 %v639
      %1010 = vmatprep.subr.bf16.mxu0 0
      %1011 = vmatpush1.bf16.msra.mxu0 %v640
      %1012 = vmatprep.subr.bf16.mxu0 0
      %1013 = vmatpush1.bf16.msra.mxu0 %v641
      %1014 = vmatprep.subr.bf16.mxu0 0
      %1015 = vmatpush1.bf16.msra.mxu0 %v642
      %1016 = vmatprep.subr.bf16.mxu0 0
      %1017 = vmatpush1.bf16.msra.mxu0 %v643
      %1018 = vmatprep.subr.bf16.mxu0 0
      %1019 = vmatpush1.bf16.msra.mxu0 %v644
      %1020 = vmatprep.subr.bf16.mxu0 0
      %1021 = vmatpush1.bf16.msra.mxu0 %v645
      %1022 = vmatprep.subr.bf16.mxu0 0
      %1023 = vmatpush1.bf16.msra.mxu0 %v646
      %1024 = vmatprep.subr.bf16.mxu0 0
      %1025 = vmatpush1.bf16.msra.mxu0 %v998
      %1026 = vmatprep.subr.bf16.mxu0 0
      %1027 = vmatpush1.bf16.msra.mxu0 0
      %1028 = vmatprep.subr.bf16.mxu0 0
      %1029 = vmatpush1.bf16.msra.mxu0 0
      %1030 = vmatprep.subr.bf16.mxu0 0
      %1031 = vmatpush1.bf16.msra.mxu0 0
      %1032 = vmatprep.mubr.bf16.mxu0 %v958
      %1033 = vmatmul.mubr.bf16.gmra.mrb[0].mxu0 %v917
      %v1034 = vpop.f32.mrb[0].mxu0
      %v1035 = vadd.f32 %v719, %v1034
      %v1036 = vpop.f32.mrb[0].mxu0
      %v1037 = vpop.f32.mrb[0].mxu0
      %v1038 = vadd.f32 %v724, %v1037
      %v1039 = vpop.f32.mrb[0].mxu0
      %1040 = vmatprep.mubr.bf16.mxu0 %v961
      %1041 = vmatmul.mubr.bf16.gmra.mrb[0].mxu0 %v919
      %v1042 = vpop.f32.mrb[0].mxu0
      %v1043 = vadd.f32 %v729, %v1042
      %v1044 = vpop.f32.mrb[0].mxu0
      %v1045 = vpop.f32.mrb[0].mxu0
      %v1046 = vadd.f32 %v734, %v1045
      %v1047 = vpop.f32.mrb[0].mxu0
      %1048 = vmatprep.mubr.bf16.mxu0 %v964
      %1049 = vmatmul.mubr.bf16.gmra.mrb[0].mxu0 %v921
      %v1050 = vpop.f32.mrb[0].mxu0
      %v1051 = vadd.f32 %v739, %v1050
      %v1052 = vpop.f32.mrb[0].mxu0
      %v1053 = vpop.f32.mrb[0].mxu0
      %v1054 = vadd.f32 %v744, %v1053
      %v1055 = vpop.f32.mrb[0].mxu0
      %1056 = vmatprep.mubr.bf16.mxu0 %v967
      %1057 = vmatmul.mubr.bf16.gmra.mrb[0].mxu0 %v923
      %v1058 = vpop.f32.mrb[0].mxu0
      %v1059 = vadd.f32 %v749, %v1058
      %v1060 = vpop.f32.mrb[0].mxu0
      %v1061 = vpop.f32.mrb[0].mxu0
      %v1062 = vadd.f32 %v754, %v1061
      %v1063 = vpop.f32.mrb[0].mxu0
      %1064 = vmatprep.mubr.bf16.mxu0 %v970
      %1065 = vmatmul.mubr.bf16.gmra.mrb[0].mxu0 %v925
      %v1066 = vpop.f32.mrb[0].mxu0
      %v1067 = vadd.f32 %v759, %v1066
      %v1068 = vpop.f32.mrb[0].mxu0
      %v1069 = vpop.f32.mrb[0].mxu0
      %v1070 = vadd.f32 %v764, %v1069
      %v1071 = vpop.f32.mrb[0].mxu0
      %1072 = vmatprep.mubr.bf16.mxu0 %v973
      %1073 = vmatmul.mubr.bf16.gmra.mrb[0].mxu0 %v927
      %v1074 = vpop.f32.mrb[0].mxu0
      %v1075 = vadd.f32 %v769, %v1074
      %v1076 = vpop.f32.mrb[0].mxu0
      %v1077 = vpop.f32.mrb[0].mxu0
      %v1078 = vadd.f32 %v774, %v1077
      %v1079 = vpop.f32.mrb[0].mxu0
      %1080 = vmatprep.mubr.bf16.mxu0 %v976
      %1081 = vmatmul.mubr.bf16.gmra.mrb[0].mxu0 %v929
      %v1082 = vpop.f32.mrb[0].mxu0
      %v1083 = vadd.f32 %v779, %v1082
      %v1084 = vpop.f32.mrb[0].mxu0
      %v1085 = vpop.f32.mrb[0].mxu0
      %v1086 = vadd.f32 %v784, %v1085
      %v1087 = vpop.f32.mrb[0].mxu0
      %1088 = vmatprep.mubr.bf16.mxu0 %v979
      %1089 = vmatmul.mubr.bf16.gmra.mrb[0].mxu0 %v931
      %v1090 = vpop.f32.mrb[0].mxu0
      %v1091 = vadd.f32 %v789, %v1090
      %v1092 = vpop.f32.mrb[0].mxu0
      %v1093 = vpop.f32.mrb[0].mxu0
      %v1094 = vadd.f32 %v794, %v1093
      %v1095 = vpop.f32.mrb[0].mxu0
      %1096 = vmatprep.mubr.bf16.mxu0 %v982
      %1097 = vmatmul.mubr.bf16.gmra.mrb[0].mxu0 %v933
      %v1098 = vpop.f32.mrb[0].mxu0
      %v1099 = vadd.f32 %v799, %v1098
      %v1100 = vpop.f32.mrb[0].mxu0
      %v1101 = vpop.f32.mrb[0].mxu0
      %v1102 = vadd.f32 %v804, %v1101
      %v1103 = vpop.f32.mrb[0].mxu0
      %1104 = vmatprep.mubr.bf16.mxu0 %v985
      %1105 = vmatmul.mubr.bf16.gmra.mrb[0].mxu0 %v935
      %v1106 = vpop.f32.mrb[0].mxu0
      %v1107 = vadd.f32 %v809, %v1106
      %v1108 = vpop.f32.mrb[0].mxu0
      %v1109 = vpop.f32.mrb[0].mxu0
      %v1110 = vadd.f32 %v814, %v1109
      %v1111 = vpop.f32.mrb[0].mxu0
      %1112 = vmatprep.mubr.bf16.mxu0 %v988
      %1113 = vmatmul.mubr.bf16.gmra.mrb[0].mxu0 %v937
      %v1114 = vpop.f32.mrb[0].mxu0
      %v1115 = vadd.f32 %v819, %v1114
      %v1116 = vpop.f32.mrb[0].mxu0
      %v1117 = vpop.f32.mrb[0].mxu0
      %v1118 = vadd.f32 %v824, %v1117
      %v1119 = vpop.f32.mrb[0].mxu0
      %1120 = vmatprep.mubr.bf16.mxu0 %v991
      %1121 = vmatmul.mubr.bf16.gmra.mrb[0].mxu0 %v939
      %v1122 = vpop.f32.mrb[0].mxu0
      %v1123 = vadd.f32 %v829, %v1122
      %v1124 = vpop.f32.mrb[0].mxu0
      %v1125 = vpop.f32.mrb[0].mxu0
      %v1126 = vadd.f32 %v834, %v1125
      %v1127 = vpop.f32.mrb[0].mxu0
      %1128 = vmatprep.mubr.bf16.mxu0 %v994
      %1129 = vmatmul.mubr.bf16.gmra.mrb[0].mxu0 %v941
      %v1130 = vpop.f32.mrb[0].mxu0
      %v1131 = vadd.f32 %v839, %v1130
      %v1132 = vpop.f32.mrb[0].mxu0
      %v1133 = vpop.f32.mrb[0].mxu0
      %v1134 = vpop.f32.mrb[0].mxu0
      %1135 = vdwg.mxu0
      %v1136 = vld [vmem:[%s4] sm:$0x1]
      %v1138 = vlaneseq
      %v1139 = vshrl.u32 %v1138, 7
      %v1140 = vsub.s32 0, %v1139
      %v1141 = vrot.slane %v1136, %v1140
      %v1143 = vadd.f32 %v1035, %v1141
      %v1144 = vadd.f32 %v1038, %v1141
      %v1145 = vadd.f32 %v1043, %v1141
      %v1146 = vadd.f32 %v1046, %v1141
      %v1147 = vadd.f32 %v1051, %v1141
      %v1148 = vadd.f32 %v1054, %v1141
      %v1149 = vadd.f32 %v1059, %v1141
      %v1150 = vadd.f32 %v1062, %v1141
      %v1151 = vadd.f32 %v1067, %v1141
      %v1152 = vadd.f32 %v1070, %v1141
      %v1153 = vadd.f32 %v1075, %v1141
      %v1154 = vadd.f32 %v1078, %v1141
      %v1155 = vadd.f32 %v1083, %v1141
      %v1156 = vadd.f32 %v1086, %v1141
      %v1157 = vadd.f32 %v1091, %v1141
      %v1158 = vadd.f32 %v1094, %v1141
      %v1159 = vadd.f32 %v1099, %v1141
      %v1160 = vadd.f32 %v1102, %v1141
      %v1161 = vadd.f32 %v1107, %v1141
      %v1162 = vadd.f32 %v1110, %v1141
      %v1163 = vadd.f32 %v1115, %v1141
      %v1164 = vadd.f32 %v1118, %v1141
      %v1165 = vadd.f32 %v1123, %v1141
      %v1166 = vadd.f32 %v1126, %v1141
      %v1167 = vadd.f32 %v1131, %v1141
      %v1168 = vsub.f32 0.0, %v1143
      %v1169 = vsub.f32 0.0, %v1144
      %v1170 = vsub.f32 0.0, %v1145
      %v1171 = vsub.f32 0.0, %v1146
      %v1172 = vsub.f32 0.0, %v1147
      %v1173 = vsub.f32 0.0, %v1148
      %v1174 = vsub.f32 0.0, %v1149
      %v1175 = vsub.f32 0.0, %v1150
      %v1176 = vsub.f32 0.0, %v1151
      %v1177 = vsub.f32 0.0, %v1152
      %v1178 = vsub.f32 0.0, %v1153
      %v1179 = vsub.f32 0.0, %v1154
      %v1180 = vsub.f32 0.0, %v1155
      %v1181 = vsub.f32 0.0, %v1156
      %v1182 = vsub.f32 0.0, %v1157
      %v1183 = vsub.f32 0.0, %v1158
      %v1184 = vsub.f32 0.0, %v1159
      %v1185 = vsub.f32 0.0, %v1160
      %v1186 = vsub.f32 0.0, %v1161
      %v1187 = vsub.f32 0.0, %v1162
      %v1188 = vsub.f32 0.0, %v1163
      %v1189 = vsub.f32 0.0, %v1164
      %v1190 = vsub.f32 0.0, %v1165
      %v1191 = vsub.f32 0.0, %v1166
      %v1192 = vsub.f32 0.0, %v1167
      %v1193 = vmul.f32 %v1168, 1.442695
      %v1194 = vpow.pop %v1193
      %v1195 = vmul.f32 %v1169, 1.442695
      %v1196 = vpow.pop %v1195
      %v1197 = vmul.f32 %v1170, 1.442695
      %v1198 = vpow.pop %v1197
      %v1199 = vmul.f32 %v1171, 1.442695
      %v1200 = vpow.pop %v1199
      %v1201 = vmul.f32 %v1172, 1.442695
      %v1202 = vpow.pop %v1201
      %v1203 = vmul.f32 %v1173, 1.442695
      %v1204 = vpow.pop %v1203
      %v1205 = vmul.f32 %v1174, 1.442695
      %v1206 = vpow.pop %v1205
      %v1207 = vmul.f32 %v1175, 1.442695
      %v1208 = vpow.pop %v1207
      %v1209 = vmul.f32 %v1176, 1.442695
      %v1210 = vpow.pop %v1209
      %v1211 = vmul.f32 %v1177, 1.442695
      %v1212 = vpow.pop %v1211
      %v1213 = vmul.f32 %v1178, 1.442695
      %v1214 = vpow.pop %v1213
      %v1215 = vmul.f32 %v1179, 1.442695
      %v1216 = vpow.pop %v1215
      %v1217 = vmul.f32 %v1180, 1.442695
      %v1218 = vpow.pop %v1217
      %v1219 = vmul.f32 %v1181, 1.442695
      %v1220 = vpow.pop %v1219
      %v1221 = vmul.f32 %v1182, 1.442695
      %v1222 = vpow.pop %v1221
      %v1223 = vmul.f32 %v1183, 1.442695
      %v1224 = vpow.pop %v1223
      %v1225 = vmul.f32 %v1184, 1.442695
      %v1226 = vpow.pop %v1225
      %v1227 = vmul.f32 %v1185, 1.442695
      %v1228 = vpow.pop %v1227
      %v1229 = vmul.f32 %v1186, 1.442695
      %v1230 = vpow.pop %v1229
      %v1231 = vmul.f32 %v1187, 1.442695
      %v1232 = vpow.pop %v1231
      %v1233 = vmul.f32 %v1188, 1.442695
      %v1234 = vpow.pop %v1233
      %v1235 = vmul.f32 %v1189, 1.442695
      %v1236 = vpow.pop %v1235
      %v1237 = vmul.f32 %v1190, 1.442695
      %v1238 = vpow.pop %v1237
      %v1239 = vmul.f32 %v1191, 1.442695
      %v1240 = vpow.pop %v1239
      %v1241 = vmul.f32 %v1192, 1.442695
      %v1242 = vpow.pop %v1241
      %v1243 = vadd.f32 %v1194, 1.0
      %v1244 = vadd.f32 %v1196, 1.0
      %v1245 = vadd.f32 %v1198, 1.0
      %v1246 = vadd.f32 %v1200, 1.0
      %v1247 = vadd.f32 %v1202, 1.0
      %v1248 = vadd.f32 %v1204, 1.0
      %v1249 = vadd.f32 %v1206, 1.0
      %v1250 = vadd.f32 %v1208, 1.0
      %v1251 = vadd.f32 %v1210, 1.0
      %v1252 = vadd.f32 %v1212, 1.0
      %v1253 = vadd.f32 %v1214, 1.0
      %v1254 = vadd.f32 %v1216, 1.0
      %v1255 = vadd.f32 %v1218, 1.0
      %v1256 = vadd.f32 %v1220, 1.0
      %v1257 = vadd.f32 %v1222, 1.0
      %v1258 = vadd.f32 %v1224, 1.0
      %v1259 = vadd.f32 %v1226, 1.0
      %v1260 = vadd.f32 %v1228, 1.0
      %v1261 = vadd.f32 %v1230, 1.0
      %v1262 = vadd.f32 %v1232, 1.0
      %v1263 = vadd.f32 %v1234, 1.0
      %v1264 = vadd.f32 %v1236, 1.0
      %v1265 = vadd.f32 %v1238, 1.0
      %v1266 = vadd.f32 %v1240, 1.0
      %v1267 = vadd.f32 %v1242, 1.0
      %v1268 = vrcp.pop %v1243
      %v1269 = vmul.f32 1.0, %v1268
      %v1270 = vrcp.pop %v1244
      %v1271 = vmul.f32 1.0, %v1270
      %v1272 = vrcp.pop %v1245
      %v1273 = vmul.f32 1.0, %v1272
      %v1274 = vrcp.pop %v1246
      %v1275 = vmul.f32 1.0, %v1274
      %v1276 = vrcp.pop %v1247
      %v1277 = vmul.f32 1.0, %v1276
      %v1278 = vrcp.pop %v1248
      %v1279 = vmul.f32 1.0, %v1278
      %v1280 = vrcp.pop %v1249
      %v1281 = vmul.f32 1.0, %v1280
      %v1282 = vrcp.pop %v1250
      %v1283 = vmul.f32 1.0, %v1282
      %v1284 = vrcp.pop %v1251
      %v1285 = vmul.f32 1.0, %v1284
      %v1286 = vrcp.pop %v1252
      %v1287 = vmul.f32 1.0, %v1286
      %v1288 = vrcp.pop %v1253
      %v1289 = vmul.f32 1.0, %v1288
      %v1290 = vrcp.pop %v1254
      %v1291 = vmul.f32 1.0, %v1290
      %v1292 = vrcp.pop %v1255
      %v1293 = vmul.f32 1.0, %v1292
      %v1294 = vrcp.pop %v1256
      %v1295 = vmul.f32 1.0, %v1294
      %v1296 = vrcp.pop %v1257
      %v1297 = vmul.f32 1.0, %v1296
      %v1298 = vrcp.pop %v1258
      %v1299 = vmul.f32 1.0, %v1298
      %v1300 = vrcp.pop %v1259
      %v1301 = vmul.f32 1.0, %v1300
      %v1302 = vrcp.pop %v1260
      %v1303 = vmul.f32 1.0, %v1302
      %v1304 = vrcp.pop %v1261
      %v1305 = vmul.f32 1.0, %v1304
      %v1306 = vrcp.pop %v1262
      %v1307 = vmul.f32 1.0, %v1306
      %v1308 = vrcp.pop %v1263
      %v1309 = vmul.f32 1.0, %v1308
      %v1310 = vrcp.pop %v1264
      %v1311 = vmul.f32 1.0, %v1310
      %v1312 = vrcp.pop %v1265
      %v1313 = vmul.f32 1.0, %v1312
      %v1314 = vrcp.pop %v1266
      %v1315 = vmul.f32 1.0, %v1314
      %v1316 = vrcp.pop %v1267
      %v1317 = vmul.f32 1.0, %v1316
      %1343 = vrot.lane.b32.xlu0 %v1143, 32
      %v1344 = vpop.permute.xlu0 %1343
      %1345 = vrot.lane.b32.xlu0 %v1144, 32
      %v1346 = vpop.permute.xlu0 %1345
      %1347 = vrot.lane.b32.xlu0 %v1145, 32
      %v1348 = vpop.permute.xlu0 %1347
      %1349 = vrot.lane.b32.xlu0 %v1146, 32
      %v1350 = vpop.permute.xlu0 %1349
      %1351 = vrot.lane.b32.xlu0 %v1147, 32
      %v1352 = vpop.permute.xlu0 %1351
      %1353 = vrot.lane.b32.xlu0 %v1148, 32
      %v1354 = vpop.permute.xlu0 %1353
      %1355 = vrot.lane.b32.xlu0 %v1149, 32
      %v1356 = vpop.permute.xlu0 %1355
      %1357 = vrot.lane.b32.xlu0 %v1150, 32
      %v1358 = vpop.permute.xlu0 %1357
      %1359 = vrot.lane.b32.xlu0 %v1151, 32
      %v1360 = vpop.permute.xlu0 %1359
      %1361 = vrot.lane.b32.xlu0 %v1152, 32
      %v1362 = vpop.permute.xlu0 %1361
      %1363 = vrot.lane.b32.xlu0 %v1153, 32
      %v1364 = vpop.permute.xlu0 %1363
      %1365 = vrot.lane.b32.xlu0 %v1154, 32
      %v1366 = vpop.permute.xlu0 %1365
      %1367 = vrot.lane.b32.xlu0 %v1155, 32
      %v1368 = vpop.permute.xlu0 %1367
      %1369 = vrot.lane.b32.xlu0 %v1156, 32
      %v1370 = vpop.permute.xlu0 %1369
      %1371 = vrot.lane.b32.xlu0 %v1157, 32
      %v1372 = vpop.permute.xlu0 %1371
      %1373 = vrot.lane.b32.xlu0 %v1158, 32
      %v1374 = vpop.permute.xlu0 %1373
      %1375 = vrot.lane.b32.xlu0 %v1159, 32
      %v1376 = vpop.permute.xlu0 %1375
      %1377 = vrot.lane.b32.xlu0 %v1160, 32
      %v1378 = vpop.permute.xlu0 %1377
      %1379 = vrot.lane.b32.xlu0 %v1161, 32
      %v1380 = vpop.permute.xlu0 %1379
      %1381 = vrot.lane.b32.xlu0 %v1162, 32
      %v1382 = vpop.permute.xlu0 %1381
      %1383 = vrot.lane.b32.xlu0 %v1163, 32
      %v1384 = vpop.permute.xlu0 %1383
      %1385 = vrot.lane.b32.xlu0 %v1164, 32
      %v1386 = vpop.permute.xlu0 %1385
      %1387 = vrot.lane.b32.xlu0 %v1165, 32
      %v1388 = vpop.permute.xlu0 %1387
      %1389 = vrot.lane.b32.xlu0 %v1166, 32
      %v1390 = vpop.permute.xlu0 %1389
      %1391 = vrot.lane.b32.xlu0 %v1167, 32
      %v1392 = vpop.permute.xlu0 %1391
      %v1418 = vmul.f32 %v1269, %v1344
      %v1419 = vmul.f32 %v1271, %v1346
      %v1420 = vmul.f32 %v1273, %v1348
      %v1421 = vmul.f32 %v1275, %v1350
      %v1422 = vmul.f32 %v1277, %v1352
      %v1423 = vmul.f32 %v1279, %v1354
      %v1424 = vmul.f32 %v1281, %v1356
      %v1425 = vmul.f32 %v1283, %v1358
      %v1426 = vmul.f32 %v1285, %v1360
      %v1427 = vmul.f32 %v1287, %v1362
      %v1428 = vmul.f32 %v1289, %v1364
      %v1429 = vmul.f32 %v1291, %v1366
      %v1430 = vmul.f32 %v1293, %v1368
      %v1431 = vmul.f32 %v1295, %v1370
      %v1432 = vmul.f32 %v1297, %v1372
      %v1433 = vmul.f32 %v1299, %v1374
      %v1434 = vmul.f32 %v1301, %v1376
      %v1435 = vmul.f32 %v1303, %v1378
      %v1436 = vmul.f32 %v1305, %v1380
      %v1437 = vmul.f32 %v1307, %v1382
      %v1438 = vmul.f32 %v1309, %v1384
      %v1439 = vmul.f32 %v1311, %v1386
      %v1440 = vmul.f32 %v1313, %v1388
      %v1441 = vmul.f32 %v1315, %v1390
      %v1442 = vmul.f32 %v1317, %v1392
      %1468 = vrot.lane.b32.xlu0 %v1418, 64
      %v1469 = vpop.permute.xlu0 %1468
      %1470 = vrot.lane.b32.xlu0 %v1419, 64
      %v1471 = vpop.permute.xlu0 %1470
      %1472 = vrot.lane.b32.xlu0 %v1420, 64
      %v1473 = vpop.permute.xlu0 %1472
      %1474 = vrot.lane.b32.xlu0 %v1421, 64
      %v1475 = vpop.permute.xlu0 %1474
      %1476 = vrot.lane.b32.xlu0 %v1422, 64
      %v1477 = vpop.permute.xlu0 %1476
      %1478 = vrot.lane.b32.xlu0 %v1423, 64
      %v1479 = vpop.permute.xlu0 %1478
      %1480 = vrot.lane.b32.xlu0 %v1424, 64
      %v1481 = vpop.permute.xlu0 %1480
      %1482 = vrot.lane.b32.xlu0 %v1425, 64
      %v1483 = vpop.permute.xlu0 %1482
      %1484 = vrot.lane.b32.xlu0 %v1426, 64
      %v1485 = vpop.permute.xlu0 %1484
      %1486 = vrot.lane.b32.xlu0 %v1427, 64
      %v1487 = vpop.permute.xlu0 %1486
      %1488 = vrot.lane.b32.xlu0 %v1428, 64
      %v1489 = vpop.permute.xlu0 %1488
      %1490 = vrot.lane.b32.xlu0 %v1429, 64
      %v1491 = vpop.permute.xlu0 %1490
      %1492 = vrot.lane.b32.xlu0 %v1430, 64
      %v1493 = vpop.permute.xlu0 %1492
      %1494 = vrot.lane.b32.xlu0 %v1431, 64
      %v1495 = vpop.permute.xlu0 %1494
      %1496 = vrot.lane.b32.xlu0 %v1432, 64
      %v1497 = vpop.permute.xlu0 %1496
      %1498 = vrot.lane.b32.xlu0 %v1433, 64
      %v1499 = vpop.permute.xlu0 %1498
      %1500 = vrot.lane.b32.xlu0 %v1434, 64
      %v1501 = vpop.permute.xlu0 %1500
      %1502 = vrot.lane.b32.xlu0 %v1435, 64
      %v1503 = vpop.permute.xlu0 %1502
      %1504 = vrot.lane.b32.xlu0 %v1436, 64
      %v1505 = vpop.permute.xlu0 %1504
      %1506 = vrot.lane.b32.xlu0 %v1437, 64
      %v1507 = vpop.permute.xlu0 %1506
      %1508 = vrot.lane.b32.xlu0 %v1438, 64
      %v1509 = vpop.permute.xlu0 %1508
      %1510 = vrot.lane.b32.xlu0 %v1439, 64
      %v1511 = vpop.permute.xlu0 %1510
      %1512 = vrot.lane.b32.xlu0 %v1440, 64
      %v1513 = vpop.permute.xlu0 %1512
      %1514 = vrot.lane.b32.xlu0 %v1441, 64
      %v1515 = vpop.permute.xlu0 %1514
      %1516 = vrot.lane.b32.xlu0 %v1442, 64
      %v1517 = vpop.permute.xlu0 %1516
      %v1543 = vadd.f32 %v1143, %v1469
      %v1544 = vadd.f32 %v1144, %v1471
      %v1545 = vadd.f32 %v1145, %v1473
      %v1546 = vadd.f32 %v1146, %v1475
      %v1547 = vadd.f32 %v1147, %v1477
      %v1548 = vadd.f32 %v1148, %v1479
      %v1549 = vadd.f32 %v1149, %v1481
      %v1550 = vadd.f32 %v1150, %v1483
      %v1551 = vadd.f32 %v1151, %v1485
      %v1552 = vadd.f32 %v1152, %v1487
      %v1553 = vadd.f32 %v1153, %v1489
      %v1554 = vadd.f32 %v1154, %v1491
      %v1555 = vadd.f32 %v1155, %v1493
      %v1556 = vadd.f32 %v1156, %v1495
      %v1557 = vadd.f32 %v1157, %v1497
      %v1558 = vadd.f32 %v1158, %v1499
      %v1559 = vadd.f32 %v1159, %v1501
      %v1560 = vadd.f32 %v1160, %v1503
      %v1561 = vadd.f32 %v1161, %v1505
      %v1562 = vadd.f32 %v1162, %v1507
      %v1563 = vadd.f32 %v1163, %v1509
      %v1564 = vadd.f32 %v1164, %v1511
      %v1565 = vadd.f32 %v1165, %v1513
      %v1566 = vadd.f32 %v1166, %v1515
      %v1567 = vadd.f32 %v1167, %v1517
      %v1568 = vtanh.pop %v1543
      %v1569 = vtanh.pop %v1544
      %v1570 = vtanh.pop %v1545
      %v1571 = vtanh.pop %v1546
      %v1572 = vtanh.pop %v1547
      %v1573 = vtanh.pop %v1548
      %v1574 = vtanh.pop %v1549
      %v1575 = vtanh.pop %v1550
      %v1576 = vtanh.pop %v1551
      %v1577 = vtanh.pop %v1552
      %v1578 = vtanh.pop %v1553
      %v1579 = vtanh.pop %v1554
      %v1580 = vtanh.pop %v1555
      %v1581 = vtanh.pop %v1556
      %v1582 = vtanh.pop %v1557
      %v1583 = vtanh.pop %v1558
      %v1584 = vtanh.pop %v1559
      %v1585 = vtanh.pop %v1560
      %v1586 = vtanh.pop %v1561
      %v1587 = vtanh.pop %v1562
      %v1588 = vtanh.pop %v1563
      %v1589 = vtanh.pop %v1564
      %v1590 = vtanh.pop %v1565
      %v1591 = vtanh.pop %v1566
      %v1592 = vtanh.pop %v1567
      %v1593 = vsub.f32 1.0, %v1269
      %v1594 = vsub.f32 1.0, %v1271
      %v1595 = vsub.f32 1.0, %v1273
      %v1596 = vsub.f32 1.0, %v1275
      %v1597 = vsub.f32 1.0, %v1277
      %v1598 = vsub.f32 1.0, %v1279
      %v1599 = vsub.f32 1.0, %v1281
      %v1600 = vsub.f32 1.0, %v1283
      %v1601 = vsub.f32 1.0, %v1285
      %v1602 = vsub.f32 1.0, %v1287
      %v1603 = vsub.f32 1.0, %v1289
      %v1604 = vsub.f32 1.0, %v1291
      %v1605 = vsub.f32 1.0, %v1293
      %v1606 = vsub.f32 1.0, %v1295
      %v1607 = vsub.f32 1.0, %v1297
      %v1608 = vsub.f32 1.0, %v1299
      %v1609 = vsub.f32 1.0, %v1301
      %v1610 = vsub.f32 1.0, %v1303
      %v1611 = vsub.f32 1.0, %v1305
      %v1612 = vsub.f32 1.0, %v1307
      %v1613 = vsub.f32 1.0, %v1309
      %v1614 = vsub.f32 1.0, %v1311
      %v1615 = vsub.f32 1.0, %v1313
      %v1616 = vsub.f32 1.0, %v1315
      %v1617 = vsub.f32 1.0, %v1317
      %1643 = vrot.lane.b32.xlu0 %v1568, 96
      %v1644 = vpop.permute.xlu0 %1643
      %1645 = vrot.lane.b32.xlu0 %v1569, 96
      %v1646 = vpop.permute.xlu0 %1645
      %1647 = vrot.lane.b32.xlu0 %v1570, 96
      %v1648 = vpop.permute.xlu0 %1647
      %1649 = vrot.lane.b32.xlu0 %v1571, 96
      %v1650 = vpop.permute.xlu0 %1649
      %1651 = vrot.lane.b32.xlu0 %v1572, 96
      %v1652 = vpop.permute.xlu0 %1651
      %1653 = vrot.lane.b32.xlu0 %v1573, 96
      %v1654 = vpop.permute.xlu0 %1653
      %1655 = vrot.lane.b32.xlu0 %v1574, 96
      %v1656 = vpop.permute.xlu0 %1655
      %1657 = vrot.lane.b32.xlu0 %v1575, 96
      %v1658 = vpop.permute.xlu0 %1657
      %1659 = vrot.lane.b32.xlu0 %v1576, 96
      %v1660 = vpop.permute.xlu0 %1659
      %1661 = vrot.lane.b32.xlu0 %v1577, 96
      %v1662 = vpop.permute.xlu0 %1661
      %1663 = vrot.lane.b32.xlu0 %v1578, 96
      %v1664 = vpop.permute.xlu0 %1663
      %1665 = vrot.lane.b32.xlu0 %v1579, 96
      %v1666 = vpop.permute.xlu0 %1665
      %1667 = vrot.lane.b32.xlu0 %v1580, 96
      %v1668 = vpop.permute.xlu0 %1667
      %1669 = vrot.lane.b32.xlu0 %v1581, 96
      %v1670 = vpop.permute.xlu0 %1669
      %1671 = vrot.lane.b32.xlu0 %v1582, 96
      %v1672 = vpop.permute.xlu0 %1671
      %1673 = vrot.lane.b32.xlu0 %v1583, 96
      %v1674 = vpop.permute.xlu0 %1673
      %1675 = vrot.lane.b32.xlu0 %v1584, 96
      %v1676 = vpop.permute.xlu0 %1675
      %1677 = vrot.lane.b32.xlu0 %v1585, 96
      %v1678 = vpop.permute.xlu0 %1677
      %1679 = vrot.lane.b32.xlu0 %v1586, 96
      %v1680 = vpop.permute.xlu0 %1679
      %1681 = vrot.lane.b32.xlu0 %v1587, 96
      %v1682 = vpop.permute.xlu0 %1681
      %1683 = vrot.lane.b32.xlu0 %v1588, 96
      %v1684 = vpop.permute.xlu0 %1683
      %1685 = vrot.lane.b32.xlu0 %v1589, 96
      %v1686 = vpop.permute.xlu0 %1685
      %1687 = vrot.lane.b32.xlu0 %v1590, 96
      %v1688 = vpop.permute.xlu0 %1687
      %1689 = vrot.lane.b32.xlu0 %v1591, 96
      %v1690 = vpop.permute.xlu0 %1689
      %1691 = vrot.lane.b32.xlu0 %v1592, 96
      %v1692 = vpop.permute.xlu0 %1691
      %v1718 = vmul.f32 %v1593, %v1644
      %v1719 = vmul.f32 %v1594, %v1646
      %v1720 = vmul.f32 %v1595, %v1648
      %v1721 = vmul.f32 %v1596, %v1650
      %v1722 = vmul.f32 %v1597, %v1652
      %v1723 = vmul.f32 %v1598, %v1654
      %v1724 = vmul.f32 %v1599, %v1656
      %v1725 = vmul.f32 %v1600, %v1658
      %v1726 = vmul.f32 %v1601, %v1660
      %v1727 = vmul.f32 %v1602, %v1662
      %v1728 = vmul.f32 %v1603, %v1664
      %v1729 = vmul.f32 %v1604, %v1666
      %v1730 = vmul.f32 %v1605, %v1668
      %v1731 = vmul.f32 %v1606, %v1670
      %v1732 = vmul.f32 %v1607, %v1672
      %v1733 = vmul.f32 %v1608, %v1674
      %v1734 = vmul.f32 %v1609, %v1676
      %v1735 = vmul.f32 %v1610, %v1678
      %v1736 = vmul.f32 %v1611, %v1680
      %v1737 = vmul.f32 %v1612, %v1682
      %v1738 = vmul.f32 %v1613, %v1684
      %v1739 = vmul.f32 %v1614, %v1686
      %v1740 = vmul.f32 %v1615, %v1688
      %v1741 = vmul.f32 %v1616, %v1690
      %v1742 = vmul.f32 %v1617, %v1692
      %1743 = vrot.lane.b32.xlu0 %v313, 32
      %v1744 = vpop.permute.xlu0 %1743
      %1745 = vrot.lane.b32.xlu0 %v314, 32
      %v1746 = vpop.permute.xlu0 %1745
      %1747 = vrot.lane.b32.xlu0 %v315, 32
      %v1748 = vpop.permute.xlu0 %1747
      %1749 = vrot.lane.b32.xlu0 %v316, 32
      %v1750 = vpop.permute.xlu0 %1749
      %1751 = vrot.lane.b32.xlu0 %v317, 32
      %v1752 = vpop.permute.xlu0 %1751
      %1753 = vrot.lane.b32.xlu0 %v318, 32
      %v1754 = vpop.permute.xlu0 %1753
      %1755 = vrot.lane.b32.xlu0 %v319, 32
      %v1756 = vpop.permute.xlu0 %1755
      %1757 = vrot.lane.b32.xlu0 %v320, 32
      %v1758 = vpop.permute.xlu0 %1757
      %1759 = vrot.lane.b32.xlu0 %v321, 32
      %v1760 = vpop.permute.xlu0 %1759
      %1761 = vrot.lane.b32.xlu0 %v322, 32
      %v1762 = vpop.permute.xlu0 %1761
      %1763 = vrot.lane.b32.xlu0 %v323, 32
      %v1764 = vpop.permute.xlu0 %1763
      %1765 = vrot.lane.b32.xlu0 %v324, 32
      %v1766 = vpop.permute.xlu0 %1765
      %1767 = vrot.lane.b32.xlu0 %v325, 32
      %v1768 = vpop.permute.xlu0 %1767
      %1769 = vrot.lane.b32.xlu0 %v326, 32
      %v1770 = vpop.permute.xlu0 %1769
      %1771 = vrot.lane.b32.xlu0 %v327, 32
      %v1772 = vpop.permute.xlu0 %1771
      %1773 = vrot.lane.b32.xlu0 %v328, 32
      %v1774 = vpop.permute.xlu0 %1773
      %1775 = vrot.lane.b32.xlu0 %v329, 32
      %v1776 = vpop.permute.xlu0 %1775
      %1777 = vrot.lane.b32.xlu0 %v330, 32
      %v1778 = vpop.permute.xlu0 %1777
      %1779 = vrot.lane.b32.xlu0 %v331, 32
      %v1780 = vpop.permute.xlu0 %1779
      %1781 = vrot.lane.b32.xlu0 %v332, 32
      %v1782 = vpop.permute.xlu0 %1781
      %1783 = vrot.lane.b32.xlu0 %v333, 32
      %v1784 = vpop.permute.xlu0 %1783
      %1785 = vrot.lane.b32.xlu0 %v334, 32
      %v1786 = vpop.permute.xlu0 %1785
      %1787 = vrot.lane.b32.xlu0 %v335, 32
      %v1788 = vpop.permute.xlu0 %1787
      %1789 = vrot.lane.b32.xlu0 %v336, 32
      %v1790 = vpop.permute.xlu0 %1789
      %1791 = vrot.lane.b32.xlu0 %v337, 32
      %v1792 = vpop.permute.xlu0 %1791
      %v1818 = vmul.f32 %v1269, %v1744
      %v1819 = vmul.f32 %v1271, %v1746
      %v1820 = vmul.f32 %v1273, %v1748
      %v1821 = vmul.f32 %v1275, %v1750
      %v1822 = vmul.f32 %v1277, %v1752
      %v1823 = vmul.f32 %v1279, %v1754
      %v1824 = vmul.f32 %v1281, %v1756
      %v1825 = vmul.f32 %v1283, %v1758
      %v1826 = vmul.f32 %v1285, %v1760
      %v1827 = vmul.f32 %v1287, %v1762
      %v1828 = vmul.f32 %v1289, %v1764
      %v1829 = vmul.f32 %v1291, %v1766
      %v1830 = vmul.f32 %v1293, %v1768
      %v1831 = vmul.f32 %v1295, %v1770
      %v1832 = vmul.f32 %v1297, %v1772
      %v1833 = vmul.f32 %v1299, %v1774
      %v1834 = vmul.f32 %v1301, %v1776
      %v1835 = vmul.f32 %v1303, %v1778
      %v1836 = vmul.f32 %v1305, %v1780
      %v1837 = vmul.f32 %v1307, %v1782
      %v1838 = vmul.f32 %v1309, %v1784
      %v1839 = vmul.f32 %v1311, %v1786
      %v1840 = vmul.f32 %v1313, %v1788
      %v1841 = vmul.f32 %v1315, %v1790
      %v1842 = vmul.f32 %v1317, %v1792
      %v1843 = vadd.f32 %v1718, %v1818
      %v1844 = vadd.f32 %v1719, %v1819
      %v1845 = vadd.f32 %v1720, %v1820
      %v1846 = vadd.f32 %v1721, %v1821
      %v1847 = vadd.f32 %v1722, %v1822
      %v1848 = vadd.f32 %v1723, %v1823
      %v1849 = vadd.f32 %v1724, %v1824
      %v1850 = vadd.f32 %v1725, %v1825
      %v1851 = vadd.f32 %v1726, %v1826
      %v1852 = vadd.f32 %v1727, %v1827
      %v1853 = vadd.f32 %v1728, %v1828
      %v1854 = vadd.f32 %v1729, %v1829
      %v1855 = vadd.f32 %v1730, %v1830
      %v1856 = vadd.f32 %v1731, %v1831
      %v1857 = vadd.f32 %v1732, %v1832
      %v1858 = vadd.f32 %v1733, %v1833
      %v1859 = vadd.f32 %v1734, %v1834
      %v1860 = vadd.f32 %v1735, %v1835
      %v1861 = vadd.f32 %v1736, %v1836
      %v1862 = vadd.f32 %v1737, %v1837
      %v1863 = vadd.f32 %v1738, %v1838
      %v1864 = vadd.f32 %v1739, %v1839
      %v1865 = vadd.f32 %v1740, %v1840
      %v1866 = vadd.f32 %v1741, %v1841
      %v1867 = vadd.f32 %v1742, %v1842
      %1893 = vrot.lane.b32.xlu0 %v1843, 96
      %v1894 = vpop.permute.xlu0 %1893
      %1895 = vrot.lane.b32.xlu0 %v1844, 96
      %v1896 = vpop.permute.xlu0 %1895
      %1897 = vrot.lane.b32.xlu0 %v1845, 96
      %v1898 = vpop.permute.xlu0 %1897
      %1899 = vrot.lane.b32.xlu0 %v1846, 96
      %v1900 = vpop.permute.xlu0 %1899
      %1901 = vrot.lane.b32.xlu0 %v1847, 96
      %v1902 = vpop.permute.xlu0 %1901
      %1903 = vrot.lane.b32.xlu0 %v1848, 96
      %v1904 = vpop.permute.xlu0 %1903
      %1905 = vrot.lane.b32.xlu0 %v1849, 96
      %v1906 = vpop.permute.xlu0 %1905
      %1907 = vrot.lane.b32.xlu0 %v1850, 96
      %v1908 = vpop.permute.xlu0 %1907
      %1909 = vrot.lane.b32.xlu0 %v1851, 96
      %v1910 = vpop.permute.xlu0 %1909
      %1911 = vrot.lane.b32.xlu0 %v1852, 96
      %v1912 = vpop.permute.xlu0 %1911
      %1913 = vrot.lane.b32.xlu0 %v1853, 96
      %v1914 = vpop.permute.xlu0 %1913
      %1915 = vrot.lane.b32.xlu0 %v1854, 96
      %v1916 = vpop.permute.xlu0 %1915
      %1917 = vrot.lane.b32.xlu0 %v1855, 96
      %v1918 = vpop.permute.xlu0 %1917
      %1919 = vrot.lane.b32.xlu0 %v1856, 96
      %v1920 = vpop.permute.xlu0 %1919
      %1921 = vrot.lane.b32.xlu0 %v1857, 96
      %v1922 = vpop.permute.xlu0 %1921
      %1923 = vrot.lane.b32.xlu0 %v1858, 96
      %v1924 = vpop.permute.xlu0 %1923
      %1925 = vrot.lane.b32.xlu0 %v1859, 96
      %v1926 = vpop.permute.xlu0 %1925
      %1927 = vrot.lane.b32.xlu0 %v1860, 96
      %v1928 = vpop.permute.xlu0 %1927
      %1929 = vrot.lane.b32.xlu0 %v1861, 96
      %v1930 = vpop.permute.xlu0 %1929
      %1931 = vrot.lane.b32.xlu0 %v1862, 96
      %v1932 = vpop.permute.xlu0 %1931
      %1933 = vrot.lane.b32.xlu0 %v1863, 96
      %v1934 = vpop.permute.xlu0 %1933
      %1935 = vrot.lane.b32.xlu0 %v1864, 96
      %v1936 = vpop.permute.xlu0 %1935
      %1937 = vrot.lane.b32.xlu0 %v1865, 96
      %v1938 = vpop.permute.xlu0 %1937
      %1939 = vrot.lane.b32.xlu0 %v1866, 96
      %v1940 = vpop.permute.xlu0 %1939
      %1941 = vrot.lane.b32.xlu0 %v1867, 96
      %v1942 = vpop.permute.xlu0 %1941
      %1968 = vst.msk [vmem:[#allocation2] sm:$0xff] %vm344, %v1894
      %1969 = vst.msk [vmem:[#allocation2 + $0x8] sm:$0xff] %vm344, %v1896
      %1970 = vst.msk [vmem:[#allocation2 + $0x10] sm:$0xff] %vm344, %v1898
      %1971 = vst.msk [vmem:[#allocation2 + $0x18] sm:$0xff] %vm344, %v1900
      %1972 = vst.msk [vmem:[#allocation2 + $0x20] sm:$0xff] %vm344, %v1902
      %1973 = vst.msk [vmem:[#allocation2 + $0x28] sm:$0xff] %vm344, %v1904
      %1974 = vst.msk [vmem:[#allocation2 + $0x30] sm:$0xff] %vm344, %v1906
      %1975 = vst.msk [vmem:[#allocation2 + $0x38] sm:$0xff] %vm344, %v1908
      %1976 = vst.msk [vmem:[#allocation2 + $0x40] sm:$0xff] %vm344, %v1910
      %1977 = vst.msk [vmem:[#allocation2 + $0x48] sm:$0xff] %vm344, %v1912
      %1978 = vst.msk [vmem:[#allocation2 + $0x50] sm:$0xff] %vm344, %v1914
      %1979 = vst.msk [vmem:[#allocation2 + $0x58] sm:$0xff] %vm344, %v1916
      %1980 = vst.msk [vmem:[#allocation2 + $0x60] sm:$0xff] %vm344, %v1918
      %1981 = vst.msk [vmem:[#allocation2 + $0x68] sm:$0xff] %vm344, %v1920
      %1982 = vst.msk [vmem:[#allocation2 + $0x70] sm:$0xff] %vm344, %v1922
      %1983 = vst.msk [vmem:[#allocation2 + $0x78] sm:$0xff] %vm344, %v1924
      %1984 = vst.msk [vmem:[#allocation2 + $0x80] sm:$0xff] %vm344, %v1926
      %1985 = vst.msk [vmem:[#allocation2 + $0x88] sm:$0xff] %vm344, %v1928
      %1986 = vst.msk [vmem:[#allocation2 + $0x90] sm:$0xff] %vm344, %v1930
      %1987 = vst.msk [vmem:[#allocation2 + $0x98] sm:$0xff] %vm344, %v1932
      %1988 = vst.msk [vmem:[#allocation2 + $0xa0] sm:$0xff] %vm344, %v1934
      %1989 = vst.msk [vmem:[#allocation2 + $0xa8] sm:$0xff] %vm344, %v1936
      %1990 = vst.msk [vmem:[#allocation2 + $0xb0] sm:$0xff] %vm344, %v1938
      %1991 = vst.msk [vmem:[#allocation2 + $0xb8] sm:$0xff] %vm344, %v1940
      %1992 = vst.msk [vmem:[#allocation2 + $0xc0] sm:$0xff] %vm344, %v1942
      %p1993 = scmp.eq.s32.totalorder %s21, 1
      // Predicated region
      $region45: #{devign_forward.2} parent=39 // pred_check
        %p1994 = pneg %p1993
      $region46: #{devign_forward.2} parent=39 // pred_check_branch
        %1996 = sbr.rel (%p1994) target = $region48
      $region47: #{devign_forward.2} parent=39 // pred_region
        %1997 = vst.msk [vmem:[%s256] sm:$0xff] %vm344, %v1894
        %1998 = vst.msk [vmem:[%s256 + $0x8] sm:$0xff] %vm344, %v1896
        %1999 = vst.msk [vmem:[%s256 + $0x10] sm:$0xff] %vm344, %v1898
        %2000 = vst.msk [vmem:[%s256 + $0x18] sm:$0xff] %vm344, %v1900
        %2001 = vst.msk [vmem:[%s256 + $0x20] sm:$0xff] %vm344, %v1902
        %2002 = vst.msk [vmem:[%s256 + $0x28] sm:$0xff] %vm344, %v1904
        %2003 = vst.msk [vmem:[%s256 + $0x30] sm:$0xff] %vm344, %v1906
        %2004 = vst.msk [vmem:[%s256 + $0x38] sm:$0xff] %vm344, %v1908
        %2005 = vst.msk [vmem:[%s256 + $0x40] sm:$0xff] %vm344, %v1910
        %2006 = vst.msk [vmem:[%s256 + $0x48] sm:$0xff] %vm344, %v1912
        %2007 = vst.msk [vmem:[%s256 + $0x50] sm:$0xff] %vm344, %v1914
        %2008 = vst.msk [vmem:[%s256 + $0x58] sm:$0xff] %vm344, %v1916
        %2009 = vst.msk [vmem:[%s256 + $0x60] sm:$0xff] %vm344, %v1918
        %2010 = vst.msk [vmem:[%s256 + $0x68] sm:$0xff] %vm344, %v1920
        %2011 = vst.msk [vmem:[%s256 + $0x70] sm:$0xff] %vm344, %v1922
        %2012 = vst.msk [vmem:[%s256 + $0x78] sm:$0xff] %vm344, %v1924
        %2013 = vst.msk [vmem:[%s256 + $0x80] sm:$0xff] %vm344, %v1926
        %2014 = vst.msk [vmem:[%s256 + $0x88] sm:$0xff] %vm344, %v1928
        %2015 = vst.msk [vmem:[%s256 + $0x90] sm:$0xff] %vm344, %v1930
        %2016 = vst.msk [vmem:[%s256 + $0x98] sm:$0xff] %vm344, %v1932
        %2017 = vst.msk [vmem:[%s256 + $0xa0] sm:$0xff] %vm344, %v1934
        %2018 = vst.msk [vmem:[%s256 + $0xa8] sm:$0xff] %vm344, %v1936
        %2019 = vst.msk [vmem:[%s256 + $0xb0] sm:$0xff] %vm344, %v1938
        %2020 = vst.msk [vmem:[%s256 + $0xb8] sm:$0xff] %vm344, %v1940
        %2021 = vst.msk [vmem:[%s256 + $0xc0] sm:$0xff] %vm344, %v1942
      $region48: #{devign_forward.2} parent=39 // pred_fallthru
        _
      %p2022 = scmp.lt.s32.totalorder %s20, 1
      %s2023 = scalar_select %p2022, %s20, 1
      %s2024 = smul.addr %s2023, 25
      %s2025 = smul.addr %s2024, 8
      %s2026 = scalar_lea.vmem %s5, %s2025
      // Predicated region
      $region49: #{devign_forward.2} parent=39 // pred_check
        %p2027 = pneg %p161
      $region50: #{devign_forward.2} parent=39 // pred_check_branch
        %2029 = sbr.rel (%p2027) target = $region52
      $region51: #{devign_forward.2} parent=39 // pred_region
        _
      $region52: #{devign_forward.2} parent=39 // pred_fallthru
        _
    $region40: #{devign_forward.2} parent=5 // pred_fallthru
      _
    %p2030 = scmp.le.s32.totalorder 2, %s11
    // Predicated region
    $region53: #{devign_forward.2} parent=5 // pred_check
      %p2031 = pneg %p2030
    $region54: #{devign_forward.2} parent=5 // pred_check_branch
      %2033 = sbr.rel (%p2031) target = $region56
    $region55: #{devign_forward.2} parent=5 // pred_region
      %s2034 = ssub.s32 %s11, 2
      // Predicated region
      $region57: #{devign_forward.2} parent=55 // pred_check
        %p2035 = pneg %p167
      $region58: #{devign_forward.2} parent=55 // pred_check_branch
        %2037 = sbr.rel (%p2035) target = $region60
      $region59: #{devign_forward.2} parent=55 // pred_region
        %p2038 = scmp.lt.s32.totalorder %s22, 1
        %s2039 = scalar_select %p2038, %s22, 1
        %s2040 = smul.addr %s2039, 25
        %s2041 = smul.addr %s2040, 8
        %s2042 = scalar_lea.vmem %s5, %s2041
      $region60: #{devign_forward.2} parent=55 // pred_fallthru
        _
    $region56: #{devign_forward.2} parent=5 // pred_fallthru
      _
  $region6: #{devign_forward.2} parent=0 // loop_footer
    %s15 = sadd.s32 1, %s11
  $region7: #{devign_forward.2} parent=0 // loop_footer_branch
    %10 = sbr.rel target = $region3
  $region8: #{devign_forward.2} parent=0 // loop_exit
    _

// kernel: devign_forward.3
$region0: #{devign_forward.3}
  #allocation0 [shape = 'u32[]', space=smem, size = 0x4, offset = 0x4, fixed_abs, tag = 'smem constant byte address 0x4 - core index']
  #allocation1 [shape = 'u32[144,128]{1,0:T(1,128)}', space=vmem, size = 0x12000, scoped, tag = 'internal scratch']
  #allocation2 [shape = 'f32[1,1]{1,0:T(1,128)S(1)}', space=vmem, size = 0x200, scoped, tag = 'scoped memory for devign_forward.3']
  #allocation3 [shape = 'f32[1,1]{1,0:T(1,128)S(1)}', space=vmem, size = 0x200, scoped, tag = 'scoped memory for devign_forward.3']
  #allocation4 [shape = 'f32[1,1]{1,0:T(1,128)S(1)}', space=vmem, size = 0x200, scoped, tag = 'scoped memory for devign_forward.3']
  #allocation5 [shape = 'f32[1,1]{1,0:T(1,128)S(1)}', space=vmem, size = 0x200, scoped, tag = 'scoped memory for devign_forward.3']
  %s0 = inlined_call_operand.vmem [shape: bf16[2,40,200], index: 0, kind: input, shape index: {}]
  %s1 = inlined_call_operand.vmem [shape: bf16[2,32,200], index: 1, kind: input, shape index: {}]
  %s2 = inlined_call_operand.vmem [shape: bf16[3,200,50], index: 2, kind: input, shape index: {}]
  %s3 = inlined_call_operand.vmem [shape: f32[1,50], index: 3, kind: input, shape index: {}]
  %s4 = inlined_call_operand.vmem [shape: f32[1,50], index: 4, kind: input, shape index: {}]
  %s5 = inlined_call_operand.<no memory space> [shape: f32[1,1], index: 5, kind: input, shape index: {}]
  %s6 = inlined_call_operand.vmem [shape: f32[34,1], index: 6, kind: input, shape index: {}]
  %s7 = inlined_call_operand.<no memory space> [shape: f32[1,1], index: 7, kind: input, shape index: {}]
  %s8 = inlined_call_operand.vmem [shape: bf16[3,200,50], index: 8, kind: input, shape index: {}]
  %s9 = inlined_call_operand.vmem [shape: f32[1,50], index: 9, kind: input, shape index: {}]
  %s10 = inlined_call_operand.vmem [shape: f32[1,50], index: 10, kind: input, shape index: {}]
  %s11 = inlined_call_operand.<no memory space> [shape: f32[1,1], index: 11, kind: input, shape index: {}]
  %s12 = inlined_call_operand.vmem [shape: f32[26,1], index: 12, kind: input, shape index: {}]
  %s13 = inlined_call_operand.<no memory space> [shape: f32[1,1], index: 13, kind: input, shape index: {}]
  %s14 = inlined_call_operand.vmem [shape: f32[2,1], index: 14, kind: output, shape index: {}]
  %s15 = sld [smem:[#allocation0]]
  $region66: #{devign_forward.3} parent=0
    _
  %s17 = ssub.s32 1, %s15
  %s18 = scalar_select 0, %s17, %s15
  %v19 = vstv %s5
  %20 = vst [vmem:[#allocation2] sm:$0x1] %v19
  %v21 = vstv %s7
  %22 = vst [vmem:[#allocation3] sm:$0x1] %v21
  %v23 = vstv %s11
  %24 = vst [vmem:[#allocation4] sm:$0x1] %v23
  %v25 = vstv %s13
  %26 = vst [vmem:[#allocation5] sm:$0x1] %v25
  // Predicated region
  $region2: #{devign_forward.3} parent=0 // pred_check
    _
  $region3: #{devign_forward.3} parent=0 // pred_check_branch
    %28 = sbr.rel (0) target = $region5
  $region4: #{devign_forward.3} parent=0 // pred_region
    _
  $region5: #{devign_forward.3} parent=0 // pred_fallthru
    _
  // Predicated region
  $region6: #{devign_forward.3} parent=0 // pred_check
    _
  $region7: #{devign_forward.3} parent=0 // pred_check_branch
    %30 = sbr.rel (0) target = $region9
  $region8: #{devign_forward.3} parent=0 // pred_region
    _
  $region9: #{devign_forward.3} parent=0 // pred_fallthru
    _
  // Predicated region
  $region10: #{devign_forward.3} parent=0 // pred_check
    _
  $region11: #{devign_forward.3} parent=0 // pred_check_branch
    %32 = sbr.rel (0) target = $region13
  $region12: #{devign_forward.3} parent=0 // pred_region
    _
  $region13: #{devign_forward.3} parent=0 // pred_fallthru
    _
  // Predicated region
  $region14: #{devign_forward.3} parent=0 // pred_check
    _
  $region15: #{devign_forward.3} parent=0 // pred_check_branch
    %34 = sbr.rel (0) target = $region17
  $region16: #{devign_forward.3} parent=0 // pred_region
    _
  $region17: #{devign_forward.3} parent=0 // pred_fallthru
    _
  // Predicated region
  $region18: #{devign_forward.3} parent=0 // pred_check
    _
  $region19: #{devign_forward.3} parent=0 // pred_check_branch
    %36 = sbr.rel (0) target = $region21
  $region20: #{devign_forward.3} parent=0 // pred_region
    _
  $region21: #{devign_forward.3} parent=0 // pred_fallthru
    _
  // Predicated region
  $region22: #{devign_forward.3} parent=0 // pred_check
    _
  $region23: #{devign_forward.3} parent=0 // pred_check_branch
    %38 = sbr.rel (0) target = $region25
  $region24: #{devign_forward.3} parent=0 // pred_region
    _
  $region25: #{devign_forward.3} parent=0 // pred_fallthru
    _
  // Predicated region
  $region26: #{devign_forward.3} parent=0 // pred_check
    _
  $region27: #{devign_forward.3} parent=0 // pred_check_branch
    %40 = sbr.rel (0) target = $region29
  $region28: #{devign_forward.3} parent=0 // pred_region
    _
  $region29: #{devign_forward.3} parent=0 // pred_fallthru
    _
  // Predicated region
  $region30: #{devign_forward.3} parent=0 // pred_check
    _
  $region31: #{devign_forward.3} parent=0 // pred_check_branch
    %42 = sbr.rel (0) target = $region33
  $region32: #{devign_forward.3} parent=0 // pred_region
    _
  $region33: #{devign_forward.3} parent=0 // pred_fallthru
    _
  // Predicated region
  $region34: #{devign_forward.3} parent=0 // pred_check
    _
  $region35: #{devign_forward.3} parent=0 // pred_check_branch
    %44 = sbr.rel (0) target = $region37
  $region36: #{devign_forward.3} parent=0 // pred_region
    _
  $region37: #{devign_forward.3} parent=0 // pred_fallthru
    _
  // Predicated region
  $region38: #{devign_forward.3} parent=0 // pred_check
    _
  $region39: #{devign_forward.3} parent=0 // pred_check_branch
    %46 = sbr.rel (0) target = $region41
  $region40: #{devign_forward.3} parent=0 // pred_region
    _
  $region41: #{devign_forward.3} parent=0 // pred_fallthru
    _
  // Predicated region
  $region42: #{devign_forward.3} parent=0 // pred_check
    _
  $region43: #{devign_forward.3} parent=0 // pred_check_branch
    %48 = sbr.rel (0) target = $region45
  $region44: #{devign_forward.3} parent=0 // pred_region
    _
  $region45: #{devign_forward.3} parent=0 // pred_fallthru
    _
  // Predicated region
  $region46: #{devign_forward.3} parent=0 // pred_check
    _
  $region47: #{devign_forward.3} parent=0 // pred_check_branch
    %50 = sbr.rel (0) target = $region49
  $region48: #{devign_forward.3} parent=0 // pred_region
    _
  $region49: #{devign_forward.3} parent=0 // pred_fallthru
    _
  // Predicated region
  $region50: #{devign_forward.3} parent=0 // pred_check
    _
  $region51: #{devign_forward.3} parent=0 // pred_check_branch
    %52 = sbr.rel (0) target = $region53
  $region52: #{devign_forward.3} parent=0 // pred_region
    _
  $region53: #{devign_forward.3} parent=0 // pred_fallthru
    _
  // Predicated region
  $region54: #{devign_forward.3} parent=0 // pred_check
    _
  $region55: #{devign_forward.3} parent=0 // pred_check_branch
    %54 = sbr.rel (0) target = $region57
  $region56: #{devign_forward.3} parent=0 // pred_region
    _
  $region57: #{devign_forward.3} parent=0 // pred_fallthru
    _
  %v56 = vld [vmem:[%s0] sm:$0xff]
  %v57 = vld [vmem:[%s0 + $0x8] sm:$0xff]
  %v58 = vld [vmem:[%s0 + $0x10] sm:$0xff]
  %v59 = vld [vmem:[%s0 + $0x18] sm:$0xff]
  %v60 = vld [vmem:[%s0 + $0x20] sm:$0xff]
  %v61 = vld [vmem:[%s0 + $0x28] sm:$0xff]
  %v62 = vld [vmem:[%s0 + $0x30] sm:$0xff]
  %v63 = vld [vmem:[%s0 + $0x38] sm:$0xff]
  %v64 = vld [vmem:[%s0 + $0x40] sm:$0xff]
  %v65 = vld [vmem:[%s0 + $0x48] sm:$0xff]
  %v66 = vld [vmem:[%s2] sm:$0xf]
  %v67 = vld [vmem:[%s2 + $0x4] sm:$0xf]
  %v68 = vld [vmem:[%s2 + $0x8] sm:$0xf]
  %v69 = vld [vmem:[%s2 + $0xc] sm:$0xf]
  %v70 = vld [vmem:[%s2 + $0x10] sm:$0xf]
  %v71 = vld [vmem:[%s2 + $0x14] sm:$0xf]
  %v72 = vld [vmem:[%s2 + $0x18] sm:$0xf]
  %v73 = vld [vmem:[%s2 + $0x1c] sm:$0xf]
  %v74 = vld [vmem:[%s2 + $0x20] sm:$0xf]
  %v75 = vld [vmem:[%s2 + $0x24] sm:$0xf]
  %v76 = vld [vmem:[%s2 + $0x28] sm:$0xf]
  %v77 = vld [vmem:[%s2 + $0x2c] sm:$0xf]
  %v78 = vld [vmem:[%s2 + $0x30] sm:$0xf]
  %v79 = vld [vmem:[%s2 + $0x34] sm:$0xf]
  %v80 = vld [vmem:[%s2 + $0x38] sm:$0xf]
  %v81 = vld [vmem:[%s2 + $0x3c] sm:$0xf]
  %v82 = vld [vmem:[%s2 + $0x40] sm:$0xf]
  %v83 = vld [vmem:[%s2 + $0x44] sm:$0xf]
  %v84 = vld [vmem:[%s2 + $0x48] sm:$0xf]
  %v85 = vld [vmem:[%s2 + $0x4c] sm:$0xf]
  %v86 = vld [vmem:[%s2 + $0x50] sm:$0xf]
  %v87 = vld [vmem:[%s2 + $0x54] sm:$0xf]
  %v88 = vld [vmem:[%s2 + $0x58] sm:$0xf]
  %v89 = vld [vmem:[%s2 + $0x5c] sm:$0xf]
  %v90 = vld [vmem:[%s2 + $0x60] sm:$0xf]
  %v101 = vunpack.c.l.b16 %v56
  %v102 = vunpack.c.h.b16 %v56
  %v103 = vunpack.c.l.b16 %v57
  %v104 = vunpack.c.h.b16 %v57
  %v105 = vunpack.c.l.b16 %v58
  %v106 = vunpack.c.h.b16 %v58
  %v107 = vunpack.c.l.b16 %v59
  %v108 = vunpack.c.h.b16 %v59
  %v109 = vunpack.c.l.b16 %v60
  %v110 = vunpack.c.h.b16 %v60
  %v111 = vunpack.c.l.b16 %v61
  %v112 = vunpack.c.h.b16 %v61
  %v113 = vunpack.c.l.b16 %v62
  %v114 = vunpack.c.h.b16 %v62
  %v115 = vunpack.c.l.b16 %v63
  %v116 = vunpack.c.h.b16 %v63
  %v117 = vunpack.c.l.b16 %v64
  %v118 = vunpack.c.h.b16 %v64
  %v119 = vunpack.c.l.b16 %v65
  %v120 = vunpack.c.h.b16 %v65
  %v121 = vpack.c.b16 %v103, %v101
  %v122 = vpack.c.b16 %v104, %v102
  %v123 = vpack.c.b16 %v107, %v105
  %v124 = vpack.c.b16 %v108, %v106
  %v125 = vpack.c.b16 %v111, %v109
  %v126 = vpack.c.b16 %v112, %v110
  %v127 = vpack.c.b16 %v115, %v113
  %v128 = vpack.c.b16 %v116, %v114
  %v129 = vpack.c.b16 %v119, %v117
  %v130 = vpack.c.b16 %v120, %v118
  %v161 = vunpack.c.l.b16 %v66
  %v162 = vunpack.c.l.b16 %v67
  %v163 = vunpack.c.l.b16 %v68
  %v164 = vunpack.c.l.b16 %v69
  %v165 = vunpack.c.l.b16 %v70
  %v166 = vunpack.c.l.b16 %v71
  %v167 = vunpack.c.l.b16 %v72
  %v168 = vunpack.c.l.b16 %v73
  %v169 = vunpack.c.l.b16 %v74
  %v170 = vunpack.c.l.b16 %v75
  %v171 = vunpack.c.l.b16 %v76
  %v172 = vunpack.c.l.b16 %v77
  %v173 = vunpack.c.l.b16 %v78
  %v174 = vunpack.c.l.b16 %v79
  %v175 = vunpack.c.l.b16 %v80
  %v176 = vunpack.c.l.b16 %v81
  %v177 = vunpack.c.l.b16 %v82
  %v178 = vunpack.c.l.b16 %v83
  %v179 = vunpack.c.l.b16 %v84
  %v180 = vunpack.c.l.b16 %v85
  %v181 = vunpack.c.l.b16 %v86
  %v182 = vunpack.c.l.b16 %v87
  %v183 = vunpack.c.l.b16 %v88
  %v184 = vunpack.c.l.b16 %v89
  %v185 = vunpack.c.l.b16 %v90
  %v186 = vpack.c.b16 %v162, %v161
  %v187 = vpack.c.b16 %v164, %v163
  %v188 = vpack.c.b16 %v166, %v165
  %v189 = vpack.c.b16 %v168, %v167
  %v190 = vpack.c.b16 %v170, %v169
  %v191 = vpack.c.b16 %v172, %v171
  %v192 = vpack.c.b16 %v174, %v173
  %v193 = vpack.c.b16 %v176, %v175
  %v194 = vpack.c.b16 %v178, %v177
  %v195 = vpack.c.b16 %v180, %v179
  %v196 = vpack.c.b16 %v182, %v181
  %v197 = vpack.c.b16 %v184, %v183
  %v198 = vpack.c.b16 %v185, %v185
  %vm211 = vcmask 588800
  %v213 = vsel %vm211, %v122, 0
  %v216 = vsel %vm211, %v124, 0
  %v219 = vsel %vm211, %v126, 0
  %v222 = vsel %vm211, %v128, 0
  %v225 = vsel %vm211, %v130, 0
  %vm227 = vcmask 1043456
  %v229 = vsel %vm227, %v198, 0
  %231 = vmatprep.subr.bf16.mxu0 0
  %232 = vmatpush1.bf16.msra.mxu0 %v186
  %233 = vmatprep.subr.bf16.mxu0 0
  %234 = vmatpush1.bf16.msra.mxu0 %v187
  %235 = vmatprep.subr.bf16.mxu0 0
  %236 = vmatpush1.bf16.msra.mxu0 %v188
  %237 = vmatprep.subr.bf16.mxu0 0
  %238 = vmatpush1.bf16.msra.mxu0 %v189
  %239 = vmatprep.subr.bf16.mxu0 0
  %240 = vmatpush1.bf16.msra.mxu0 %v190
  %241 = vmatprep.subr.bf16.mxu0 0
  %242 = vmatpush1.bf16.msra.mxu0 %v191
  %243 = vmatprep.subr.bf16.mxu0 0
  %244 = vmatpush1.bf16.msra.mxu0 %v192
  %245 = vmatprep.subr.bf16.mxu0 0
  %246 = vmatpush1.bf16.msra.mxu0 %v193
  %247 = vmatprep.subr.bf16.mxu0 0
  %248 = vmatpush1.bf16.msra.mxu0 %v194
  %249 = vmatprep.subr.bf16.mxu0 0
  %250 = vmatpush1.bf16.msra.mxu0 %v195
  %251 = vmatprep.subr.bf16.mxu0 0
  %252 = vmatpush1.bf16.msra.mxu0 %v196
  %253 = vmatprep.subr.bf16.mxu0 0
  %254 = vmatpush1.bf16.msra.mxu0 %v197
  %255 = vmatprep.subr.bf16.mxu0 0
  %256 = vmatpush1.bf16.msra.mxu0 %v229
  %257 = vmatprep.subr.bf16.mxu0 0
  %258 = vmatpush1.bf16.msra.mxu0 0
  %259 = vmatprep.subr.bf16.mxu0 0
  %260 = vmatpush1.bf16.msra.mxu0 0
  %261 = vmatprep.subr.bf16.mxu0 0
  %262 = vmatpush1.bf16.msra.mxu0 0
  %263 = vmatprep.mubr.bf16.mxu0 %v213
  %264 = vmatmul.mubr.bf16.gmra.mrb[0].mxu0 %v121
  %v265 = vpop.f32.mrb[0].mxu0
  %v266 = vadd.f32 0.0, %v265
  %v267 = vpop.f32.mrb[0].mxu0
  %v268 = vpop.f32.mrb[0].mxu0
  %v269 = vadd.f32 0.0, %v268
  %v270 = vpop.f32.mrb[0].mxu0
  %271 = vmatprep.mubr.bf16.mxu0 %v216
  %272 = vmatmul.mubr.bf16.gmra.mrb[0].mxu0 %v123
  %v273 = vpop.f32.mrb[0].mxu0
  %v274 = vadd.f32 0.0, %v273
  %v275 = vpop.f32.mrb[0].mxu0
  %v276 = vpop.f32.mrb[0].mxu0
  %v277 = vadd.f32 0.0, %v276
  %v278 = vpop.f32.mrb[0].mxu0
  %279 = vmatprep.mubr.bf16.mxu0 %v219
  %280 = vmatmul.mubr.bf16.gmra.mrb[0].mxu0 %v125
  %v281 = vpop.f32.mrb[0].mxu0
  %v282 = vadd.f32 0.0, %v281
  %v283 = vpop.f32.mrb[0].mxu0
  %v284 = vpop.f32.mrb[0].mxu0
  %v285 = vadd.f32 0.0, %v284
  %v286 = vpop.f32.mrb[0].mxu0
  %287 = vmatprep.mubr.bf16.mxu0 %v222
  %288 = vmatmul.mubr.bf16.gmra.mrb[0].mxu0 %v127
  %v289 = vpop.f32.mrb[0].mxu0
  %v290 = vadd.f32 0.0, %v289
  %v291 = vpop.f32.mrb[0].mxu0
  %v292 = vpop.f32.mrb[0].mxu0
  %v293 = vadd.f32 0.0, %v292
  %v294 = vpop.f32.mrb[0].mxu0
  %295 = vmatprep.mubr.bf16.mxu0 %v225
  %296 = vmatmul.mubr.bf16.gmra.mrb[0].mxu0 %v129
  %v297 = vpop.f32.mrb[0].mxu0
  %v298 = vadd.f32 0.0, %v297
  %v299 = vpop.f32.mrb[0].mxu0
  %v300 = vpop.f32.mrb[0].mxu0
  %v301 = vadd.f32 0.0, %v300
  %v302 = vpop.f32.mrb[0].mxu0
  %303 = vdwg.mxu0
  %s304 = scalar_lea.vmem %s2, 100
  %v305 = vld [vmem:[%s304] sm:$0xf]
  %v306 = vld [vmem:[%s304 + $0x4] sm:$0xf]
  %v307 = vld [vmem:[%s304 + $0x8] sm:$0xf]
  %v308 = vld [vmem:[%s304 + $0xc] sm:$0xf]
  %v309 = vld [vmem:[%s304 + $0x10] sm:$0xf]
  %v310 = vld [vmem:[%s304 + $0x14] sm:$0xf]
  %v311 = vld [vmem:[%s304 + $0x18] sm:$0xf]
  %v312 = vld [vmem:[%s304 + $0x1c] sm:$0xf]
  %v313 = vld [vmem:[%s304 + $0x20] sm:$0xf]
  %v314 = vld [vmem:[%s304 + $0x24] sm:$0xf]
  %v315 = vld [vmem:[%s304 + $0x28] sm:$0xf]
  %v316 = vld [vmem:[%s304 + $0x2c] sm:$0xf]
  %v317 = vld [vmem:[%s304 + $0x30] sm:$0xf]
  %v318 = vld [vmem:[%s304 + $0x34] sm:$0xf]
  %v319 = vld [vmem:[%s304 + $0x38] sm:$0xf]
  %v320 = vld [vmem:[%s304 + $0x3c] sm:$0xf]
  %v321 = vld [vmem:[%s304 + $0x40] sm:$0xf]
  %v322 = vld [vmem:[%s304 + $0x44] sm:$0xf]
  %v323 = vld [vmem:[%s304 + $0x48] sm:$0xf]
  %v324 = vld [vmem:[%s304 + $0x4c] sm:$0xf]
  %v325 = vld [vmem:[%s304 + $0x50] sm:$0xf]
  %v326 = vld [vmem:[%s304 + $0x54] sm:$0xf]
  %v327 = vld [vmem:[%s304 + $0x58] sm:$0xf]
  %v328 = vld [vmem:[%s304 + $0x5c] sm:$0xf]
  %v329 = vld [vmem:[%s304 + $0x60] sm:$0xf]
  %v355 = vunpack.c.l.b16 %v305
  %v356 = vunpack.c.l.b16 %v306
  %v357 = vunpack.c.l.b16 %v307
  %v358 = vunpack.c.l.b16 %v308
  %v359 = vunpack.c.l.b16 %v309
  %v360 = vunpack.c.l.b16 %v310
  %v361 = vunpack.c.l.b16 %v311
  %v362 = vunpack.c.l.b16 %v312
  %v363 = vunpack.c.l.b16 %v313
  %v364 = vunpack.c.l.b16 %v314
  %v365 = vunpack.c.l.b16 %v315
  %v366 = vunpack.c.l.b16 %v316
  %v367 = vunpack.c.l.b16 %v317
  %v368 = vunpack.c.l.b16 %v318
  %v369 = vunpack.c.l.b16 %v319
  %v370 = vunpack.c.l.b16 %v320
  %v371 = vunpack.c.l.b16 %v321
  %v372 = vunpack.c.l.b16 %v322
  %v373 = vunpack.c.l.b16 %v323
  %v374 = vunpack.c.l.b16 %v324
  %v375 = vunpack.c.l.b16 %v325
  %v376 = vunpack.c.l.b16 %v326
  %v377 = vunpack.c.l.b16 %v327
  %v378 = vunpack.c.l.b16 %v328
  %v379 = vunpack.c.l.b16 %v329
  %v380 = vpack.c.b16 %v356, %v355
  %v381 = vpack.c.b16 %v358, %v357
  %v382 = vpack.c.b16 %v360, %v359
  %v383 = vpack.c.b16 %v362, %v361
  %v384 = vpack.c.b16 %v364, %v363
  %v385 = vpack.c.b16 %v366, %v365
  %v386 = vpack.c.b16 %v368, %v367
  %v387 = vpack.c.b16 %v370, %v369
  %v388 = vpack.c.b16 %v372, %v371
  %v389 = vpack.c.b16 %v374, %v373
  %v390 = vpack.c.b16 %v376, %v375
  %v391 = vpack.c.b16 %v378, %v377
  %v392 = vpack.c.b16 %v379, %v379
  %v406 = vsel %vm227, %v392, 0
  %408 = vmatprep.subr.bf16.mxu0 0
  %409 = vmatpush1.bf16.msra.mxu0 %v380
  %410 = vmatprep.subr.bf16.mxu0 0
  %411 = vmatpush1.bf16.msra.mxu0 %v381
  %412 = vmatprep.subr.bf16.mxu0 0
  %413 = vmatpush1.bf16.msra.mxu0 %v382
  %414 = vmatprep.subr.bf16.mxu0 0
  %415 = vmatpush1.bf16.msra.mxu0 %v383
  %416 = vmatprep.subr.bf16.mxu0 0
  %417 = vmatpush1.bf16.msra.mxu0 %v384
  %418 = vmatprep.subr.bf16.mxu0 0
  %419 = vmatpush1.bf16.msra.mxu0 %v385
  %420 = vmatprep.subr.bf16.mxu0 0
  %421 = vmatpush1.bf16.msra.mxu0 %v386
  %422 = vmatprep.subr.bf16.mxu0 0
  %423 = vmatpush1.bf16.msra.mxu0 %v387
  %424 = vmatprep.subr.bf16.mxu0 0
  %425 = vmatpush1.bf16.msra.mxu0 %v388
  %426 = vmatprep.subr.bf16.mxu0 0
  %427 = vmatpush1.bf16.msra.mxu0 %v389
  %428 = vmatprep.subr.bf16.mxu0 0
  %429 = vmatpush1.bf16.msra.mxu0 %v390
  %430 = vmatprep.subr.bf16.mxu0 0
  %431 = vmatpush1.bf16.msra.mxu0 %v391
  %432 = vmatprep.subr.bf16.mxu0 0
  %433 = vmatpush1.bf16.msra.mxu0 %v406
  %434 = vmatprep.subr.bf16.mxu0 0
  %435 = vmatpush1.bf16.msra.mxu0 0
  %436 = vmatprep.subr.bf16.mxu0 0
  %437 = vmatpush1.bf16.msra.mxu0 0
  %438 = vmatprep.subr.bf16.mxu0 0
  %439 = vmatpush1.bf16.msra.mxu0 0
  %440 = vmatprep.mubr.bf16.mxu0 %v213
  %441 = vmatmul.mubr.bf16.gmra.mrb[0].mxu0 %v121
  %v442 = vpop.f32.mrb[0].mxu0
  %v443 = vadd.f32 0.0, %v442
  %v444 = vpop.f32.mrb[0].mxu0
  %v445 = vpop.f32.mrb[0].mxu0
  %v446 = vadd.f32 0.0, %v445
  %v447 = vpop.f32.mrb[0].mxu0
  %448 = vmatprep.mubr.bf16.mxu0 %v216
  %449 = vmatmul.mubr.bf16.gmra.mrb[0].mxu0 %v123
  %v450 = vpop.f32.mrb[0].mxu0
  %v451 = vadd.f32 0.0, %v450
  %v452 = vpop.f32.mrb[0].mxu0
  %v453 = vpop.f32.mrb[0].mxu0
  %v454 = vadd.f32 0.0, %v453
  %v455 = vpop.f32.mrb[0].mxu0
  %456 = vmatprep.mubr.bf16.mxu0 %v219
  %457 = vmatmul.mubr.bf16.gmra.mrb[0].mxu0 %v125
  %v458 = vpop.f32.mrb[0].mxu0
  %v459 = vadd.f32 0.0, %v458
  %v460 = vpop.f32.mrb[0].mxu0
  %v461 = vpop.f32.mrb[0].mxu0
  %v462 = vadd.f32 0.0, %v461
  %v463 = vpop.f32.mrb[0].mxu0
  %464 = vmatprep.mubr.bf16.mxu0 %v222
  %465 = vmatmul.mubr.bf16.gmra.mrb[0].mxu0 %v127
  %v466 = vpop.f32.mrb[0].mxu0
  %v467 = vadd.f32 0.0, %v466
  %v468 = vpop.f32.mrb[0].mxu0
  %v469 = vpop.f32.mrb[0].mxu0
  %v470 = vadd.f32 0.0, %v469
  %v471 = vpop.f32.mrb[0].mxu0
  %472 = vmatprep.mubr.bf16.mxu0 %v225
  %473 = vmatmul.mubr.bf16.gmra.mrb[0].mxu0 %v129
  %v474 = vpop.f32.mrb[0].mxu0
  %v475 = vadd.f32 0.0, %v474
  %v476 = vpop.f32.mrb[0].mxu0
  %v477 = vpop.f32.mrb[0].mxu0
  %v478 = vadd.f32 0.0, %v477
  %v479 = vpop.f32.mrb[0].mxu0
  %480 = vdwg.mxu0
  %s481 = scalar_lea.vmem %s2, 200
  %v482 = vld [vmem:[%s481] sm:$0xf]
  %v483 = vld [vmem:[%s481 + $0x4] sm:$0xf]
  %v484 = vld [vmem:[%s481 + $0x8] sm:$0xf]
  %v485 = vld [vmem:[%s481 + $0xc] sm:$0xf]
  %v486 = vld [vmem:[%s481 + $0x10] sm:$0xf]
  %v487 = vld [vmem:[%s481 + $0x14] sm:$0xf]
  %v488 = vld [vmem:[%s481 + $0x18] sm:$0xf]
  %v489 = vld [vmem:[%s481 + $0x1c] sm:$0xf]
  %v490 = vld [vmem:[%s481 + $0x20] sm:$0xf]
  %v491 = vld [vmem:[%s481 + $0x24] sm:$0xf]
  %v492 = vld [vmem:[%s481 + $0x28] sm:$0xf]
  %v493 = vld [vmem:[%s481 + $0x2c] sm:$0xf]
  %v494 = vld [vmem:[%s481 + $0x30] sm:$0xf]
  %v495 = vld [vmem:[%s481 + $0x34] sm:$0xf]
  %v496 = vld [vmem:[%s481 + $0x38] sm:$0xf]
  %v497 = vld [vmem:[%s481 + $0x3c] sm:$0xf]
  %v498 = vld [vmem:[%s481 + $0x40] sm:$0xf]
  %v499 = vld [vmem:[%s481 + $0x44] sm:$0xf]
  %v500 = vld [vmem:[%s481 + $0x48] sm:$0xf]
  %v501 = vld [vmem:[%s481 + $0x4c] sm:$0xf]
  %v502 = vld [vmem:[%s481 + $0x50] sm:$0xf]
  %v503 = vld [vmem:[%s481 + $0x54] sm:$0xf]
  %v504 = vld [vmem:[%s481 + $0x58] sm:$0xf]
  %v505 = vld [vmem:[%s481 + $0x5c] sm:$0xf]
  %v506 = vld [vmem:[%s481 + $0x60] sm:$0xf]
  %v532 = vunpack.c.l.b16 %v482
  %v533 = vunpack.c.l.b16 %v483
  %v534 = vunpack.c.l.b16 %v484
  %v535 = vunpack.c.l.b16 %v485
  %v536 = vunpack.c.l.b16 %v486
  %v537 = vunpack.c.l.b16 %v487
  %v538 = vunpack.c.l.b16 %v488
  %v539 = vunpack.c.l.b16 %v489
  %v540 = vunpack.c.l.b16 %v490
  %v541 = vunpack.c.l.b16 %v491
  %v542 = vunpack.c.l.b16 %v492
  %v543 = vunpack.c.l.b16 %v493
  %v544 = vunpack.c.l.b16 %v494
  %v545 = vunpack.c.l.b16 %v495
  %v546 = vunpack.c.l.b16 %v496
  %v547 = vunpack.c.l.b16 %v497
  %v548 = vunpack.c.l.b16 %v498
  %v549 = vunpack.c.l.b16 %v499
  %v550 = vunpack.c.l.b16 %v500
  %v551 = vunpack.c.l.b16 %v501
  %v552 = vunpack.c.l.b16 %v502
  %v553 = vunpack.c.l.b16 %v503
  %v554 = vunpack.c.l.b16 %v504
  %v555 = vunpack.c.l.b16 %v505
  %v556 = vunpack.c.l.b16 %v506
  %v557 = vpack.c.b16 %v533, %v532
  %v558 = vpack.c.b16 %v535, %v534
  %v559 = vpack.c.b16 %v537, %v536
  %v560 = vpack.c.b16 %v539, %v538
  %v561 = vpack.c.b16 %v541, %v540
  %v562 = vpack.c.b16 %v543, %v542
  %v563 = vpack.c.b16 %v545, %v544
  %v564 = vpack.c.b16 %v547, %v546
  %v565 = vpack.c.b16 %v549, %v548
  %v566 = vpack.c.b16 %v551, %v550
  %v567 = vpack.c.b16 %v553, %v552
  %v568 = vpack.c.b16 %v555, %v554
  %v569 = vpack.c.b16 %v556, %v556
  %v583 = vsel %vm227, %v569, 0
  %585 = vmatprep.subr.bf16.mxu0 0
  %586 = vmatpush1.bf16.msra.mxu0 %v557
  %587 = vmatprep.subr.bf16.mxu0 0
  %588 = vmatpush1.bf16.msra.mxu0 %v558
  %589 = vmatprep.subr.bf16.mxu0 0
  %590 = vmatpush1.bf16.msra.mxu0 %v559
  %591 = vmatprep.subr.bf16.mxu0 0
  %592 = vmatpush1.bf16.msra.mxu0 %v560
  %593 = vmatprep.subr.bf16.mxu0 0
  %594 = vmatpush1.bf16.msra.mxu0 %v561
  %595 = vmatprep.subr.bf16.mxu0 0
  %596 = vmatpush1.bf16.msra.mxu0 %v562
  %597 = vmatprep.subr.bf16.mxu0 0
  %598 = vmatpush1.bf16.msra.mxu0 %v563
  %599 = vmatprep.subr.bf16.mxu0 0
  %600 = vmatpush1.bf16.msra.mxu0 %v564
  %601 = vmatprep.subr.bf16.mxu0 0
  %602 = vmatpush1.bf16.msra.mxu0 %v565
  %603 = vmatprep.subr.bf16.mxu0 0
  %604 = vmatpush1.bf16.msra.mxu0 %v566
  %605 = vmatprep.subr.bf16.mxu0 0
  %606 = vmatpush1.bf16.msra.mxu0 %v567
  %607 = vmatprep.subr.bf16.mxu0 0
  %608 = vmatpush1.bf16.msra.mxu0 %v568
  %609 = vmatprep.subr.bf16.mxu0 0
  %610 = vmatpush1.bf16.msra.mxu0 %v583
  %611 = vmatprep.subr.bf16.mxu0 0
  %612 = vmatpush1.bf16.msra.mxu0 0
  %613 = vmatprep.subr.bf16.mxu0 0
  %614 = vmatpush1.bf16.msra.mxu0 0
  %615 = vmatprep.subr.bf16.mxu0 0
  %616 = vmatpush1.bf16.msra.mxu0 0
  %617 = vmatprep.mubr.bf16.mxu0 %v213
  %618 = vmatmul.mubr.bf16.gmra.mrb[0].mxu0 %v121
  %v619 = vpop.f32.mrb[0].mxu0
  %v620 = vadd.f32 0.0, %v619
  %v621 = vpop.f32.mrb[0].mxu0
  %v622 = vpop.f32.mrb[0].mxu0
  %v623 = vadd.f32 0.0, %v622
  %v624 = vpop.f32.mrb[0].mxu0
  %625 = vmatprep.mubr.bf16.mxu0 %v216
  %626 = vmatmul.mubr.bf16.gmra.mrb[0].mxu0 %v123
  %v627 = vpop.f32.mrb[0].mxu0
  %v628 = vadd.f32 0.0, %v627
  %v629 = vpop.f32.mrb[0].mxu0
  %v630 = vpop.f32.mrb[0].mxu0
  %v631 = vadd.f32 0.0, %v630
  %v632 = vpop.f32.mrb[0].mxu0
  %633 = vmatprep.mubr.bf16.mxu0 %v219
  %634 = vmatmul.mubr.bf16.gmra.mrb[0].mxu0 %v125
  %v635 = vpop.f32.mrb[0].mxu0
  %v636 = vadd.f32 0.0, %v635
  %v637 = vpop.f32.mrb[0].mxu0
  %v638 = vpop.f32.mrb[0].mxu0
  %v639 = vadd.f32 0.0, %v638
  %v640 = vpop.f32.mrb[0].mxu0
  %641 = vmatprep.mubr.bf16.mxu0 %v222
  %642 = vmatmul.mubr.bf16.gmra.mrb[0].mxu0 %v127
  %v643 = vpop.f32.mrb[0].mxu0
  %v644 = vadd.f32 0.0, %v643
  %v645 = vpop.f32.mrb[0].mxu0
  %v646 = vpop.f32.mrb[0].mxu0
  %v647 = vadd.f32 0.0, %v646
  %v648 = vpop.f32.mrb[0].mxu0
  %649 = vmatprep.mubr.bf16.mxu0 %v225
  %650 = vmatmul.mubr.bf16.gmra.mrb[0].mxu0 %v129
  %v651 = vpop.f32.mrb[0].mxu0
  %v652 = vadd.f32 0.0, %v651
  %v653 = vpop.f32.mrb[0].mxu0
  %v654 = vpop.f32.mrb[0].mxu0
  %v655 = vadd.f32 0.0, %v654
  %v656 = vpop.f32.mrb[0].mxu0
  %657 = vdwg.mxu0
  %vm668 = vcmask 1046528
  %v669 = vrot.slane %v443, 1
  %v670 = vrot.slane %v446, 1
  %v671 = vsel %vm668, %v669, %v670
  %v672 = vrot.slane %v451, 1
  %v673 = vsel %vm668, %v670, %v672
  %v674 = vrot.slane %v454, 1
  %v675 = vsel %vm668, %v672, %v674
  %v676 = vrot.slane %v459, 1
  %v677 = vsel %vm668, %v674, %v676
  %v678 = vrot.slane %v462, 1
  %v679 = vrot.slane %v467, 1
  %v680 = vsel %vm668, %v678, %v679
  %v681 = vrot.slane %v470, 1
  %v682 = vsel %vm668, %v679, %v681
  %v683 = vrot.slane %v475, 1
  %v684 = vsel %vm668, %v681, %v683
  %v685 = vrot.slane %v478, 1
  %v686 = vsel %vm668, %v683, %v685
  %v697 = vadd.f32 %v266, %v671
  %v698 = vadd.f32 %v269, %v673
  %v699 = vadd.f32 %v274, %v675
  %v700 = vadd.f32 %v277, %v677
  %v701 = vadd.f32 %v282, %v676
  %v702 = vadd.f32 %v285, %v680
  %v703 = vadd.f32 %v290, %v682
  %v704 = vadd.f32 %v293, %v684
  %v705 = vadd.f32 %v298, %v686
  %v706 = vadd.f32 %v301, %v685
  %vm717 = vcmask 1045504
  %v718 = vrot.slane %v620, 2
  %v719 = vrot.slane %v623, 2
  %v720 = vsel %vm717, %v718, %v719
  %v721 = vrot.slane %v628, 2
  %v722 = vsel %vm717, %v719, %v721
  %v723 = vrot.slane %v631, 2
  %v724 = vsel %vm717, %v721, %v723
  %v725 = vrot.slane %v636, 2
  %v726 = vsel %vm717, %v723, %v725
  %v727 = vrot.slane %v639, 2
  %v728 = vrot.slane %v644, 2
  %v729 = vsel %vm717, %v727, %v728
  %v730 = vrot.slane %v647, 2
  %v731 = vsel %vm717, %v728, %v730
  %v732 = vrot.slane %v652, 2
  %v733 = vsel %vm717, %v730, %v732
  %v734 = vrot.slane %v655, 2
  %v735 = vsel %vm717, %v732, %v734
  %v746 = vadd.f32 %v697, %v720
  %v747 = vadd.f32 %v698, %v722
  %v748 = vadd.f32 %v699, %v724
  %v749 = vadd.f32 %v700, %v726
  %v750 = vadd.f32 %v701, %v725
  %v751 = vadd.f32 %v702, %v729
  %v752 = vadd.f32 %v703, %v731
  %v753 = vadd.f32 %v704, %v733
  %v754 = vadd.f32 %v705, %v735
  %v755 = vadd.f32 %v706, %v734
  %v756 = vld [vmem:[%s3] sm:$0x1]
  %v758 = vlaneseq
  %v759 = vshrl.u32 %v758, 7
  %v760 = vsub.s32 0, %v759
  %v761 = vrot.slane %v756, %v760
  %v763 = vadd.f32 %v746, %v761
  %v764 = vadd.f32 %v747, %v761
  %v765 = vadd.f32 %v748, %v761
  %v766 = vadd.f32 %v749, %v761
  %v767 = vadd.f32 %v750, %v761
  %v768 = vadd.f32 %v751, %v761
  %v769 = vadd.f32 %v752, %v761
  %v770 = vadd.f32 %v753, %v761
  %v771 = vadd.f32 %v754, %v761
  %v772 = vadd.f32 %v755, %v761
  %v773 = vmax.f32 %v763, 0.0
  %v774 = vmax.f32 %v764, 0.0
  %v775 = vmax.f32 %v765, 0.0
  %v776 = vmax.f32 %v766, 0.0
  %v777 = vmax.f32 %v767, 0.0
  %v778 = vmax.f32 %v768, 0.0
  %v779 = vmax.f32 %v769, 0.0
  %v780 = vmax.f32 %v770, 0.0
  %v781 = vmax.f32 %v771, 0.0
  %v782 = vmax.f32 %v772, 0.0
  %v793 = vrot.slane %v773, 1
  %v794 = vrot.slane %v774, 1
  %v795 = vsel %vm668, %v793, %v794
  %v796 = vrot.slane %v775, 1
  %v797 = vsel %vm668, %v794, %v796
  %v798 = vrot.slane %v776, 1
  %v799 = vsel %vm668, %v796, %v798
  %v800 = vrot.slane %v777, 1
  %v801 = vsel %vm668, %v798, %v800
  %v802 = vrot.slane %v778, 1
  %v803 = vrot.slane %v779, 1
  %v804 = vsel %vm668, %v802, %v803
  %v805 = vrot.slane %v780, 1
  %v806 = vsel %vm668, %v803, %v805
  %v807 = vrot.slane %v781, 1
  %v808 = vsel %vm668, %v805, %v807
  %v809 = vrot.slane %v782, 1
  %v810 = vsel %vm668, %v807, %v809
  %v821 = vmax.f32 %v773, %v795
  %v822 = vmax.f32 %v774, %v797
  %v823 = vmax.f32 %v775, %v799
  %v824 = vmax.f32 %v776, %v801
  %v825 = vmax.f32 %v777, %v800
  %v826 = vmax.f32 %v778, %v804
  %v827 = vmax.f32 %v779, %v806
  %v828 = vmax.f32 %v780, %v808
  %v829 = vmax.f32 %v781, %v810
  %v830 = vmax.f32 %v782, %v809
  %v831 = vrot.slane %v773, 2
  %v832 = vrot.slane %v774, 2
  %v833 = vsel %vm717, %v831, %v832
  %v834 = vrot.slane %v775, 2
  %v835 = vsel %vm717, %v832, %v834
  %v836 = vrot.slane %v776, 2
  %v837 = vsel %vm717, %v834, %v836
  %v838 = vrot.slane %v777, 2
  %v839 = vsel %vm717, %v836, %v838
  %v840 = vrot.slane %v778, 2
  %v841 = vrot.slane %v779, 2
  %v842 = vsel %vm717, %v840, %v841
  %v843 = vrot.slane %v780, 2
  %v844 = vsel %vm717, %v841, %v843
  %v845 = vrot.slane %v781, 2
  %v846 = vsel %vm717, %v843, %v845
  %v847 = vrot.slane %v782, 2
  %v848 = vsel %vm717, %v845, %v847
  %v859 = vmax.f32 %v821, %v833
  %v860 = vmax.f32 %v822, %v835
  %v861 = vmax.f32 %v823, %v837
  %v862 = vmax.f32 %v824, %v839
  %v863 = vmax.f32 %v825, %v838
  %v864 = vmax.f32 %v826, %v842
  %v865 = vmax.f32 %v827, %v844
  %v866 = vmax.f32 %v828, %v846
  %v867 = vmax.f32 %v829, %v848
  %v868 = vmax.f32 %v830, %v847
  %v869 = vld [vmem:[%s4] sm:$0x1]
  %v871 = vlaneseq
  %v872 = vshrl.u32 %v871, 7
  %v873 = vsub.s32 0, %v872
  %v874 = vrot.slane %v869, %v873
  %v876 = vmul.f32 %v859, %v874
  %v877 = vmul.f32 %v860, %v874
  %v878 = vmul.f32 %v861, %v874
  %v879 = vmul.f32 %v862, %v874
  %v880 = vmul.f32 %v863, %v874
  %v881 = vmul.f32 %v864, %v874
  %v882 = vmul.f32 %v865, %v874
  %v883 = vmul.f32 %v866, %v874
  %v884 = vmul.f32 %v867, %v874
  %v885 = vmul.f32 %v868, %v874
  %vm886 = vcmask 408576
  %v887 = vsel %vm886, %v876, 0.0
  %888 = vadd.xlane.f32.xlu0 %v887
  %v889 = vpop.xlane.xlu0 %888
  %v890 = vsel %vm886, %v877, 0.0
  %891 = vadd.xlane.f32.xlu0 %v890
  %v892 = vpop.xlane.xlu0 %891
  %v893 = vsel %vm886, %v878, 0.0
  %894 = vadd.xlane.f32.xlu0 %v893
  %v895 = vpop.xlane.xlu0 %894
  %v896 = vsel %vm886, %v879, 0.0
  %897 = vadd.xlane.f32.xlu0 %v896
  %v898 = vpop.xlane.xlu0 %897
  %vm899 = vcmask 404480
  %v900 = vsel %vm899, %v880, 0.0
  %901 = vadd.xlane.f32.xlu0 %v900
  %v902 = vpop.xlane.xlu0 %901
  %v903 = vsel %vm886, %v881, 0.0
  %904 = vadd.xlane.f32.xlu0 %v903
  %v905 = vpop.xlane.xlu0 %904
  %v906 = vsel %vm886, %v882, 0.0
  %907 = vadd.xlane.f32.xlu0 %v906
  %v908 = vpop.xlane.xlu0 %907
  %v909 = vsel %vm886, %v883, 0.0
  %910 = vadd.xlane.f32.xlu0 %v909
  %v911 = vpop.xlane.xlu0 %910
  %v912 = vsel %vm886, %v884, 0.0
  %913 = vadd.xlane.f32.xlu0 %v912
  %v914 = vpop.xlane.xlu0 %913
  %v915 = vsel %vm899, %v885, 0.0
  %916 = vadd.xlane.f32.xlu0 %v915
  %v917 = vpop.xlane.xlu0 %916
  %v918 = vld [vmem:[#allocation2] sm:$0x1]
  %v920 = vlaneseq
  %v921 = vshrl.u32 %v920, 7
  %v922 = vsub.s32 0, %v921
  %v923 = vrot.slane %v918, %v922
  %v925 = vadd.f32 %v889, %v923
  %v926 = vadd.f32 %v892, %v923
  %v927 = vadd.f32 %v895, %v923
  %v928 = vadd.f32 %v898, %v923
  %v929 = vadd.f32 %v902, %v923
  %v930 = vadd.f32 %v905, %v923
  %v931 = vadd.f32 %v908, %v923
  %v932 = vadd.f32 %v911, %v923
  %v933 = vadd.f32 %v914, %v923
  %v934 = vadd.f32 %v917, %v923
  %v935 = vmax.f32 %v925, 0.0
  %v936 = vmax.f32 %v926, 0.0
  %v937 = vmax.f32 %v927, 0.0
  %v938 = vmax.f32 %v928, 0.0
  %v939 = vmax.f32 %v929, 0.0
  %v940 = vmax.f32 %v930, 0.0
  %v941 = vmax.f32 %v931, 0.0
  %v942 = vmax.f32 %v932, 0.0
  %v943 = vmax.f32 %v933, 0.0
  %v944 = vmax.f32 %v934, 0.0
  %v955 = vrot.slane %v935, 2
  %v956 = vrot.slane %v936, 2
  %v957 = vsel %vm717, %v955, %v956
  %v958 = vrot.slane %v937, 2
  %v959 = vsel %vm717, %v956, %v958
  %v960 = vrot.slane %v938, 2
  %v961 = vsel %vm717, %v958, %v960
  %v962 = vrot.slane %v939, 2
  %v963 = vsel %vm717, %v960, %v962
  %v964 = vrot.slane %v940, 2
  %v965 = vrot.slane %v941, 2
  %v966 = vsel %vm717, %v964, %v965
  %v967 = vrot.slane %v942, 2
  %v968 = vsel %vm717, %v965, %v967
  %v969 = vrot.slane %v943, 2
  %v970 = vsel %vm717, %v967, %v969
  %v971 = vrot.slane %v944, 2
  %v972 = vsel %vm717, %v969, %v971
  %v983 = vmax.f32 %v935, %v957
  %v984 = vmax.f32 %v936, %v959
  %v985 = vmax.f32 %v937, %v961
  %v986 = vmax.f32 %v938, %v963
  %v987 = vmax.f32 %v939, %v962
  %v988 = vmax.f32 %v940, %v966
  %v989 = vmax.f32 %v941, %v968
  %v990 = vmax.f32 %v942, %v970
  %v991 = vmax.f32 %v943, %v972
  %v992 = vmax.f32 %v944, %v971
  %v993 = vld [vmem:[%s6] sm:$0xff]
  %v994 = vld [vmem:[%s6 + $0x8] sm:$0xff]
  %v995 = vld [vmem:[%s6 + $0x10] sm:$0xff]
  %v996 = vld [vmem:[%s6 + $0x18] sm:$0xff]
  %v997 = vld [vmem:[%s6 + $0x20] sm:$0x3]
  %v998 = vmul.f32 %v983, %v993
  %v999 = vmul.f32 %v984, %v994
  %v1000 = vmul.f32 %v985, %v995
  %v1001 = vmul.f32 %v986, %v996
  %v1002 = vmul.f32 %v987, %v997
  %v1003 = vmul.f32 %v988, %v993
  %v1004 = vmul.f32 %v989, %v994
  %v1005 = vmul.f32 %v990, %v995
  %v1006 = vmul.f32 %v991, %v996
  %v1007 = vmul.f32 %v992, %v997
  %vm1008 = vcmask 7168
  %v1009 = vsel %vm1008, %v998, 0.0
  %v1010 = vsel %vm1008, %v999, 0.0
  %v1011 = vadd.f32 %v1009, %v1010
  %v1012 = vsel %vm1008, %v1000, 0.0
  %v1013 = vadd.f32 %v1011, %v1012
  %v1014 = vsel %vm1008, %v1001, 0.0
  %v1015 = vadd.f32 %v1013, %v1014
  %vm1016 = vcmask 1024
  %v1017 = vsel %vm1016, %v1002, 0.0
  %v1018 = vadd.f32 %v1015, %v1017
  %v1019 = vrot.slane %v1018, 4
  %v1020 = vadd.f32 %v1018, %v1019
  %v1021 = vrot.slane %v1020, 2
  %v1022 = vadd.f32 %v1020, %v1021
  %v1023 = vrot.slane %v1022, 1
  %v1024 = vadd.f32 %v1022, %v1023
  %v1025 = vsel %vm1008, %v1003, 0.0
  %v1026 = vsel %vm1008, %v1004, 0.0
  %v1027 = vadd.f32 %v1025, %v1026
  %v1028 = vsel %vm1008, %v1005, 0.0
  %v1029 = vadd.f32 %v1027, %v1028
  %v1030 = vsel %vm1008, %v1006, 0.0
  %v1031 = vadd.f32 %v1029, %v1030
  %v1032 = vsel %vm1016, %v1007, 0.0
  %v1033 = vadd.f32 %v1031, %v1032
  %v1034 = vrot.slane %v1033, 4
  %v1035 = vadd.f32 %v1033, %v1034
  %v1036 = vrot.slane %v1035, 2
  %v1037 = vadd.f32 %v1035, %v1036
  %v1038 = vrot.slane %v1037, 1
  %v1039 = vadd.f32 %v1037, %v1038
  %v1040 = vld [vmem:[#allocation3] sm:$0x1]
  %v1042 = vlaneseq
  %v1043 = vshrl.u32 %v1042, 7
  %v1044 = vsub.s32 0, %v1043
  %v1045 = vrot.slane %v1040, %v1044
  %v1047 = vadd.f32 %v1024, %v1045
  %v1048 = vadd.f32 %v1039, %v1045
  %v1049 = vld [vmem:[%s1] sm:$0xff]
  %v1050 = vld [vmem:[%s1 + $0x8] sm:$0xff]
  %v1051 = vld [vmem:[%s1 + $0x10] sm:$0xff]
  %v1052 = vld [vmem:[%s1 + $0x18] sm:$0xff]
  %v1053 = vld [vmem:[%s1 + $0x20] sm:$0xff]
  %v1054 = vld [vmem:[%s1 + $0x28] sm:$0xff]
  %v1055 = vld [vmem:[%s1 + $0x30] sm:$0xff]
  %v1056 = vld [vmem:[%s1 + $0x38] sm:$0xff]
  %v1057 = vld [vmem:[%s8] sm:$0xf]
  %v1058 = vld [vmem:[%s8 + $0x4] sm:$0xf]
  %v1059 = vld [vmem:[%s8 + $0x8] sm:$0xf]
  %v1060 = vld [vmem:[%s8 + $0xc] sm:$0xf]
  %v1061 = vld [vmem:[%s8 + $0x10] sm:$0xf]
  %v1062 = vld [vmem:[%s8 + $0x14] sm:$0xf]
  %v1063 = vld [vmem:[%s8 + $0x18] sm:$0xf]
  %v1064 = vld [vmem:[%s8 + $0x1c] sm:$0xf]
  %v1065 = vld [vmem:[%s8 + $0x20] sm:$0xf]
  %v1066 = vld [vmem:[%s8 + $0x24] sm:$0xf]
  %v1067 = vld [vmem:[%s8 + $0x28] sm:$0xf]
  %v1068 = vld [vmem:[%s8 + $0x2c] sm:$0xf]
  %v1069 = vld [vmem:[%s8 + $0x30] sm:$0xf]
  %v1070 = vld [vmem:[%s8 + $0x34] sm:$0xf]
  %v1071 = vld [vmem:[%s8 + $0x38] sm:$0xf]
  %v1072 = vld [vmem:[%s8 + $0x3c] sm:$0xf]
  %v1073 = vld [vmem:[%s8 + $0x40] sm:$0xf]
  %v1074 = vld [vmem:[%s8 + $0x44] sm:$0xf]
  %v1075 = vld [vmem:[%s8 + $0x48] sm:$0xf]
  %v1076 = vld [vmem:[%s8 + $0x4c] sm:$0xf]
  %v1077 = vld [vmem:[%s8 + $0x50] sm:$0xf]
  %v1078 = vld [vmem:[%s8 + $0x54] sm:$0xf]
  %v1079 = vld [vmem:[%s8 + $0x58] sm:$0xf]
  %v1080 = vld [vmem:[%s8 + $0x5c] sm:$0xf]
  %v1081 = vld [vmem:[%s8 + $0x60] sm:$0xf]
  %v1090 = vunpack.c.l.b16 %v1049
  %v1091 = vunpack.c.h.b16 %v1049
  %v1092 = vunpack.c.l.b16 %v1050
  %v1093 = vunpack.c.h.b16 %v1050
  %v1094 = vunpack.c.l.b16 %v1051
  %v1095 = vunpack.c.h.b16 %v1051
  %v1096 = vunpack.c.l.b16 %v1052
  %v1097 = vunpack.c.h.b16 %v1052
  %v1098 = vunpack.c.l.b16 %v1053
  %v1099 = vunpack.c.h.b16 %v1053
  %v1100 = vunpack.c.l.b16 %v1054
  %v1101 = vunpack.c.h.b16 %v1054
  %v1102 = vunpack.c.l.b16 %v1055
  %v1103 = vunpack.c.h.b16 %v1055
  %v1104 = vunpack.c.l.b16 %v1056
  %v1105 = vunpack.c.h.b16 %v1056
  %v1106 = vpack.c.b16 %v1092, %v1090
  %v1107 = vpack.c.b16 %v1093, %v1091
  %v1108 = vpack.c.b16 %v1096, %v1094
  %v1109 = vpack.c.b16 %v1097, %v1095
  %v1110 = vpack.c.b16 %v1100, %v1098
  %v1111 = vpack.c.b16 %v1101, %v1099
  %v1112 = vpack.c.b16 %v1104, %v1102
  %v1113 = vpack.c.b16 %v1105, %v1103
  %v1143 = vunpack.c.l.b16 %v1057
  %v1144 = vunpack.c.l.b16 %v1058
  %v1145 = vunpack.c.l.b16 %v1059
  %v1146 = vunpack.c.l.b16 %v1060
  %v1147 = vunpack.c.l.b16 %v1061
  %v1148 = vunpack.c.l.b16 %v1062
  %v1149 = vunpack.c.l.b16 %v1063
  %v1150 = vunpack.c.l.b16 %v1064
  %v1151 = vunpack.c.l.b16 %v1065
  %v1152 = vunpack.c.l.b16 %v1066
  %v1153 = vunpack.c.l.b16 %v1067
  %v1154 = vunpack.c.l.b16 %v1068
  %v1155 = vunpack.c.l.b16 %v1069
  %v1156 = vunpack.c.l.b16 %v1070
  %v1157 = vunpack.c.l.b16 %v1071
  %v1158 = vunpack.c.l.b16 %v1072
  %v1159 = vunpack.c.l.b16 %v1073
  %v1160 = vunpack.c.l.b16 %v1074
  %v1161 = vunpack.c.l.b16 %v1075
  %v1162 = vunpack.c.l.b16 %v1076
  %v1163 = vunpack.c.l.b16 %v1077
  %v1164 = vunpack.c.l.b16 %v1078
  %v1165 = vunpack.c.l.b16 %v1079
  %v1166 = vunpack.c.l.b16 %v1080
  %v1167 = vunpack.c.l.b16 %v1081
  %v1168 = vpack.c.b16 %v1144, %v1143
  %v1169 = vpack.c.b16 %v1146, %v1145
  %v1170 = vpack.c.b16 %v1148, %v1147
  %v1171 = vpack.c.b16 %v1150, %v1149
  %v1172 = vpack.c.b16 %v1152, %v1151
  %v1173 = vpack.c.b16 %v1154, %v1153
  %v1174 = vpack.c.b16 %v1156, %v1155
  %v1175 = vpack.c.b16 %v1158, %v1157
  %v1176 = vpack.c.b16 %v1160, %v1159
  %v1177 = vpack.c.b16 %v1162, %v1161
  %v1178 = vpack.c.b16 %v1164, %v1163
  %v1179 = vpack.c.b16 %v1166, %v1165
  %v1180 = vpack.c.b16 %v1167, %v1167
  %v1194 = vsel %vm211, %v1107, 0
  %v1197 = vsel %vm211, %v1109, 0
  %v1200 = vsel %vm211, %v1111, 0
  %v1203 = vsel %vm211, %v1113, 0
  %v1206 = vsel %vm227, %v1180, 0
  %1208 = vmatprep.subr.bf16.mxu0 0
  %1209 = vmatpush1.bf16.msra.mxu0 %v1168
  %1210 = vmatprep.subr.bf16.mxu0 0
  %1211 = vmatpush1.bf16.msra.mxu0 %v1169
  %1212 = vmatprep.subr.bf16.mxu0 0
  %1213 = vmatpush1.bf16.msra.mxu0 %v1170
  %1214 = vmatprep.subr.bf16.mxu0 0
  %1215 = vmatpush1.bf16.msra.mxu0 %v1171
  %1216 = vmatprep.subr.bf16.mxu0 0
  %1217 = vmatpush1.bf16.msra.mxu0 %v1172
  %1218 = vmatprep.subr.bf16.mxu0 0
  %1219 = vmatpush1.bf16.msra.mxu0 %v1173
  %1220 = vmatprep.subr.bf16.mxu0 0
  %1221 = vmatpush1.bf16.msra.mxu0 %v1174
  %1222 = vmatprep.subr.bf16.mxu0 0
  %1223 = vmatpush1.bf16.msra.mxu0 %v1175
  %1224 = vmatprep.subr.bf16.mxu0 0
  %1225 = vmatpush1.bf16.msra.mxu0 %v1176
  %1226 = vmatprep.subr.bf16.mxu0 0
  %1227 = vmatpush1.bf16.msra.mxu0 %v1177
  %1228 = vmatprep.subr.bf16.mxu0 0
  %1229 = vmatpush1.bf16.msra.mxu0 %v1178
  %1230 = vmatprep.subr.bf16.mxu0 0
  %1231 = vmatpush1.bf16.msra.mxu0 %v1179
  %1232 = vmatprep.subr.bf16.mxu0 0
  %1233 = vmatpush1.bf16.msra.mxu0 %v1206
  %1234 = vmatprep.subr.bf16.mxu0 0
  %1235 = vmatpush1.bf16.msra.mxu0 0
  %1236 = vmatprep.subr.bf16.mxu0 0
  %1237 = vmatpush1.bf16.msra.mxu0 0
  %1238 = vmatprep.subr.bf16.mxu0 0
  %1239 = vmatpush1.bf16.msra.mxu0 0
  %1240 = vmatprep.mubr.bf16.mxu0 %v1194
  %1241 = vmatmul.mubr.bf16.gmra.mrb[0].mxu0 %v1106
  %v1242 = vpop.f32.mrb[0].mxu0
  %v1243 = vadd.f32 0.0, %v1242
  %v1244 = vpop.f32.mrb[0].mxu0
  %v1245 = vpop.f32.mrb[0].mxu0
  %v1246 = vadd.f32 0.0, %v1245
  %v1247 = vpop.f32.mrb[0].mxu0
  %1248 = vmatprep.mubr.bf16.mxu0 %v1197
  %1249 = vmatmul.mubr.bf16.gmra.mrb[0].mxu0 %v1108
  %v1250 = vpop.f32.mrb[0].mxu0
  %v1251 = vadd.f32 0.0, %v1250
  %v1252 = vpop.f32.mrb[0].mxu0
  %v1253 = vpop.f32.mrb[0].mxu0
  %v1254 = vadd.f32 0.0, %v1253
  %v1255 = vpop.f32.mrb[0].mxu0
  %1256 = vmatprep.mubr.bf16.mxu0 %v1200
  %1257 = vmatmul.mubr.bf16.gmra.mrb[0].mxu0 %v1110
  %v1258 = vpop.f32.mrb[0].mxu0
  %v1259 = vadd.f32 0.0, %v1258
  %v1260 = vpop.f32.mrb[0].mxu0
  %v1261 = vpop.f32.mrb[0].mxu0
  %v1262 = vadd.f32 0.0, %v1261
  %v1263 = vpop.f32.mrb[0].mxu0
  %1264 = vmatprep.mubr.bf16.mxu0 %v1203
  %1265 = vmatmul.mubr.bf16.gmra.mrb[0].mxu0 %v1112
  %v1266 = vpop.f32.mrb[0].mxu0
  %v1267 = vadd.f32 0.0, %v1266
  %v1268 = vpop.f32.mrb[0].mxu0
  %v1269 = vpop.f32.mrb[0].mxu0
  %v1270 = vadd.f32 0.0, %v1269
  %v1271 = vpop.f32.mrb[0].mxu0
  %1272 = vdwg.mxu0
  %s1273 = scalar_lea.vmem %s8, 100
  %v1274 = vld [vmem:[%s1273] sm:$0xf]
  %v1275 = vld [vmem:[%s1273 + $0x4] sm:$0xf]
  %v1276 = vld [vmem:[%s1273 + $0x8] sm:$0xf]
  %v1277 = vld [vmem:[%s1273 + $0xc] sm:$0xf]
  %v1278 = vld [vmem:[%s1273 + $0x10] sm:$0xf]
  %v1279 = vld [vmem:[%s1273 + $0x14] sm:$0xf]
  %v1280 = vld [vmem:[%s1273 + $0x18] sm:$0xf]
  %v1281 = vld [vmem:[%s1273 + $0x1c] sm:$0xf]
  %v1282 = vld [vmem:[%s1273 + $0x20] sm:$0xf]
  %v1283 = vld [vmem:[%s1273 + $0x24] sm:$0xf]
  %v1284 = vld [vmem:[%s1273 + $0x28] sm:$0xf]
  %v1285 = vld [vmem:[%s1273 + $0x2c] sm:$0xf]
  %v1286 = vld [vmem:[%s1273 + $0x30] sm:$0xf]
  %v1287 = vld [vmem:[%s1273 + $0x34] sm:$0xf]
  %v1288 = vld [vmem:[%s1273 + $0x38] sm:$0xf]
  %v1289 = vld [vmem:[%s1273 + $0x3c] sm:$0xf]
  %v1290 = vld [vmem:[%s1273 + $0x40] sm:$0xf]
  %v1291 = vld [vmem:[%s1273 + $0x44] sm:$0xf]
  %v1292 = vld [vmem:[%s1273 + $0x48] sm:$0xf]
  %v1293 = vld [vmem:[%s1273 + $0x4c] sm:$0xf]
  %v1294 = vld [vmem:[%s1273 + $0x50] sm:$0xf]
  %v1295 = vld [vmem:[%s1273 + $0x54] sm:$0xf]
  %v1296 = vld [vmem:[%s1273 + $0x58] sm:$0xf]
  %v1297 = vld [vmem:[%s1273 + $0x5c] sm:$0xf]
  %v1298 = vld [vmem:[%s1273 + $0x60] sm:$0xf]
  %v1324 = vunpack.c.l.b16 %v1274
  %v1325 = vunpack.c.l.b16 %v1275
  %v1326 = vunpack.c.l.b16 %v1276
  %v1327 = vunpack.c.l.b16 %v1277
  %v1328 = vunpack.c.l.b16 %v1278
  %v1329 = vunpack.c.l.b16 %v1279
  %v1330 = vunpack.c.l.b16 %v1280
  %v1331 = vunpack.c.l.b16 %v1281
  %v1332 = vunpack.c.l.b16 %v1282
  %v1333 = vunpack.c.l.b16 %v1283
  %v1334 = vunpack.c.l.b16 %v1284
  %v1335 = vunpack.c.l.b16 %v1285
  %v1336 = vunpack.c.l.b16 %v1286
  %v1337 = vunpack.c.l.b16 %v1287
  %v1338 = vunpack.c.l.b16 %v1288
  %v1339 = vunpack.c.l.b16 %v1289
  %v1340 = vunpack.c.l.b16 %v1290
  %v1341 = vunpack.c.l.b16 %v1291
  %v1342 = vunpack.c.l.b16 %v1292
  %v1343 = vunpack.c.l.b16 %v1293
  %v1344 = vunpack.c.l.b16 %v1294
  %v1345 = vunpack.c.l.b16 %v1295
  %v1346 = vunpack.c.l.b16 %v1296
  %v1347 = vunpack.c.l.b16 %v1297
  %v1348 = vunpack.c.l.b16 %v1298
  %v1349 = vpack.c.b16 %v1325, %v1324
  %v1350 = vpack.c.b16 %v1327, %v1326
  %v1351 = vpack.c.b16 %v1329, %v1328
  %v1352 = vpack.c.b16 %v1331, %v1330
  %v1353 = vpack.c.b16 %v1333, %v1332
  %v1354 = vpack.c.b16 %v1335, %v1334
  %v1355 = vpack.c.b16 %v1337, %v1336
  %v1356 = vpack.c.b16 %v1339, %v1338
  %v1357 = vpack.c.b16 %v1341, %v1340
  %v1358 = vpack.c.b16 %v1343, %v1342
  %v1359 = vpack.c.b16 %v1345, %v1344
  %v1360 = vpack.c.b16 %v1347, %v1346
  %v1361 = vpack.c.b16 %v1348, %v1348
  %v1375 = vsel %vm227, %v1361, 0
  %1377 = vmatprep.subr.bf16.mxu0 0
  %1378 = vmatpush1.bf16.msra.mxu0 %v1349
  %1379 = vmatprep.subr.bf16.mxu0 0
  %1380 = vmatpush1.bf16.msra.mxu0 %v1350
  %1381 = vmatprep.subr.bf16.mxu0 0
  %1382 = vmatpush1.bf16.msra.mxu0 %v1351
  %1383 = vmatprep.subr.bf16.mxu0 0
  %1384 = vmatpush1.bf16.msra.mxu0 %v1352
  %1385 = vmatprep.subr.bf16.mxu0 0
  %1386 = vmatpush1.bf16.msra.mxu0 %v1353
  %1387 = vmatprep.subr.bf16.mxu0 0
  %1388 = vmatpush1.bf16.msra.mxu0 %v1354
  %1389 = vmatprep.subr.bf16.mxu0 0
  %1390 = vmatpush1.bf16.msra.mxu0 %v1355
  %1391 = vmatprep.subr.bf16.mxu0 0
  %1392 = vmatpush1.bf16.msra.mxu0 %v1356
  %1393 = vmatprep.subr.bf16.mxu0 0
  %1394 = vmatpush1.bf16.msra.mxu0 %v1357
  %1395 = vmatprep.subr.bf16.mxu0 0
  %1396 = vmatpush1.bf16.msra.mxu0 %v1358
  %1397 = vmatprep.subr.bf16.mxu0 0
  %1398 = vmatpush1.bf16.msra.mxu0 %v1359
  %1399 = vmatprep.subr.bf16.mxu0 0
  %1400 = vmatpush1.bf16.msra.mxu0 %v1360
  %1401 = vmatprep.subr.bf16.mxu0 0
  %1402 = vmatpush1.bf16.msra.mxu0 %v1375
  %1403 = vmatprep.subr.bf16.mxu0 0
  %1404 = vmatpush1.bf16.msra.mxu0 0
  %1405 = vmatprep.subr.bf16.mxu0 0
  %1406 = vmatpush1.bf16.msra.mxu0 0
  %1407 = vmatprep.subr.bf16.mxu0 0
  %1408 = vmatpush1.bf16.msra.mxu0 0
  %1409 = vmatprep.mubr.bf16.mxu0 %v1194
  %1410 = vmatmul.mubr.bf16.gmra.mrb[0].mxu0 %v1106
  %v1411 = vpop.f32.mrb[0].mxu0
  %v1412 = vadd.f32 0.0, %v1411
  %v1413 = vpop.f32.mrb[0].mxu0
  %v1414 = vpop.f32.mrb[0].mxu0
  %v1415 = vadd.f32 0.0, %v1414
  %v1416 = vpop.f32.mrb[0].mxu0
  %1417 = vmatprep.mubr.bf16.mxu0 %v1197
  %1418 = vmatmul.mubr.bf16.gmra.mrb[0].mxu0 %v1108
  %v1419 = vpop.f32.mrb[0].mxu0
  %v1420 = vadd.f32 0.0, %v1419
  %v1421 = vpop.f32.mrb[0].mxu0
  %v1422 = vpop.f32.mrb[0].mxu0
  %v1423 = vadd.f32 0.0, %v1422
  %v1424 = vpop.f32.mrb[0].mxu0
  %1425 = vmatprep.mubr.bf16.mxu0 %v1200
  %1426 = vmatmul.mubr.bf16.gmra.mrb[0].mxu0 %v1110
  %v1427 = vpop.f32.mrb[0].mxu0
  %v1428 = vadd.f32 0.0, %v1427
  %v1429 = vpop.f32.mrb[0].mxu0
  %v1430 = vpop.f32.mrb[0].mxu0
  %v1431 = vadd.f32 0.0, %v1430
  %v1432 = vpop.f32.mrb[0].mxu0
  %1433 = vmatprep.mubr.bf16.mxu0 %v1203
  %1434 = vmatmul.mubr.bf16.gmra.mrb[0].mxu0 %v1112
  %v1435 = vpop.f32.mrb[0].mxu0
  %v1436 = vadd.f32 0.0, %v1435
  %v1437 = vpop.f32.mrb[0].mxu0
  %v1438 = vpop.f32.mrb[0].mxu0
  %v1439 = vadd.f32 0.0, %v1438
  %v1440 = vpop.f32.mrb[0].mxu0
  %1441 = vdwg.mxu0
  %s1442 = scalar_lea.vmem %s8, 200
  %v1443 = vld [vmem:[%s1442] sm:$0xf]
  %v1444 = vld [vmem:[%s1442 + $0x4] sm:$0xf]
  %v1445 = vld [vmem:[%s1442 + $0x8] sm:$0xf]
  %v1446 = vld [vmem:[%s1442 + $0xc] sm:$0xf]
  %v1447 = vld [vmem:[%s1442 + $0x10] sm:$0xf]
  %v1448 = vld [vmem:[%s1442 + $0x14] sm:$0xf]
  %v1449 = vld [vmem:[%s1442 + $0x18] sm:$0xf]
  %v1450 = vld [vmem:[%s1442 + $0x1c] sm:$0xf]
  %v1451 = vld [vmem:[%s1442 + $0x20] sm:$0xf]
  %v1452 = vld [vmem:[%s1442 + $0x24] sm:$0xf]
  %v1453 = vld [vmem:[%s1442 + $0x28] sm:$0xf]
  %v1454 = vld [vmem:[%s1442 + $0x2c] sm:$0xf]
  %v1455 = vld [vmem:[%s1442 + $0x30] sm:$0xf]
  %v1456 = vld [vmem:[%s1442 + $0x34] sm:$0xf]
  %v1457 = vld [vmem:[%s1442 + $0x38] sm:$0xf]
  %v1458 = vld [vmem:[%s1442 + $0x3c] sm:$0xf]
  %v1459 = vld [vmem:[%s1442 + $0x40] sm:$0xf]
  %v1460 = vld [vmem:[%s1442 + $0x44] sm:$0xf]
  %v1461 = vld [vmem:[%s1442 + $0x48] sm:$0xf]
  %v1462 = vld [vmem:[%s1442 + $0x4c] sm:$0xf]
  %v1463 = vld [vmem:[%s1442 + $0x50] sm:$0xf]
  %v1464 = vld [vmem:[%s1442 + $0x54] sm:$0xf]
  %v1465 = vld [vmem:[%s1442 + $0x58] sm:$0xf]
  %v1466 = vld [vmem:[%s1442 + $0x5c] sm:$0xf]
  %v1467 = vld [vmem:[%s1442 + $0x60] sm:$0xf]
  %v1493 = vunpack.c.l.b16 %v1443
  %v1494 = vunpack.c.l.b16 %v1444
  %v1495 = vunpack.c.l.b16 %v1445
  %v1496 = vunpack.c.l.b16 %v1446
  %v1497 = vunpack.c.l.b16 %v1447
  %v1498 = vunpack.c.l.b16 %v1448
  %v1499 = vunpack.c.l.b16 %v1449
  %v1500 = vunpack.c.l.b16 %v1450
  %v1501 = vunpack.c.l.b16 %v1451
  %v1502 = vunpack.c.l.b16 %v1452
  %v1503 = vunpack.c.l.b16 %v1453
  %v1504 = vunpack.c.l.b16 %v1454
  %v1505 = vunpack.c.l.b16 %v1455
  %v1506 = vunpack.c.l.b16 %v1456
  %v1507 = vunpack.c.l.b16 %v1457
  %v1508 = vunpack.c.l.b16 %v1458
  %v1509 = vunpack.c.l.b16 %v1459
  %v1510 = vunpack.c.l.b16 %v1460
  %v1511 = vunpack.c.l.b16 %v1461
  %v1512 = vunpack.c.l.b16 %v1462
  %v1513 = vunpack.c.l.b16 %v1463
  %v1514 = vunpack.c.l.b16 %v1464
  %v1515 = vunpack.c.l.b16 %v1465
  %v1516 = vunpack.c.l.b16 %v1466
  %v1517 = vunpack.c.l.b16 %v1467
  %v1518 = vpack.c.b16 %v1494, %v1493
  %v1519 = vpack.c.b16 %v1496, %v1495
  %v1520 = vpack.c.b16 %v1498, %v1497
  %v1521 = vpack.c.b16 %v1500, %v1499
  %v1522 = vpack.c.b16 %v1502, %v1501
  %v1523 = vpack.c.b16 %v1504, %v1503
  %v1524 = vpack.c.b16 %v1506, %v1505
  %v1525 = vpack.c.b16 %v1508, %v1507
  %v1526 = vpack.c.b16 %v1510, %v1509
  %v1527 = vpack.c.b16 %v1512, %v1511
  %v1528 = vpack.c.b16 %v1514, %v1513
  %v1529 = vpack.c.b16 %v1516, %v1515
  %v1530 = vpack.c.b16 %v1517, %v1517
  %v1544 = vsel %vm227, %v1530, 0
  %1546 = vmatprep.subr.bf16.mxu0 0
  %1547 = vmatpush1.bf16.msra.mxu0 %v1518
  %1548 = vmatprep.subr.bf16.mxu0 0
  %1549 = vmatpush1.bf16.msra.mxu0 %v1519
  %1550 = vmatprep.subr.bf16.mxu0 0
  %1551 = vmatpush1.bf16.msra.mxu0 %v1520
  %1552 = vmatprep.subr.bf16.mxu0 0
  %1553 = vmatpush1.bf16.msra.mxu0 %v1521
  %1554 = vmatprep.subr.bf16.mxu0 0
  %1555 = vmatpush1.bf16.msra.mxu0 %v1522
  %1556 = vmatprep.subr.bf16.mxu0 0
  %1557 = vmatpush1.bf16.msra.mxu0 %v1523
  %1558 = vmatprep.subr.bf16.mxu0 0
  %1559 = vmatpush1.bf16.msra.mxu0 %v1524
  %1560 = vmatprep.subr.bf16.mxu0 0
  %1561 = vmatpush1.bf16.msra.mxu0 %v1525
  %1562 = vmatprep.subr.bf16.mxu0 0
  %1563 = vmatpush1.bf16.msra.mxu0 %v1526
  %1564 = vmatprep.subr.bf16.mxu0 0
  %1565 = vmatpush1.bf16.msra.mxu0 %v1527
  %1566 = vmatprep.subr.bf16.mxu0 0
  %1567 = vmatpush1.bf16.msra.mxu0 %v1528
  %1568 = vmatprep.subr.bf16.mxu0 0
  %1569 = vmatpush1.bf16.msra.mxu0 %v1529
  %1570 = vmatprep.subr.bf16.mxu0 0
  %1571 = vmatpush1.bf16.msra.mxu0 %v1544
  %1572 = vmatprep.subr.bf16.mxu0 0
  %1573 = vmatpush1.bf16.msra.mxu0 0
  %1574 = vmatprep.subr.bf16.mxu0 0
  %1575 = vmatpush1.bf16.msra.mxu0 0
  %1576 = vmatprep.subr.bf16.mxu0 0
  %1577 = vmatpush1.bf16.msra.mxu0 0
  %1578 = vmatprep.mubr.bf16.mxu0 %v1194
  %1579 = vmatmul.mubr.bf16.gmra.mrb[0].mxu0 %v1106
  %v1580 = vpop.f32.mrb[0].mxu0
  %v1581 = vadd.f32 0.0, %v1580
  %v1582 = vpop.f32.mrb[0].mxu0
  %v1583 = vpop.f32.mrb[0].mxu0
  %v1584 = vadd.f32 0.0, %v1583
  %v1585 = vpop.f32.mrb[0].mxu0
  %1586 = vmatprep.mubr.bf16.mxu0 %v1197
  %1587 = vmatmul.mubr.bf16.gmra.mrb[0].mxu0 %v1108
  %v1588 = vpop.f32.mrb[0].mxu0
  %v1589 = vadd.f32 0.0, %v1588
  %v1590 = vpop.f32.mrb[0].mxu0
  %v1591 = vpop.f32.mrb[0].mxu0
  %v1592 = vadd.f32 0.0, %v1591
  %v1593 = vpop.f32.mrb[0].mxu0
  %1594 = vmatprep.mubr.bf16.mxu0 %v1200
  %1595 = vmatmul.mubr.bf16.gmra.mrb[0].mxu0 %v1110
  %v1596 = vpop.f32.mrb[0].mxu0
  %v1597 = vadd.f32 0.0, %v1596
  %v1598 = vpop.f32.mrb[0].mxu0
  %v1599 = vpop.f32.mrb[0].mxu0
  %v1600 = vadd.f32 0.0, %v1599
  %v1601 = vpop.f32.mrb[0].mxu0
  %1602 = vmatprep.mubr.bf16.mxu0 %v1203
  %1603 = vmatmul.mubr.bf16.gmra.mrb[0].mxu0 %v1112
  %v1604 = vpop.f32.mrb[0].mxu0
  %v1605 = vadd.f32 0.0, %v1604
  %v1606 = vpop.f32.mrb[0].mxu0
  %v1607 = vpop.f32.mrb[0].mxu0
  %v1608 = vadd.f32 0.0, %v1607
  %v1609 = vpop.f32.mrb[0].mxu0
  %1610 = vdwg.mxu0
  %v1619 = vrot.slane %v1412, 1
  %v1620 = vrot.slane %v1415, 1
  %v1621 = vsel %vm668, %v1619, %v1620
  %v1622 = vrot.slane %v1420, 1
  %v1623 = vsel %vm668, %v1620, %v1622
  %v1624 = vrot.slane %v1423, 1
  %v1625 = vsel %vm668, %v1622, %v1624
  %v1626 = vrot.slane %v1428, 1
  %v1627 = vrot.slane %v1431, 1
  %v1628 = vsel %vm668, %v1626, %v1627
  %v1629 = vrot.slane %v1436, 1
  %v1630 = vsel %vm668, %v1627, %v1629
  %v1631 = vrot.slane %v1439, 1
  %v1632 = vsel %vm668, %v1629, %v1631
  %v1641 = vadd.f32 %v1243, %v1621
  %v1642 = vadd.f32 %v1246, %v1623
  %v1643 = vadd.f32 %v1251, %v1625
  %v1644 = vadd.f32 %v1254, %v1624
  %v1645 = vadd.f32 %v1259, %v1628
  %v1646 = vadd.f32 %v1262, %v1630
  %v1647 = vadd.f32 %v1267, %v1632
  %v1648 = vadd.f32 %v1270, %v1631
  %v1657 = vrot.slane %v1581, 2
  %v1658 = vrot.slane %v1584, 2
  %v1659 = vsel %vm717, %v1657, %v1658
  %v1660 = vrot.slane %v1589, 2
  %v1661 = vsel %vm717, %v1658, %v1660
  %v1662 = vrot.slane %v1592, 2
  %v1663 = vsel %vm717, %v1660, %v1662
  %v1664 = vrot.slane %v1597, 2
  %v1665 = vrot.slane %v1600, 2
  %v1666 = vsel %vm717, %v1664, %v1665
  %v1667 = vrot.slane %v1605, 2
  %v1668 = vsel %vm717, %v1665, %v1667
  %v1669 = vrot.slane %v1608, 2
  %v1670 = vsel %vm717, %v1667, %v1669
  %v1679 = vadd.f32 %v1641, %v1659
  %v1680 = vadd.f32 %v1642, %v1661
  %v1681 = vadd.f32 %v1643, %v1663
  %v1682 = vadd.f32 %v1644, %v1662
  %v1683 = vadd.f32 %v1645, %v1666
  %v1684 = vadd.f32 %v1646, %v1668
  %v1685 = vadd.f32 %v1647, %v1670
  %v1686 = vadd.f32 %v1648, %v1669
  %v1687 = vld [vmem:[%s9] sm:$0x1]
  %v1689 = vlaneseq
  %v1690 = vshrl.u32 %v1689, 7
  %v1691 = vsub.s32 0, %v1690
  %v1692 = vrot.slane %v1687, %v1691
  %v1694 = vadd.f32 %v1679, %v1692
  %v1695 = vadd.f32 %v1680, %v1692
  %v1696 = vadd.f32 %v1681, %v1692
  %v1697 = vadd.f32 %v1682, %v1692
  %v1698 = vadd.f32 %v1683, %v1692
  %v1699 = vadd.f32 %v1684, %v1692
  %v1700 = vadd.f32 %v1685, %v1692
  %v1701 = vadd.f32 %v1686, %v1692
  %v1702 = vmax.f32 %v1694, 0.0
  %v1703 = vmax.f32 %v1695, 0.0
  %v1704 = vmax.f32 %v1696, 0.0
  %v1705 = vmax.f32 %v1697, 0.0
  %v1706 = vmax.f32 %v1698, 0.0
  %v1707 = vmax.f32 %v1699, 0.0
  %v1708 = vmax.f32 %v1700, 0.0
  %v1709 = vmax.f32 %v1701, 0.0
  %v1718 = vrot.slane %v1702, 1
  %v1719 = vrot.slane %v1703, 1
  %v1720 = vsel %vm668, %v1718, %v1719
  %v1721 = vrot.slane %v1704, 1
  %v1722 = vsel %vm668, %v1719, %v1721
  %v1723 = vrot.slane %v1705, 1
  %v1724 = vsel %vm668, %v1721, %v1723
  %v1725 = vrot.slane %v1706, 1
  %v1726 = vrot.slane %v1707, 1
  %v1727 = vsel %vm668, %v1725, %v1726
  %v1728 = vrot.slane %v1708, 1
  %v1729 = vsel %vm668, %v1726, %v1728
  %v1730 = vrot.slane %v1709, 1
  %v1731 = vsel %vm668, %v1728, %v1730
  %v1740 = vmax.f32 %v1702, %v1720
  %v1741 = vmax.f32 %v1703, %v1722
  %v1742 = vmax.f32 %v1704, %v1724
  %v1743 = vmax.f32 %v1705, %v1723
  %v1744 = vmax.f32 %v1706, %v1727
  %v1745 = vmax.f32 %v1707, %v1729
  %v1746 = vmax.f32 %v1708, %v1731
  %v1747 = vmax.f32 %v1709, %v1730
  %v1748 = vrot.slane %v1702, 2
  %v1749 = vrot.slane %v1703, 2
  %v1750 = vsel %vm717, %v1748, %v1749
  %v1751 = vrot.slane %v1704, 2
  %v1752 = vsel %vm717, %v1749, %v1751
  %v1753 = vrot.slane %v1705, 2
  %v1754 = vsel %vm717, %v1751, %v1753
  %v1755 = vrot.slane %v1706, 2
  %v1756 = vrot.slane %v1707, 2
  %v1757 = vsel %vm717, %v1755, %v1756
  %v1758 = vrot.slane %v1708, 2
  %v1759 = vsel %vm717, %v1756, %v1758
  %v1760 = vrot.slane %v1709, 2
  %v1761 = vsel %vm717, %v1758, %v1760
  %v1770 = vmax.f32 %v1740, %v1750
  %v1771 = vmax.f32 %v1741, %v1752
  %v1772 = vmax.f32 %v1742, %v1754
  %v1773 = vmax.f32 %v1743, %v1753
  %v1774 = vmax.f32 %v1744, %v1757
  %v1775 = vmax.f32 %v1745, %v1759
  %v1776 = vmax.f32 %v1746, %v1761
  %v1777 = vmax.f32 %v1747, %v1760
  %v1778 = vld [vmem:[%s10] sm:$0x1]
  %v1780 = vlaneseq
  %v1781 = vshrl.u32 %v1780, 7
  %v1782 = vsub.s32 0, %v1781
  %v1783 = vrot.slane %v1778, %v1782
  %v1785 = vmul.f32 %v1770, %v1783
  %v1786 = vmul.f32 %v1771, %v1783
  %v1787 = vmul.f32 %v1772, %v1783
  %v1788 = vmul.f32 %v1773, %v1783
  %v1789 = vmul.f32 %v1774, %v1783
  %v1790 = vmul.f32 %v1775, %v1783
  %v1791 = vmul.f32 %v1776, %v1783
  %v1792 = vmul.f32 %v1777, %v1783
  %v1793 = vsel %vm886, %v1785, 0.0
  %1794 = vadd.xlane.f32.xlu0 %v1793
  %v1795 = vpop.xlane.xlu0 %1794
  %v1796 = vsel %vm886, %v1786, 0.0
  %1797 = vadd.xlane.f32.xlu0 %v1796
  %v1798 = vpop.xlane.xlu0 %1797
  %v1799 = vsel %vm886, %v1787, 0.0
  %1800 = vadd.xlane.f32.xlu0 %v1799
  %v1801 = vpop.xlane.xlu0 %1800
  %v1802 = vsel %vm899, %v1788, 0.0
  %1803 = vadd.xlane.f32.xlu0 %v1802
  %v1804 = vpop.xlane.xlu0 %1803
  %v1805 = vsel %vm886, %v1789, 0.0
  %1806 = vadd.xlane.f32.xlu0 %v1805
  %v1807 = vpop.xlane.xlu0 %1806
  %v1808 = vsel %vm886, %v1790, 0.0
  %1809 = vadd.xlane.f32.xlu0 %v1808
  %v1810 = vpop.xlane.xlu0 %1809
  %v1811 = vsel %vm886, %v1791, 0.0
  %1812 = vadd.xlane.f32.xlu0 %v1811
  %v1813 = vpop.xlane.xlu0 %1812
  %v1814 = vsel %vm899, %v1792, 0.0
  %1815 = vadd.xlane.f32.xlu0 %v1814
  %v1816 = vpop.xlane.xlu0 %1815
  %v1817 = vld [vmem:[#allocation4] sm:$0x1]
  %v1819 = vlaneseq
  %v1820 = vshrl.u32 %v1819, 7
  %v1821 = vsub.s32 0, %v1820
  %v1822 = vrot.slane %v1817, %v1821
  %v1824 = vadd.f32 %v1795, %v1822
  %v1825 = vadd.f32 %v1798, %v1822
  %v1826 = vadd.f32 %v1801, %v1822
  %v1827 = vadd.f32 %v1804, %v1822
  %v1828 = vadd.f32 %v1807, %v1822
  %v1829 = vadd.f32 %v1810, %v1822
  %v1830 = vadd.f32 %v1813, %v1822
  %v1831 = vadd.f32 %v1816, %v1822
  %v1832 = vmax.f32 %v1824, 0.0
  %v1833 = vmax.f32 %v1825, 0.0
  %v1834 = vmax.f32 %v1826, 0.0
  %v1835 = vmax.f32 %v1827, 0.0
  %v1836 = vmax.f32 %v1828, 0.0
  %v1837 = vmax.f32 %v1829, 0.0
  %v1838 = vmax.f32 %v1830, 0.0
  %v1839 = vmax.f32 %v1831, 0.0
  %v1848 = vrot.slane %v1832, 2
  %v1849 = vrot.slane %v1833, 2
  %v1850 = vsel %vm717, %v1848, %v1849
  %v1851 = vrot.slane %v1834, 2
  %v1852 = vsel %vm717, %v1849, %v1851
  %v1853 = vrot.slane %v1835, 2
  %v1854 = vsel %vm717, %v1851, %v1853
  %v1855 = vrot.slane %v1836, 2
  %v1856 = vrot.slane %v1837, 2
  %v1857 = vsel %vm717, %v1855, %v1856
  %v1858 = vrot.slane %v1838, 2
  %v1859 = vsel %vm717, %v1856, %v1858
  %v1860 = vrot.slane %v1839, 2
  %v1861 = vsel %vm717, %v1858, %v1860
  %v1870 = vmax.f32 %v1832, %v1850
  %v1871 = vmax.f32 %v1833, %v1852
  %v1872 = vmax.f32 %v1834, %v1854
  %v1873 = vmax.f32 %v1835, %v1853
  %v1874 = vmax.f32 %v1836, %v1857
  %v1875 = vmax.f32 %v1837, %v1859
  %v1876 = vmax.f32 %v1838, %v1861
  %v1877 = vmax.f32 %v1839, %v1860
  %v1878 = vld [vmem:[%s12] sm:$0xff]
  %v1879 = vld [vmem:[%s12 + $0x8] sm:$0xff]
  %v1880 = vld [vmem:[%s12 + $0x10] sm:$0xff]
  %v1881 = vld [vmem:[%s12 + $0x18] sm:$0x3]
  %v1882 = vmul.f32 %v1870, %v1878
  %v1883 = vmul.f32 %v1871, %v1879
  %v1884 = vmul.f32 %v1872, %v1880
  %v1885 = vmul.f32 %v1873, %v1881
  %v1886 = vmul.f32 %v1874, %v1878
  %v1887 = vmul.f32 %v1875, %v1879
  %v1888 = vmul.f32 %v1876, %v1880
  %v1889 = vmul.f32 %v1877, %v1881
  %v1890 = vsel %vm1008, %v1882, 0.0
  %v1891 = vsel %vm1008, %v1883, 0.0
  %v1892 = vadd.f32 %v1890, %v1891
  %v1893 = vsel %vm1008, %v1884, 0.0
  %v1894 = vadd.f32 %v1892, %v1893
  %v1895 = vsel %vm1016, %v1885, 0.0
  %v1896 = vadd.f32 %v1894, %v1895
  %v1897 = vrot.slane %v1896, 4
  %v1898 = vadd.f32 %v1896, %v1897
  %v1899 = vrot.slane %v1898, 2
  %v1900 = vadd.f32 %v1898, %v1899
  %v1901 = vrot.slane %v1900, 1
  %v1902 = vadd.f32 %v1900, %v1901
  %v1903 = vsel %vm1008, %v1886, 0.0
  %v1904 = vsel %vm1008, %v1887, 0.0
  %v1905 = vadd.f32 %v1903, %v1904
  %v1906 = vsel %vm1008, %v1888, 0.0
  %v1907 = vadd.f32 %v1905, %v1906
  %v1908 = vsel %vm1016, %v1889, 0.0
  %v1909 = vadd.f32 %v1907, %v1908
  %v1910 = vrot.slane %v1909, 4
  %v1911 = vadd.f32 %v1909, %v1910
  %v1912 = vrot.slane %v1911, 2
  %v1913 = vadd.f32 %v1911, %v1912
  %v1914 = vrot.slane %v1913, 1
  %v1915 = vadd.f32 %v1913, %v1914
  %v1916 = vld [vmem:[#allocation5] sm:$0x1]
  %v1918 = vlaneseq
  %v1919 = vshrl.u32 %v1918, 7
  %v1920 = vsub.s32 0, %v1919
  %v1921 = vrot.slane %v1916, %v1920
  %v1923 = vadd.f32 %v1902, %v1921
  %v1924 = vadd.f32 %v1915, %v1921
  %v1925 = vmul.f32 %v1047, %v1923
  %v1926 = vmul.f32 %v1048, %v1924
  %v1927 = vsub.f32 0.0, %v1925
  %v1928 = vsub.f32 0.0, %v1926
  %v1929 = vmul.f32 %v1927, 1.442695
  %v1930 = vpow.pop %v1929
  %v1931 = vmul.f32 %v1928, 1.442695
  %v1932 = vpow.pop %v1931
  %v1933 = vadd.f32 %v1930, 1.0
  %v1934 = vadd.f32 %v1932, 1.0
  %v1935 = vrcp.pop %v1933
  %v1936 = vmul.f32 1.0, %v1935
  %v1937 = vrcp.pop %v1934
  %v1938 = vmul.f32 1.0, %v1937
  %v1941 = vrot.slane %v1938, 7
  %vm1942 = vcmask 1041409
  %v1943 = vsel %vm1942, %v1941, %v1936
  %1945 = vst.msk [vmem:[%s14] sm:$0x3] %vm1016, %v1943
  // Predicated region
  $region58: #{devign_forward.3} parent=0 // pred_check
    _
  $region59: #{devign_forward.3} parent=0 // pred_check_branch
    %1947 = sbr.rel (0) target = $region61
  $region60: #{devign_forward.3} parent=0 // pred_region
    _
  $region61: #{devign_forward.3} parent=0 // pred_fallthru
    _
  // Predicated region
  $region62: #{devign_forward.3} parent=0 // pred_check
    _
  $region63: #{devign_forward.3} parent=0 // pred_check_branch
    %1949 = sbr.rel (0) target = $region65
  $region64: #{devign_forward.3} parent=0 // pred_region
    _
  $region65: #{devign_forward.3} parent=0 // pred_fallthru
    _

</llo_original>
